<compile_context>
chip_gen: v5e
topology: v5e:2x2
jax: 0.10.0
libtpu: 0.0.40
codegen_flags: <defaults>
</compile_context>

<pallas_src>
import functools

import jax
import jax.numpy as jnp
from jax.experimental import pallas as pl


# ------------------------------ configuration ------------------------------

IMG, PATCH, CHANS = 32, 16, 3
DIM, DEPTH, HEADS, MLP_RATIO, NUM_CLASSES = 64, 2, 4, 4, 1
EPS = 1e-6

N_PATCHES = (IMG // PATCH) ** 2          # 4
N_TOK = N_PATCHES + 1                    # 5 (cls + patches)
N_TOK_PAD = 8                            # padded to a sublane multiple
HEAD_DIM = DIM // HEADS                  # 16
HIDDEN = DIM * MLP_RATIO                 # 256
PATCH_FEATS = CHANS * PATCH * PATCH      # 768
NEG_INF = -1e30


# ------------------------------ fused kernel -------------------------------

def _vit_kernel(*refs, depth, heads, batch, n_tok_pad, eps, scale):
    """Entire ViT forward for the whole batch in one invocation.

    Ref order:
      patch_slab [B*n_tok_pad, K], attn_bias [N, N], patch_w_eff [K, D],
      tok_bias [N, D],
      DEPTH x (ln1_g, ln1_b, q_w, k_w, v_w, proj_w_h, proj_b,
               ln2_g, ln2_b, fc1_w, fc1_b, fc2_w, fc2_b),
      norm_g, norm_b, head_w_row, head_b, out [B, NUM_CLASSES]
    """
    it = iter(refs)
    patch_ref = next(it)
    bias_ref = next(it)
    pw_ref = next(it)
    tokb_ref = next(it)
    blocks = [tuple(next(it) for _ in range(13)) for _ in range(depth)]
    ng_ref, nb_ref, hw_ref, hb_ref = (next(it) for _ in range(4))
    out_ref = next(it)

    f32 = jnp.float32
    d = pw_ref.shape[-1]

    def layernorm(v, g_ref, b_ref):
        mu = jnp.mean(v, axis=-1, keepdims=True)
        var = jnp.mean((v - mu) ** 2, axis=-1, keepdims=True)
        return (v - mu) * jax.lax.rsqrt(var + eps) * g_ref[...] + b_ref[...]

    # ---- patch embed: one batch-flat matmul; cls / pos / conv-bias are folded
    #      into tok_bias, padded rows stay exactly zero. ----
    x = (jnp.dot(patch_ref[...], pw_ref[...], preferred_element_type=f32)
         + tokb_ref[...])                                     # [N, D]
    n = x.shape[0]

    for (ln1_g, ln1_b, qw, kw, vw, pjw, pjb,
         ln2_g, ln2_b, f1w, f1b, f2w, f2b) in blocks:
        # ---- MHSA (per-head weights -> no lane slicing, no concat) ----
        h = layernorm(x, ln1_g, ln1_b)
        attn = jnp.zeros((n, d), f32)
        for hh in range(heads):                               # static unroll
            q = jnp.dot(h, qw[hh], preferred_element_type=f32)   # [N, dh]
            k = jnp.dot(h, kw[hh], preferred_element_type=f32)
            v = jnp.dot(h, vw[hh], preferred_element_type=f32)
            s = jax.lax.dot_general(
                q, k, (((1,), (1,)), ((), ())),
                preferred_element_type=f32) * scale             # [N, N]
            s = s + bias_ref[...]          # block-diag over batch, -inf on pads
            s = s - jnp.max(s, axis=-1, keepdims=True)
            p = jnp.exp(s)
            p = p * pl.reciprocal(jnp.sum(p, axis=-1, keepdims=True),
                                  approx=True)
            o = jnp.dot(p, v, preferred_element_type=f32)        # [N, dh]
            attn = attn + jnp.dot(o, pjw[hh],
                                  preferred_element_type=f32)    # [N, D]
        x = x + attn + pjb[...]

        # ---- MLP ----
        h2 = layernorm(x, ln2_g, ln2_b)
        m = jnp.dot(h2, f1w[...], preferred_element_type=f32) + f1b[...]
        # TODO(synk): torch nn.GELU defaults to exact erf; tanh approximation
        # used here (EUP path).
        m = jax.nn.gelu(m, approximate=True)
        x = x + jnp.dot(m, f2w[...], preferred_element_type=f32) + f2b[...]

    # ---- final LN + head on the cls rows only (VPU multiply + lane reduce;
    #      valid because NUM_CLASSES == 1) ----
    cls_x = jnp.concatenate(
        [x[b * n_tok_pad:b * n_tok_pad + 1, :] for b in range(batch)], axis=0)
    cls_n = layernorm(cls_x, ng_ref, nb_ref)
    out_ref[...] = (jnp.sum(cls_n * hw_ref[...], axis=-1, keepdims=True)
                    + hb_ref[...])


def pallas_vit(params, patch_slab, attn_bias, tok_bias, batch):
    kernel = functools.partial(
        _vit_kernel, depth=DEPTH, heads=HEADS, batch=batch,
        n_tok_pad=N_TOK_PAD, eps=EPS, scale=HEAD_DIM ** -0.5)
    args = [patch_slab, attn_bias, params["patch_w_eff"], tok_bias]
    for blk in params["blocks"]:
        args += [blk["ln1_g"], blk["ln1_b"], blk["q_w"], blk["k_w"], blk["v_w"],
                 blk["proj_w_h"], blk["proj_b"], blk["ln2_g"], blk["ln2_b"],
                 blk["fc1_w"], blk["fc1_b"], blk["fc2_w"], blk["fc2_b"]]
    args += [params["norm_g"], params["norm_b"],
             params["head_w_row"], params["head_b"]]
    # No grid: every operand is tiny (<0.5 MiB total), so it is copied to VMEM
    # once and the whole forward runs in a single invocation.
    return pl.pallas_call(
        kernel,
        out_shape=jax.ShapeDtypeStruct((batch, NUM_CLASSES), jnp.float32),
    )(*args)


# ------------------------------- parameters --------------------------------

def init_vit_params(key):
    assert NUM_CLASSES == 1  # head is implemented as a VPU row-reduce
    keys = jax.random.split(key, 4 + DEPTH)

    def nrm(k, shape, s=0.02):
        return (s * jax.random.normal(k, shape)).astype(jnp.float32)

    # "torch-layout" parameters (what the reference module would hold).
    patch_w = nrm(keys[0], (PATCH_FEATS, DIM))   # conv weight, rows in (c,i,j)
    patch_b = jnp.zeros((DIM,), jnp.float32)
    cls = nrm(keys[1], (DIM,))
    pos = nrm(keys[2], (N_TOK, DIM))
    head_w = nrm(keys[3], (DIM, NUM_CLASSES))

    # Normalize(0.5, 0.5) fold: (2x - 1) @ W + b == x @ (2W) + (b - colsum(W)).
    patch_w_eff = 2.0 * patch_w
    patch_b_eff = patch_b - jnp.sum(patch_w, axis=0)

    # cls token, positional embedding and (folded) conv bias combined into one
    # per-row additive bias over the padded token slab:
    #   row 0 -> cls + pos[0];  rows 1..4 -> patch_b_eff + pos[1:];  pads -> 0.
    tok_bias = jnp.zeros((N_TOK_PAD, DIM), jnp.float32)
    tok_bias = tok_bias.at[0].set(cls + pos[0])
    tok_bias = tok_bias.at[1:N_TOK].set(patch_b_eff + pos[1:])

    params = {
        "patch_w_eff": patch_w_eff,
        "tok_bias": tok_bias,
        "norm_g": jnp.ones((1, DIM), jnp.float32),
        "norm_b": jnp.zeros((1, DIM), jnp.float32),
        "head_w_row": head_w.reshape(1, DIM),
        "head_b": jnp.zeros((1, NUM_CLASSES), jnp.float32),
        "blocks": [],
    }

    def split_heads(w):                       # [D, D] -> [H, D, dh]
        return jnp.transpose(w.reshape(DIM, HEADS, HEAD_DIM), (1, 0, 2))

    for i in range(DEPTH):
        bk = jax.random.split(keys[4 + i], 4)
        qkv_w = nrm(bk[0], (DIM, 3 * DIM))
        proj_w = nrm(bk[1], (DIM, DIM))
        # qkv bias is zero at this init and omitted; fold it into per-head
        # q/k/v biases if loading pretrained weights.
        params["blocks"].append({
            "ln1_g": jnp.ones((1, DIM), jnp.float32),
            "ln1_b": jnp.zeros((1, DIM), jnp.float32),
            "q_w": split_heads(qkv_w[:, 0 * DIM:1 * DIM]),
            "k_w": split_heads(qkv_w[:, 1 * DIM:2 * DIM]),
            "v_w": split_heads(qkv_w[:, 2 * DIM:3 * DIM]),
            "proj_w_h": proj_w.reshape(HEADS, HEAD_DIM, DIM),
            "proj_b": jnp.zeros((1, DIM), jnp.float32),
            "ln2_g": jnp.ones((1, DIM), jnp.float32),
            "ln2_b": jnp.zeros((1, DIM), jnp.float32),
            "fc1_w": nrm(bk[2], (DIM, HIDDEN)),
            "fc1_b": jnp.zeros((1, HIDDEN), jnp.float32),
            "fc2_w": nrm(bk[3], (HIDDEN, DIM)),
            "fc2_b": jnp.zeros((1, DIM), jnp.float32),
        })
    return params


# --------------------------------- forward ---------------------------------

def vit_forward(params, x):
    B, C, _, _ = x.shape
    N = B * N_TOK_PAD

    # --- transform ---
    # TODO(synk): bicubic resize kept in plain JAX (jax.image.resize); no clean
    # Pallas equivalent for the separable bicubic filter.  Normalize(0.5, 0.5)
    # is folded into patch_w_eff / tok_bias.
    x = jax.image.resize(x, (B, C, IMG, IMG), method="bicubic")

    # --- patchify (XLA) ---
    # TODO(synk): the (C,H,W) -> per-patch-row layout change is not expressible
    # as a pure reshape for nh>1, so this transpose stays in XLA; it touches
    # only B*3*32*32*4 ≈ 24 KiB and fuses with the resize pipeline.
    nh = IMG // PATCH
    patches = x.reshape(B, C, nh, PATCH, nh, PATCH)
    patches = patches.transpose(0, 2, 4, 1, 3, 5).reshape(B, N_PATCHES,
                                                          PATCH_FEATS)
    # Zero rows for the cls slot (row 0) and padding slots (rows 5..7) so the
    # kernel can do a single batch-flat, sublane-aligned patch-embed matmul.
    patch_slab = jnp.pad(patches, ((0, 0), (1, N_TOK_PAD - N_TOK), (0, 0)))
    patch_slab = patch_slab.reshape(N, PATCH_FEATS)

    # Additive attention bias: block-diagonal over batch, -inf on padded keys.
    # Depends only on static shapes -> constant-folded by XLA under jit.
    tok_idx = jnp.arange(N) % N_TOK_PAD
    bat_idx = jnp.arange(N) // N_TOK_PAD
    allowed = (bat_idx[:, None] == bat_idx[None, :]) & (tok_idx[None, :] < N_TOK)
    attn_bias = jnp.where(allowed, 0.0, NEG_INF).astype(jnp.float32)

    tok_bias = jnp.tile(params["tok_bias"], (B, 1))            # [N, DIM]

    return pallas_vit(params, patch_slab, attn_bias, tok_bias, B)  # [B, 1]


# ----------------------------------- main -----------------------------------

if __name__ == "__main__":
    key = jax.random.PRNGKey(0)
    pkey, xkey = jax.random.split(key)
    params = init_vit_params(pkey)
    x = jax.random.uniform(xkey, (2, 3, 16, 16), dtype=jnp.float32)

    out = jax.jit(vit_forward)(params, x)
    out = jax.block_until_ready(out)
    assert out.shape == (2, NUM_CLASSES), out.shape
    print("KERNEL_OK")
</pallas_src>

<mosaic_0001>
module attributes {stable_mosaic.version = 11 : i64} {
  func.func @_vit_kernel(%arg0: memref<16x768xf32, #tpu.memory_space<vmem>>, %arg1: memref<16x16xf32, #tpu.memory_space<vmem>>, %arg2: memref<768x64xf32, #tpu.memory_space<vmem>>, %arg3: memref<16x64xf32, #tpu.memory_space<vmem>>, %arg4: memref<1x64xf32, #tpu.memory_space<vmem>>, %arg5: memref<1x64xf32, #tpu.memory_space<vmem>>, %arg6: memref<4x64x16xf32, #tpu.memory_space<vmem>>, %arg7: memref<4x64x16xf32, #tpu.memory_space<vmem>>, %arg8: memref<4x64x16xf32, #tpu.memory_space<vmem>>, %arg9: memref<4x16x64xf32, #tpu.memory_space<vmem>>, %arg10: memref<1x64xf32, #tpu.memory_space<vmem>>, %arg11: memref<1x64xf32, #tpu.memory_space<vmem>>, %arg12: memref<1x64xf32, #tpu.memory_space<vmem>>, %arg13: memref<64x256xf32, #tpu.memory_space<vmem>>, %arg14: memref<1x256xf32, #tpu.memory_space<vmem>>, %arg15: memref<256x64xf32, #tpu.memory_space<vmem>>, %arg16: memref<1x64xf32, #tpu.memory_space<vmem>>, %arg17: memref<1x64xf32, #tpu.memory_space<vmem>>, %arg18: memref<1x64xf32, #tpu.memory_space<vmem>>, %arg19: memref<4x64x16xf32, #tpu.memory_space<vmem>>, %arg20: memref<4x64x16xf32, #tpu.memory_space<vmem>>, %arg21: memref<4x64x16xf32, #tpu.memory_space<vmem>>, %arg22: memref<4x16x64xf32, #tpu.memory_space<vmem>>, %arg23: memref<1x64xf32, #tpu.memory_space<vmem>>, %arg24: memref<1x64xf32, #tpu.memory_space<vmem>>, %arg25: memref<1x64xf32, #tpu.memory_space<vmem>>, %arg26: memref<64x256xf32, #tpu.memory_space<vmem>>, %arg27: memref<1x256xf32, #tpu.memory_space<vmem>>, %arg28: memref<256x64xf32, #tpu.memory_space<vmem>>, %arg29: memref<1x64xf32, #tpu.memory_space<vmem>>, %arg30: memref<1x64xf32, #tpu.memory_space<vmem>>, %arg31: memref<1x64xf32, #tpu.memory_space<vmem>>, %arg32: memref<1x64xf32, #tpu.memory_space<vmem>>, %arg33: memref<1x1xf32, #tpu.memory_space<vmem>>, %arg34: memref<2x1xf32, #tpu.memory_space<vmem>>) attributes {dimension_semantics = [], scalar_prefetch = 0 : i64, scratch_operands = 0 : i64, tpu.core_type = #tpu.core_type<tc>} {
    %c0 = arith.constant 0 : index
    %c0_0 = arith.constant 0 : index
    %0 = vector.load %arg0[%c0, %c0_0] : memref<16x768xf32, #tpu.memory_space<vmem>>, vector<16x768xf32>
    %c0_1 = arith.constant 0 : index
    %c0_2 = arith.constant 0 : index
    %1 = vector.load %arg2[%c0_1, %c0_2] : memref<768x64xf32, #tpu.memory_space<vmem>>, vector<768x64xf32>
    %cst = arith.constant dense<0.000000e+00> : vector<16x64xf32>
    %2 = tpu.matmul %0, %1, %cst {dimension_numbers = #tpu.dot_dimension_numbers<[1], [0], [0], [1], [0, 0, 1, 1], [], []>} : vector<16x768xf32>, vector<768x64xf32>, vector<16x64xf32> -> vector<16x64xf32>
    %c0_3 = arith.constant 0 : index
    %c0_4 = arith.constant 0 : index
    %3 = vector.load %arg3[%c0_3, %c0_4] : memref<16x64xf32, #tpu.memory_space<vmem>>, vector<16x64xf32>
    %4 = arith.addf %2, %3 : vector<16x64xf32>
    %cst_5 = arith.constant dense<0.000000e+00> : vector<16xf32>
    %5 = vector.multi_reduction <add>, %4, %cst_5 [1] : vector<16x64xf32> to vector<16xf32>
    %6 = vector.shape_cast %5 : vector<16xf32> to vector<16x1xf32>
    %cst_6 = arith.constant 6.400000e+01 : f32
    %7 = vector.broadcast %cst_6 : f32 to vector<16x1xf32>
    %8 = arith.divf %6, %7 : vector<16x1xf32>
    %9 = vector.broadcast %8 : vector<16x1xf32> to vector<16x64xf32>
    %10 = arith.subf %4, %9 : vector<16x64xf32>
    %11 = arith.mulf %10, %10 : vector<16x64xf32>
    %cst_7 = arith.constant dense<0.000000e+00> : vector<16xf32>
    %12 = vector.multi_reduction <add>, %11, %cst_7 [1] : vector<16x64xf32> to vector<16xf32>
    %13 = vector.shape_cast %12 : vector<16xf32> to vector<16x1xf32>
    %cst_8 = arith.constant 6.400000e+01 : f32
    %14 = vector.broadcast %cst_8 : f32 to vector<16x1xf32>
    %15 = arith.divf %13, %14 : vector<16x1xf32>
    %16 = vector.broadcast %8 : vector<16x1xf32> to vector<16x64xf32>
    %17 = arith.subf %4, %16 : vector<16x64xf32>
    %cst_9 = arith.constant 9.99999997E-7 : f32
    %18 = vector.broadcast %cst_9 : f32 to vector<16x1xf32>
    %19 = arith.addf %15, %18 : vector<16x1xf32>
    %20 = math.rsqrt %19 : vector<16x1xf32>
    %21 = vector.broadcast %20 : vector<16x1xf32> to vector<16x64xf32>
    %22 = arith.mulf %17, %21 : vector<16x64xf32>
    %c0_10 = arith.constant 0 : index
    %c0_11 = arith.constant 0 : index
    %23 = vector.load %arg4[%c0_10, %c0_11] : memref<1x64xf32, #tpu.memory_space<vmem>>, vector<1x64xf32>
    %24 = vector.broadcast %23 : vector<1x64xf32> to vector<16x64xf32>
    %25 = arith.mulf %22, %24 : vector<16x64xf32>
    %c0_12 = arith.constant 0 : index
    %c0_13 = arith.constant 0 : index
    %26 = vector.load %arg5[%c0_12, %c0_13] : memref<1x64xf32, #tpu.memory_space<vmem>>, vector<1x64xf32>
    %27 = vector.broadcast %26 : vector<1x64xf32> to vector<16x64xf32>
    %28 = arith.addf %25, %27 : vector<16x64xf32>
    %cst_14 = arith.constant 0.000000e+00 : f32
    %29 = vector.broadcast %cst_14 : f32 to vector<16x64xf32>
    %c0_15 = arith.constant 0 : index
    %c0_16 = arith.constant 0 : index
    %c0_17 = arith.constant 0 : index
    %30 = vector.load %arg6[%c0_15, %c0_16, %c0_17] : memref<4x64x16xf32, #tpu.memory_space<vmem>>, vector<1x64x16xf32>
    %31 = vector.shape_cast %30 : vector<1x64x16xf32> to vector<64x16xf32>
    %cst_18 = arith.constant dense<0.000000e+00> : vector<16x16xf32>
    %32 = tpu.matmul %28, %31, %cst_18 {dimension_numbers = #tpu.dot_dimension_numbers<[1], [0], [0], [1], [0, 0, 1, 1], [], []>} : vector<16x64xf32>, vector<64x16xf32>, vector<16x16xf32> -> vector<16x16xf32>
    %c0_19 = arith.constant 0 : index
    %c0_20 = arith.constant 0 : index
    %c0_21 = arith.constant 0 : index
    %33 = vector.load %arg7[%c0_19, %c0_20, %c0_21] : memref<4x64x16xf32, #tpu.memory_space<vmem>>, vector<1x64x16xf32>
    %34 = vector.shape_cast %33 : vector<1x64x16xf32> to vector<64x16xf32>
    %cst_22 = arith.constant dense<0.000000e+00> : vector<16x16xf32>
    %35 = tpu.matmul %28, %34, %cst_22 {dimension_numbers = #tpu.dot_dimension_numbers<[1], [0], [0], [1], [0, 0, 1, 1], [], []>} : vector<16x64xf32>, vector<64x16xf32>, vector<16x16xf32> -> vector<16x16xf32>
    %c0_23 = arith.constant 0 : index
    %c0_24 = arith.constant 0 : index
    %c0_25 = arith.constant 0 : index
    %36 = vector.load %arg8[%c0_23, %c0_24, %c0_25] : memref<4x64x16xf32, #tpu.memory_space<vmem>>, vector<1x64x16xf32>
    %37 = vector.shape_cast %36 : vector<1x64x16xf32> to vector<64x16xf32>
    %cst_26 = arith.constant dense<0.000000e+00> : vector<16x16xf32>
    %38 = tpu.matmul %28, %37, %cst_26 {dimension_numbers = #tpu.dot_dimension_numbers<[1], [0], [0], [1], [0, 0, 1, 1], [], []>} : vector<16x64xf32>, vector<64x16xf32>, vector<16x16xf32> -> vector<16x16xf32>
    %cst_27 = arith.constant dense<0.000000e+00> : vector<16x16xf32>
    %39 = tpu.matmul %32, %35, %cst_27 {dimension_numbers = #tpu.dot_dimension_numbers<[1], [1], [0], [0], [0, 0, 1, 0], [], []>} : vector<16x16xf32>, vector<16x16xf32>, vector<16x16xf32> -> vector<16x16xf32>
    %cst_28 = arith.constant 2.500000e-01 : f32
    %40 = vector.broadcast %cst_28 : f32 to vector<16x16xf32>
    %41 = arith.mulf %39, %40 : vector<16x16xf32>
    %c0_29 = arith.constant 0 : index
    %c0_30 = arith.constant 0 : index
    %42 = vector.load %arg1[%c0_29, %c0_30] : memref<16x16xf32, #tpu.memory_space<vmem>>, vector<16x16xf32>
    %43 = arith.addf %41, %42 : vector<16x16xf32>
    %cst_31 = arith.constant dense<0xFF800000> : vector<16xf32>
    %44 = vector.multi_reduction <maximumf>, %43, %cst_31 [1] : vector<16x16xf32> to vector<16xf32>
    %45 = vector.shape_cast %44 : vector<16xf32> to vector<16x1xf32>
    %46 = vector.broadcast %45 : vector<16x1xf32> to vector<16x16xf32>
    %47 = arith.subf %43, %46 : vector<16x16xf32>
    %48 = math.exp %47 : vector<16x16xf32>
    %cst_32 = arith.constant dense<0.000000e+00> : vector<16xf32>
    %49 = vector.multi_reduction <add>, %48, %cst_32 [1] : vector<16x16xf32> to vector<16xf32>
    %50 = vector.shape_cast %49 : vector<16xf32> to vector<16x1xf32>
    %51 = tpu.reciprocal %50 {approx = true} : vector<16x1xf32> -> vector<16x1xf32>
    %52 = vector.broadcast %51 : vector<16x1xf32> to vector<16x16xf32>
    %53 = arith.mulf %48, %52 : vector<16x16xf32>
    %cst_33 = arith.constant dense<0.000000e+00> : vector<16x16xf32>
    %54 = tpu.matmul %53, %38, %cst_33 {dimension_numbers = #tpu.dot_dimension_numbers<[1], [0], [0], [1], [0, 0, 1, 1], [], []>} : vector<16x16xf32>, vector<16x16xf32>, vector<16x16xf32> -> vector<16x16xf32>
    %c0_34 = arith.constant 0 : index
    %c0_35 = arith.constant 0 : index
    %c0_36 = arith.constant 0 : index
    %55 = vector.load %arg9[%c0_34, %c0_35, %c0_36] : memref<4x16x64xf32, #tpu.memory_space<vmem>>, vector<1x16x64xf32>
    %56 = vector.shape_cast %55 : vector<1x16x64xf32> to vector<16x64xf32>
    %cst_37 = arith.constant dense<0.000000e+00> : vector<16x64xf32>
    %57 = tpu.matmul %54, %56, %cst_37 {dimension_numbers = #tpu.dot_dimension_numbers<[1], [0], [0], [1], [0, 0, 1, 1], [], []>} : vector<16x16xf32>, vector<16x64xf32>, vector<16x64xf32> -> vector<16x64xf32>
    %58 = arith.addf %29, %57 : vector<16x64xf32>
    %c1 = arith.constant 1 : index
    %c0_38 = arith.constant 0 : index
    %c0_39 = arith.constant 0 : index
    %59 = vector.load %arg6[%c1, %c0_38, %c0_39] : memref<4x64x16xf32, #tpu.memory_space<vmem>>, vector<1x64x16xf32>
    %60 = vector.shape_cast %59 : vector<1x64x16xf32> to vector<64x16xf32>
    %cst_40 = arith.constant dense<0.000000e+00> : vector<16x16xf32>
    %61 = tpu.matmul %28, %60, %cst_40 {dimension_numbers = #tpu.dot_dimension_numbers<[1], [0], [0], [1], [0, 0, 1, 1], [], []>} : vector<16x64xf32>, vector<64x16xf32>, vector<16x16xf32> -> vector<16x16xf32>
    %c1_41 = arith.constant 1 : index
    %c0_42 = arith.constant 0 : index
    %c0_43 = arith.constant 0 : index
    %62 = vector.load %arg7[%c1_41, %c0_42, %c0_43] : memref<4x64x16xf32, #tpu.memory_space<vmem>>, vector<1x64x16xf32>
    %63 = vector.shape_cast %62 : vector<1x64x16xf32> to vector<64x16xf32>
    %cst_44 = arith.constant dense<0.000000e+00> : vector<16x16xf32>
    %64 = tpu.matmul %28, %63, %cst_44 {dimension_numbers = #tpu.dot_dimension_numbers<[1], [0], [0], [1], [0, 0, 1, 1], [], []>} : vector<16x64xf32>, vector<64x16xf32>, vector<16x16xf32> -> vector<16x16xf32>
    %c1_45 = arith.constant 1 : index
    %c0_46 = arith.constant 0 : index
    %c0_47 = arith.constant 0 : index
    %65 = vector.load %arg8[%c1_45, %c0_46, %c0_47] : memref<4x64x16xf32, #tpu.memory_space<vmem>>, vector<1x64x16xf32>
    %66 = vector.shape_cast %65 : vector<1x64x16xf32> to vector<64x16xf32>
    %cst_48 = arith.constant dense<0.000000e+00> : vector<16x16xf32>
    %67 = tpu.matmul %28, %66, %cst_48 {dimension_numbers = #tpu.dot_dimension_numbers<[1], [0], [0], [1], [0, 0, 1, 1], [], []>} : vector<16x64xf32>, vector<64x16xf32>, vector<16x16xf32> -> vector<16x16xf32>
    %cst_49 = arith.constant dense<0.000000e+00> : vector<16x16xf32>
    %68 = tpu.matmul %61, %64, %cst_49 {dimension_numbers = #tpu.dot_dimension_numbers<[1], [1], [0], [0], [0, 0, 1, 0], [], []>} : vector<16x16xf32>, vector<16x16xf32>, vector<16x16xf32> -> vector<16x16xf32>
    %cst_50 = arith.constant 2.500000e-01 : f32
    %69 = vector.broadcast %cst_50 : f32 to vector<16x16xf32>
    %70 = arith.mulf %68, %69 : vector<16x16xf32>
    %c0_51 = arith.constant 0 : index
    %c0_52 = arith.constant 0 : index
    %71 = vector.load %arg1[%c0_51, %c0_52] : memref<16x16xf32, #tpu.memory_space<vmem>>, vector<16x16xf32>
    %72 = arith.addf %70, %71 : vector<16x16xf32>
    %cst_53 = arith.constant dense<0xFF800000> : vector<16xf32>
    %73 = vector.multi_reduction <maximumf>, %72, %cst_53 [1] : vector<16x16xf32> to vector<16xf32>
    %74 = vector.shape_cast %73 : vector<16xf32> to vector<16x1xf32>
    %75 = vector.broadcast %74 : vector<16x1xf32> to vector<16x16xf32>
    %76 = arith.subf %72, %75 : vector<16x16xf32>
    %77 = math.exp %76 : vector<16x16xf32>
    %cst_54 = arith.constant dense<0.000000e+00> : vector<16xf32>
    %78 = vector.multi_reduction <add>, %77, %cst_54 [1] : vector<16x16xf32> to vector<16xf32>
    %79 = vector.shape_cast %78 : vector<16xf32> to vector<16x1xf32>
    %80 = tpu.reciprocal %79 {approx = true} : vector<16x1xf32> -> vector<16x1xf32>
    %81 = vector.broadcast %80 : vector<16x1xf32> to vector<16x16xf32>
    %82 = arith.mulf %77, %81 : vector<16x16xf32>
    %cst_55 = arith.constant dense<0.000000e+00> : vector<16x16xf32>
    %83 = tpu.matmul %82, %67, %cst_55 {dimension_numbers = #tpu.dot_dimension_numbers<[1], [0], [0], [1], [0, 0, 1, 1], [], []>} : vector<16x16xf32>, vector<16x16xf32>, vector<16x16xf32> -> vector<16x16xf32>
    %c1_56 = arith.constant 1 : index
    %c0_57 = arith.constant 0 : index
    %c0_58 = arith.constant 0 : index
    %84 = vector.load %arg9[%c1_56, %c0_57, %c0_58] : memref<4x16x64xf32, #tpu.memory_space<vmem>>, vector<1x16x64xf32>
    %85 = vector.shape_cast %84 : vector<1x16x64xf32> to vector<16x64xf32>
    %cst_59 = arith.constant dense<0.000000e+00> : vector<16x64xf32>
    %86 = tpu.matmul %83, %85, %cst_59 {dimension_numbers = #tpu.dot_dimension_numbers<[1], [0], [0], [1], [0, 0, 1, 1], [], []>} : vector<16x16xf32>, vector<16x64xf32>, vector<16x64xf32> -> vector<16x64xf32>
    %87 = arith.addf %58, %86 : vector<16x64xf32>
    %c2 = arith.constant 2 : index
    %c0_60 = arith.constant 0 : index
    %c0_61 = arith.constant 0 : index
    %88 = vector.load %arg6[%c2, %c0_60, %c0_61] : memref<4x64x16xf32, #tpu.memory_space<vmem>>, vector<1x64x16xf32>
    %89 = vector.shape_cast %88 : vector<1x64x16xf32> to vector<64x16xf32>
    %cst_62 = arith.constant dense<0.000000e+00> : vector<16x16xf32>
    %90 = tpu.matmul %28, %89, %cst_62 {dimension_numbers = #tpu.dot_dimension_numbers<[1], [0], [0], [1], [0, 0, 1, 1], [], []>} : vector<16x64xf32>, vector<64x16xf32>, vector<16x16xf32> -> vector<16x16xf32>
    %c2_63 = arith.constant 2 : index
    %c0_64 = arith.constant 0 : index
    %c0_65 = arith.constant 0 : index
    %91 = vector.load %arg7[%c2_63, %c0_64, %c0_65] : memref<4x64x16xf32, #tpu.memory_space<vmem>>, vector<1x64x16xf32>
    %92 = vector.shape_cast %91 : vector<1x64x16xf32> to vector<64x16xf32>
    %cst_66 = arith.constant dense<0.000000e+00> : vector<16x16xf32>
    %93 = tpu.matmul %28, %92, %cst_66 {dimension_numbers = #tpu.dot_dimension_numbers<[1], [0], [0], [1], [0, 0, 1, 1], [], []>} : vector<16x64xf32>, vector<64x16xf32>, vector<16x16xf32> -> vector<16x16xf32>
    %c2_67 = arith.constant 2 : index
    %c0_68 = arith.constant 0 : index
    %c0_69 = arith.constant 0 : index
    %94 = vector.load %arg8[%c2_67, %c0_68, %c0_69] : memref<4x64x16xf32, #tpu.memory_space<vmem>>, vector<1x64x16xf32>
    %95 = vector.shape_cast %94 : vector<1x64x16xf32> to vector<64x16xf32>
    %cst_70 = arith.constant dense<0.000000e+00> : vector<16x16xf32>
    %96 = tpu.matmul %28, %95, %cst_70 {dimension_numbers = #tpu.dot_dimension_numbers<[1], [0], [0], [1], [0, 0, 1, 1], [], []>} : vector<16x64xf32>, vector<64x16xf32>, vector<16x16xf32> -> vector<16x16xf32>
    %cst_71 = arith.constant dense<0.000000e+00> : vector<16x16xf32>
    %97 = tpu.matmul %90, %93, %cst_71 {dimension_numbers = #tpu.dot_dimension_numbers<[1], [1], [0], [0], [0, 0, 1, 0], [], []>} : vector<16x16xf32>, vector<16x16xf32>, vector<16x16xf32> -> vector<16x16xf32>
    %cst_72 = arith.constant 2.500000e-01 : f32
    %98 = vector.broadcast %cst_72 : f32 to vector<16x16xf32>
    %99 = arith.mulf %97, %98 : vector<16x16xf32>
    %c0_73 = arith.constant 0 : index
    %c0_74 = arith.constant 0 : index
    %100 = vector.load %arg1[%c0_73, %c0_74] : memref<16x16xf32, #tpu.memory_space<vmem>>, vector<16x16xf32>
    %101 = arith.addf %99, %100 : vector<16x16xf32>
    %cst_75 = arith.constant dense<0xFF800000> : vector<16xf32>
    %102 = vector.multi_reduction <maximumf>, %101, %cst_75 [1] : vector<16x16xf32> to vector<16xf32>
    %103 = vector.shape_cast %102 : vector<16xf32> to vector<16x1xf32>
    %104 = vector.broadcast %103 : vector<16x1xf32> to vector<16x16xf32>
    %105 = arith.subf %101, %104 : vector<16x16xf32>
    %106 = math.exp %105 : vector<16x16xf32>
    %cst_76 = arith.constant dense<0.000000e+00> : vector<16xf32>
    %107 = vector.multi_reduction <add>, %106, %cst_76 [1] : vector<16x16xf32> to vector<16xf32>
    %108 = vector.shape_cast %107 : vector<16xf32> to vector<16x1xf32>
    %109 = tpu.reciprocal %108 {approx = true} : vector<16x1xf32> -> vector<16x1xf32>
    %110 = vector.broadcast %109 : vector<16x1xf32> to vector<16x16xf32>
    %111 = arith.mulf %106, %110 : vector<16x16xf32>
    %cst_77 = arith.constant dense<0.000000e+00> : vector<16x16xf32>
    %112 = tpu.matmul %111, %96, %cst_77 {dimension_numbers = #tpu.dot_dimension_numbers<[1], [0], [0], [1], [0, 0, 1, 1], [], []>} : vector<16x16xf32>, vector<16x16xf32>, vector<16x16xf32> -> vector<16x16xf32>
    %c2_78 = arith.constant 2 : index
    %c0_79 = arith.constant 0 : index
    %c0_80 = arith.constant 0 : index
    %113 = vector.load %arg9[%c2_78, %c0_79, %c0_80] : memref<4x16x64xf32, #tpu.memory_space<vmem>>, vector<1x16x64xf32>
    %114 = vector.shape_cast %113 : vector<1x16x64xf32> to vector<16x64xf32>
    %cst_81 = arith.constant dense<0.000000e+00> : vector<16x64xf32>
    %115 = tpu.matmul %112, %114, %cst_81 {dimension_numbers = #tpu.dot_dimension_numbers<[1], [0], [0], [1], [0, 0, 1, 1], [], []>} : vector<16x16xf32>, vector<16x64xf32>, vector<16x64xf32> -> vector<16x64xf32>
    %116 = arith.addf %87, %115 : vector<16x64xf32>
    %c3 = arith.constant 3 : index
    %c0_82 = arith.constant 0 : index
    %c0_83 = arith.constant 0 : index
    %117 = vector.load %arg6[%c3, %c0_82, %c0_83] : memref<4x64x16xf32, #tpu.memory_space<vmem>>, vector<1x64x16xf32>
    %118 = vector.shape_cast %117 : vector<1x64x16xf32> to vector<64x16xf32>
    %cst_84 = arith.constant dense<0.000000e+00> : vector<16x16xf32>
    %119 = tpu.matmul %28, %118, %cst_84 {dimension_numbers = #tpu.dot_dimension_numbers<[1], [0], [0], [1], [0, 0, 1, 1], [], []>} : vector<16x64xf32>, vector<64x16xf32>, vector<16x16xf32> -> vector<16x16xf32>
    %c3_85 = arith.constant 3 : index
    %c0_86 = arith.constant 0 : index
    %c0_87 = arith.constant 0 : index
    %120 = vector.load %arg7[%c3_85, %c0_86, %c0_87] : memref<4x64x16xf32, #tpu.memory_space<vmem>>, vector<1x64x16xf32>
    %121 = vector.shape_cast %120 : vector<1x64x16xf32> to vector<64x16xf32>
    %cst_88 = arith.constant dense<0.000000e+00> : vector<16x16xf32>
    %122 = tpu.matmul %28, %121, %cst_88 {dimension_numbers = #tpu.dot_dimension_numbers<[1], [0], [0], [1], [0, 0, 1, 1], [], []>} : vector<16x64xf32>, vector<64x16xf32>, vector<16x16xf32> -> vector<16x16xf32>
    %c3_89 = arith.constant 3 : index
    %c0_90 = arith.constant 0 : index
    %c0_91 = arith.constant 0 : index
    %123 = vector.load %arg8[%c3_89, %c0_90, %c0_91] : memref<4x64x16xf32, #tpu.memory_space<vmem>>, vector<1x64x16xf32>
    %124 = vector.shape_cast %123 : vector<1x64x16xf32> to vector<64x16xf32>
    %cst_92 = arith.constant dense<0.000000e+00> : vector<16x16xf32>
    %125 = tpu.matmul %28, %124, %cst_92 {dimension_numbers = #tpu.dot_dimension_numbers<[1], [0], [0], [1], [0, 0, 1, 1], [], []>} : vector<16x64xf32>, vector<64x16xf32>, vector<16x16xf32> -> vector<16x16xf32>
    %cst_93 = arith.constant dense<0.000000e+00> : vector<16x16xf32>
    %126 = tpu.matmul %119, %122, %cst_93 {dimension_numbers = #tpu.dot_dimension_numbers<[1], [1], [0], [0], [0, 0, 1, 0], [], []>} : vector<16x16xf32>, vector<16x16xf32>, vector<16x16xf32> -> vector<16x16xf32>
    %cst_94 = arith.constant 2.500000e-01 : f32
    %127 = vector.broadcast %cst_94 : f32 to vector<16x16xf32>
    %128 = arith.mulf %126, %127 : vector<16x16xf32>
    %c0_95 = arith.constant 0 : index
    %c0_96 = arith.constant 0 : index
    %129 = vector.load %arg1[%c0_95, %c0_96] : memref<16x16xf32, #tpu.memory_space<vmem>>, vector<16x16xf32>
    %130 = arith.addf %128, %129 : vector<16x16xf32>
    %cst_97 = arith.constant dense<0xFF800000> : vector<16xf32>
    %131 = vector.multi_reduction <maximumf>, %130, %cst_97 [1] : vector<16x16xf32> to vector<16xf32>
    %132 = vector.shape_cast %131 : vector<16xf32> to vector<16x1xf32>
    %133 = vector.broadcast %132 : vector<16x1xf32> to vector<16x16xf32>
    %134 = arith.subf %130, %133 : vector<16x16xf32>
    %135 = math.exp %134 : vector<16x16xf32>
    %cst_98 = arith.constant dense<0.000000e+00> : vector<16xf32>
    %136 = vector.multi_reduction <add>, %135, %cst_98 [1] : vector<16x16xf32> to vector<16xf32>
    %137 = vector.shape_cast %136 : vector<16xf32> to vector<16x1xf32>
    %138 = tpu.reciprocal %137 {approx = true} : vector<16x1xf32> -> vector<16x1xf32>
    %139 = vector.broadcast %138 : vector<16x1xf32> to vector<16x16xf32>
    %140 = arith.mulf %135, %139 : vector<16x16xf32>
    %cst_99 = arith.constant dense<0.000000e+00> : vector<16x16xf32>
    %141 = tpu.matmul %140, %125, %cst_99 {dimension_numbers = #tpu.dot_dimension_numbers<[1], [0], [0], [1], [0, 0, 1, 1], [], []>} : vector<16x16xf32>, vector<16x16xf32>, vector<16x16xf32> -> vector<16x16xf32>
    %c3_100 = arith.constant 3 : index
    %c0_101 = arith.constant 0 : index
    %c0_102 = arith.constant 0 : index
    %142 = vector.load %arg9[%c3_100, %c0_101, %c0_102] : memref<4x16x64xf32, #tpu.memory_space<vmem>>, vector<1x16x64xf32>
    %143 = vector.shape_cast %142 : vector<1x16x64xf32> to vector<16x64xf32>
    %cst_103 = arith.constant dense<0.000000e+00> : vector<16x64xf32>
    %144 = tpu.matmul %141, %143, %cst_103 {dimension_numbers = #tpu.dot_dimension_numbers<[1], [0], [0], [1], [0, 0, 1, 1], [], []>} : vector<16x16xf32>, vector<16x64xf32>, vector<16x64xf32> -> vector<16x64xf32>
    %145 = arith.addf %116, %144 : vector<16x64xf32>
    %146 = arith.addf %4, %145 : vector<16x64xf32>
    %c0_104 = arith.constant 0 : index
    %c0_105 = arith.constant 0 : index
    %147 = vector.load %arg10[%c0_104, %c0_105] : memref<1x64xf32, #tpu.memory_space<vmem>>, vector<1x64xf32>
    %148 = vector.broadcast %147 : vector<1x64xf32> to vector<16x64xf32>
    %149 = arith.addf %146, %148 : vector<16x64xf32>
    %cst_106 = arith.constant dense<0.000000e+00> : vector<16xf32>
    %150 = vector.multi_reduction <add>, %149, %cst_106 [1] : vector<16x64xf32> to vector<16xf32>
    %151 = vector.shape_cast %150 : vector<16xf32> to vector<16x1xf32>
    %cst_107 = arith.constant 6.400000e+01 : f32
    %152 = vector.broadcast %cst_107 : f32 to vector<16x1xf32>
    %153 = arith.divf %151, %152 : vector<16x1xf32>
    %154 = vector.broadcast %153 : vector<16x1xf32> to vector<16x64xf32>
    %155 = arith.subf %149, %154 : vector<16x64xf32>
    %156 = arith.mulf %155, %155 : vector<16x64xf32>
    %cst_108 = arith.constant dense<0.000000e+00> : vector<16xf32>
    %157 = vector.multi_reduction <add>, %156, %cst_108 [1] : vector<16x64xf32> to vector<16xf32>
    %158 = vector.shape_cast %157 : vector<16xf32> to vector<16x1xf32>
    %cst_109 = arith.constant 6.400000e+01 : f32
    %159 = vector.broadcast %cst_109 : f32 to vector<16x1xf32>
    %160 = arith.divf %158, %159 : vector<16x1xf32>
    %161 = vector.broadcast %153 : vector<16x1xf32> to vector<16x64xf32>
    %162 = arith.subf %149, %161 : vector<16x64xf32>
    %cst_110 = arith.constant 9.99999997E-7 : f32
    %163 = vector.broadcast %cst_110 : f32 to vector<16x1xf32>
    %164 = arith.addf %160, %163 : vector<16x1xf32>
    %165 = math.rsqrt %164 : vector<16x1xf32>
    %166 = vector.broadcast %165 : vector<16x1xf32> to vector<16x64xf32>
    %167 = arith.mulf %162, %166 : vector<16x64xf32>
    %c0_111 = arith.constant 0 : index
    %c0_112 = arith.constant 0 : index
    %168 = vector.load %arg11[%c0_111, %c0_112] : memref<1x64xf32, #tpu.memory_space<vmem>>, vector<1x64xf32>
    %169 = vector.broadcast %168 : vector<1x64xf32> to vector<16x64xf32>
    %170 = arith.mulf %167, %169 : vector<16x64xf32>
    %c0_113 = arith.constant 0 : index
    %c0_114 = arith.constant 0 : index
    %171 = vector.load %arg12[%c0_113, %c0_114] : memref<1x64xf32, #tpu.memory_space<vmem>>, vector<1x64xf32>
    %172 = vector.broadcast %171 : vector<1x64xf32> to vector<16x64xf32>
    %173 = arith.addf %170, %172 : vector<16x64xf32>
    %c0_115 = arith.constant 0 : index
    %c0_116 = arith.constant 0 : index
    %174 = vector.load %arg13[%c0_115, %c0_116] : memref<64x256xf32, #tpu.memory_space<vmem>>, vector<64x256xf32>
    %cst_117 = arith.constant dense<0.000000e+00> : vector<16x256xf32>
    %175 = tpu.matmul %173, %174, %cst_117 {dimension_numbers = #tpu.dot_dimension_numbers<[1], [0], [0], [1], [0, 0, 1, 1], [], []>} : vector<16x64xf32>, vector<64x256xf32>, vector<16x256xf32> -> vector<16x256xf32>
    %c0_118 = arith.constant 0 : index
    %c0_119 = arith.constant 0 : index
    %176 = vector.load %arg14[%c0_118, %c0_119] : memref<1x256xf32, #tpu.memory_space<vmem>>, vector<1x256xf32>
    %177 = vector.broadcast %176 : vector<1x256xf32> to vector<16x256xf32>
    %178 = arith.addf %175, %177 : vector<16x256xf32>
    %179 = arith.mulf %178, %178 : vector<16x256xf32>
    %180 = arith.mulf %178, %179 : vector<16x256xf32>
    %cst_120 = arith.constant 4.471500e-02 : f32
    %181 = vector.broadcast %cst_120 : f32 to vector<16x256xf32>
    %182 = arith.mulf %181, %180 : vector<16x256xf32>
    %183 = arith.addf %178, %182 : vector<16x256xf32>
    %cst_121 = arith.constant 0.797884583 : f32
    %184 = vector.broadcast %cst_121 : f32 to vector<16x256xf32>
    %185 = arith.mulf %184, %183 : vector<16x256xf32>
    %186 = math.tanh %185 : vector<16x256xf32>
    %cst_122 = arith.constant 1.000000e+00 : f32
    %187 = vector.broadcast %cst_122 : f32 to vector<16x256xf32>
    %188 = arith.addf %187, %186 : vector<16x256xf32>
    %cst_123 = arith.constant 5.000000e-01 : f32
    %189 = vector.broadcast %cst_123 : f32 to vector<16x256xf32>
    %190 = arith.mulf %189, %188 : vector<16x256xf32>
    %191 = arith.mulf %178, %190 : vector<16x256xf32>
    %c0_124 = arith.constant 0 : index
    %c0_125 = arith.constant 0 : index
    %192 = vector.load %arg15[%c0_124, %c0_125] : memref<256x64xf32, #tpu.memory_space<vmem>>, vector<256x64xf32>
    %cst_126 = arith.constant dense<0.000000e+00> : vector<16x64xf32>
    %193 = tpu.matmul %191, %192, %cst_126 {dimension_numbers = #tpu.dot_dimension_numbers<[1], [0], [0], [1], [0, 0, 1, 1], [], []>} : vector<16x256xf32>, vector<256x64xf32>, vector<16x64xf32> -> vector<16x64xf32>
    %194 = arith.addf %149, %193 : vector<16x64xf32>
    %c0_127 = arith.constant 0 : index
    %c0_128 = arith.constant 0 : index
    %195 = vector.load %arg16[%c0_127, %c0_128] : memref<1x64xf32, #tpu.memory_space<vmem>>, vector<1x64xf32>
    %196 = vector.broadcast %195 : vector<1x64xf32> to vector<16x64xf32>
    %197 = arith.addf %194, %196 : vector<16x64xf32>
    %cst_129 = arith.constant dense<0.000000e+00> : vector<16xf32>
    %198 = vector.multi_reduction <add>, %197, %cst_129 [1] : vector<16x64xf32> to vector<16xf32>
    %199 = vector.shape_cast %198 : vector<16xf32> to vector<16x1xf32>
    %cst_130 = arith.constant 6.400000e+01 : f32
    %200 = vector.broadcast %cst_130 : f32 to vector<16x1xf32>
    %201 = arith.divf %199, %200 : vector<16x1xf32>
    %202 = vector.broadcast %201 : vector<16x1xf32> to vector<16x64xf32>
    %203 = arith.subf %197, %202 : vector<16x64xf32>
    %204 = arith.mulf %203, %203 : vector<16x64xf32>
    %cst_131 = arith.constant dense<0.000000e+00> : vector<16xf32>
    %205 = vector.multi_reduction <add>, %204, %cst_131 [1] : vector<16x64xf32> to vector<16xf32>
    %206 = vector.shape_cast %205 : vector<16xf32> to vector<16x1xf32>
    %cst_132 = arith.constant 6.400000e+01 : f32
    %207 = vector.broadcast %cst_132 : f32 to vector<16x1xf32>
    %208 = arith.divf %206, %207 : vector<16x1xf32>
    %209 = vector.broadcast %201 : vector<16x1xf32> to vector<16x64xf32>
    %210 = arith.subf %197, %209 : vector<16x64xf32>
    %cst_133 = arith.constant 9.99999997E-7 : f32
    %211 = vector.broadcast %cst_133 : f32 to vector<16x1xf32>
    %212 = arith.addf %208, %211 : vector<16x1xf32>
    %213 = math.rsqrt %212 : vector<16x1xf32>
    %214 = vector.broadcast %213 : vector<16x1xf32> to vector<16x64xf32>
    %215 = arith.mulf %210, %214 : vector<16x64xf32>
    %c0_134 = arith.constant 0 : index
    %c0_135 = arith.constant 0 : index
    %216 = vector.load %arg17[%c0_134, %c0_135] : memref<1x64xf32, #tpu.memory_space<vmem>>, vector<1x64xf32>
    %217 = vector.broadcast %216 : vector<1x64xf32> to vector<16x64xf32>
    %218 = arith.mulf %215, %217 : vector<16x64xf32>
    %c0_136 = arith.constant 0 : index
    %c0_137 = arith.constant 0 : index
    %219 = vector.load %arg18[%c0_136, %c0_137] : memref<1x64xf32, #tpu.memory_space<vmem>>, vector<1x64xf32>
    %220 = vector.broadcast %219 : vector<1x64xf32> to vector<16x64xf32>
    %221 = arith.addf %218, %220 : vector<16x64xf32>
    %cst_138 = arith.constant 0.000000e+00 : f32
    %222 = vector.broadcast %cst_138 : f32 to vector<16x64xf32>
    %c0_139 = arith.constant 0 : index
    %c0_140 = arith.constant 0 : index
    %c0_141 = arith.constant 0 : index
    %223 = vector.load %arg19[%c0_139, %c0_140, %c0_141] : memref<4x64x16xf32, #tpu.memory_space<vmem>>, vector<1x64x16xf32>
    %224 = vector.shape_cast %223 : vector<1x64x16xf32> to vector<64x16xf32>
    %cst_142 = arith.constant dense<0.000000e+00> : vector<16x16xf32>
    %225 = tpu.matmul %221, %224, %cst_142 {dimension_numbers = #tpu.dot_dimension_numbers<[1], [0], [0], [1], [0, 0, 1, 1], [], []>} : vector<16x64xf32>, vector<64x16xf32>, vector<16x16xf32> -> vector<16x16xf32>
    %c0_143 = arith.constant 0 : index
    %c0_144 = arith.constant 0 : index
    %c0_145 = arith.constant 0 : index
    %226 = vector.load %arg20[%c0_143, %c0_144, %c0_145] : memref<4x64x16xf32, #tpu.memory_space<vmem>>, vector<1x64x16xf32>
    %227 = vector.shape_cast %226 : vector<1x64x16xf32> to vector<64x16xf32>
    %cst_146 = arith.constant dense<0.000000e+00> : vector<16x16xf32>
    %228 = tpu.matmul %221, %227, %cst_146 {dimension_numbers = #tpu.dot_dimension_numbers<[1], [0], [0], [1], [0, 0, 1, 1], [], []>} : vector<16x64xf32>, vector<64x16xf32>, vector<16x16xf32> -> vector<16x16xf32>
    %c0_147 = arith.constant 0 : index
    %c0_148 = arith.constant 0 : index
    %c0_149 = arith.constant 0 : index
    %229 = vector.load %arg21[%c0_147, %c0_148, %c0_149] : memref<4x64x16xf32, #tpu.memory_space<vmem>>, vector<1x64x16xf32>
    %230 = vector.shape_cast %229 : vector<1x64x16xf32> to vector<64x16xf32>
    %cst_150 = arith.constant dense<0.000000e+00> : vector<16x16xf32>
    %231 = tpu.matmul %221, %230, %cst_150 {dimension_numbers = #tpu.dot_dimension_numbers<[1], [0], [0], [1], [0, 0, 1, 1], [], []>} : vector<16x64xf32>, vector<64x16xf32>, vector<16x16xf32> -> vector<16x16xf32>
    %cst_151 = arith.constant dense<0.000000e+00> : vector<16x16xf32>
    %232 = tpu.matmul %225, %228, %cst_151 {dimension_numbers = #tpu.dot_dimension_numbers<[1], [1], [0], [0], [0, 0, 1, 0], [], []>} : vector<16x16xf32>, vector<16x16xf32>, vector<16x16xf32> -> vector<16x16xf32>
    %cst_152 = arith.constant 2.500000e-01 : f32
    %233 = vector.broadcast %cst_152 : f32 to vector<16x16xf32>
    %234 = arith.mulf %232, %233 : vector<16x16xf32>
    %c0_153 = arith.constant 0 : index
    %c0_154 = arith.constant 0 : index
    %235 = vector.load %arg1[%c0_153, %c0_154] : memref<16x16xf32, #tpu.memory_space<vmem>>, vector<16x16xf32>
    %236 = arith.addf %234, %235 : vector<16x16xf32>
    %cst_155 = arith.constant dense<0xFF800000> : vector<16xf32>
    %237 = vector.multi_reduction <maximumf>, %236, %cst_155 [1] : vector<16x16xf32> to vector<16xf32>
    %238 = vector.shape_cast %237 : vector<16xf32> to vector<16x1xf32>
    %239 = vector.broadcast %238 : vector<16x1xf32> to vector<16x16xf32>
    %240 = arith.subf %236, %239 : vector<16x16xf32>
    %241 = math.exp %240 : vector<16x16xf32>
    %cst_156 = arith.constant dense<0.000000e+00> : vector<16xf32>
    %242 = vector.multi_reduction <add>, %241, %cst_156 [1] : vector<16x16xf32> to vector<16xf32>
    %243 = vector.shape_cast %242 : vector<16xf32> to vector<16x1xf32>
    %244 = tpu.reciprocal %243 {approx = true} : vector<16x1xf32> -> vector<16x1xf32>
    %245 = vector.broadcast %244 : vector<16x1xf32> to vector<16x16xf32>
    %246 = arith.mulf %241, %245 : vector<16x16xf32>
    %cst_157 = arith.constant dense<0.000000e+00> : vector<16x16xf32>
    %247 = tpu.matmul %246, %231, %cst_157 {dimension_numbers = #tpu.dot_dimension_numbers<[1], [0], [0], [1], [0, 0, 1, 1], [], []>} : vector<16x16xf32>, vector<16x16xf32>, vector<16x16xf32> -> vector<16x16xf32>
    %c0_158 = arith.constant 0 : index
    %c0_159 = arith.constant 0 : index
    %c0_160 = arith.constant 0 : index
    %248 = vector.load %arg22[%c0_158, %c0_159, %c0_160] : memref<4x16x64xf32, #tpu.memory_space<vmem>>, vector<1x16x64xf32>
    %249 = vector.shape_cast %248 : vector<1x16x64xf32> to vector<16x64xf32>
    %cst_161 = arith.constant dense<0.000000e+00> : vector<16x64xf32>
    %250 = tpu.matmul %247, %249, %cst_161 {dimension_numbers = #tpu.dot_dimension_numbers<[1], [0], [0], [1], [0, 0, 1, 1], [], []>} : vector<16x16xf32>, vector<16x64xf32>, vector<16x64xf32> -> vector<16x64xf32>
    %251 = arith.addf %222, %250 : vector<16x64xf32>
    %c1_162 = arith.constant 1 : index
    %c0_163 = arith.constant 0 : index
    %c0_164 = arith.constant 0 : index
    %252 = vector.load %arg19[%c1_162, %c0_163, %c0_164] : memref<4x64x16xf32, #tpu.memory_space<vmem>>, vector<1x64x16xf32>
    %253 = vector.shape_cast %252 : vector<1x64x16xf32> to vector<64x16xf32>
    %cst_165 = arith.constant dense<0.000000e+00> : vector<16x16xf32>
    %254 = tpu.matmul %221, %253, %cst_165 {dimension_numbers = #tpu.dot_dimension_numbers<[1], [0], [0], [1], [0, 0, 1, 1], [], []>} : vector<16x64xf32>, vector<64x16xf32>, vector<16x16xf32> -> vector<16x16xf32>
    %c1_166 = arith.constant 1 : index
    %c0_167 = arith.constant 0 : index
    %c0_168 = arith.constant 0 : index
    %255 = vector.load %arg20[%c1_166, %c0_167, %c0_168] : memref<4x64x16xf32, #tpu.memory_space<vmem>>, vector<1x64x16xf32>
    %256 = vector.shape_cast %255 : vector<1x64x16xf32> to vector<64x16xf32>
    %cst_169 = arith.constant dense<0.000000e+00> : vector<16x16xf32>
    %257 = tpu.matmul %221, %256, %cst_169 {dimension_numbers = #tpu.dot_dimension_numbers<[1], [0], [0], [1], [0, 0, 1, 1], [], []>} : vector<16x64xf32>, vector<64x16xf32>, vector<16x16xf32> -> vector<16x16xf32>
    %c1_170 = arith.constant 1 : index
    %c0_171 = arith.constant 0 : index
    %c0_172 = arith.constant 0 : index
    %258 = vector.load %arg21[%c1_170, %c0_171, %c0_172] : memref<4x64x16xf32, #tpu.memory_space<vmem>>, vector<1x64x16xf32>
    %259 = vector.shape_cast %258 : vector<1x64x16xf32> to vector<64x16xf32>
    %cst_173 = arith.constant dense<0.000000e+00> : vector<16x16xf32>
    %260 = tpu.matmul %221, %259, %cst_173 {dimension_numbers = #tpu.dot_dimension_numbers<[1], [0], [0], [1], [0, 0, 1, 1], [], []>} : vector<16x64xf32>, vector<64x16xf32>, vector<16x16xf32> -> vector<16x16xf32>
    %cst_174 = arith.constant dense<0.000000e+00> : vector<16x16xf32>
    %261 = tpu.matmul %254, %257, %cst_174 {dimension_numbers = #tpu.dot_dimension_numbers<[1], [1], [0], [0], [0, 0, 1, 0], [], []>} : vector<16x16xf32>, vector<16x16xf32>, vector<16x16xf32> -> vector<16x16xf32>
    %cst_175 = arith.constant 2.500000e-01 : f32
    %262 = vector.broadcast %cst_175 : f32 to vector<16x16xf32>
    %263 = arith.mulf %261, %262 : vector<16x16xf32>
    %c0_176 = arith.constant 0 : index
    %c0_177 = arith.constant 0 : index
    %264 = vector.load %arg1[%c0_176, %c0_177] : memref<16x16xf32, #tpu.memory_space<vmem>>, vector<16x16xf32>
    %265 = arith.addf %263, %264 : vector<16x16xf32>
    %cst_178 = arith.constant dense<0xFF800000> : vector<16xf32>
    %266 = vector.multi_reduction <maximumf>, %265, %cst_178 [1] : vector<16x16xf32> to vector<16xf32>
    %267 = vector.shape_cast %266 : vector<16xf32> to vector<16x1xf32>
    %268 = vector.broadcast %267 : vector<16x1xf32> to vector<16x16xf32>
    %269 = arith.subf %265, %268 : vector<16x16xf32>
    %270 = math.exp %269 : vector<16x16xf32>
    %cst_179 = arith.constant dense<0.000000e+00> : vector<16xf32>
    %271 = vector.multi_reduction <add>, %270, %cst_179 [1] : vector<16x16xf32> to vector<16xf32>
    %272 = vector.shape_cast %271 : vector<16xf32> to vector<16x1xf32>
    %273 = tpu.reciprocal %272 {approx = true} : vector<16x1xf32> -> vector<16x1xf32>
    %274 = vector.broadcast %273 : vector<16x1xf32> to vector<16x16xf32>
    %275 = arith.mulf %270, %274 : vector<16x16xf32>
    %cst_180 = arith.constant dense<0.000000e+00> : vector<16x16xf32>
    %276 = tpu.matmul %275, %260, %cst_180 {dimension_numbers = #tpu.dot_dimension_numbers<[1], [0], [0], [1], [0, 0, 1, 1], [], []>} : vector<16x16xf32>, vector<16x16xf32>, vector<16x16xf32> -> vector<16x16xf32>
    %c1_181 = arith.constant 1 : index
    %c0_182 = arith.constant 0 : index
    %c0_183 = arith.constant 0 : index
    %277 = vector.load %arg22[%c1_181, %c0_182, %c0_183] : memref<4x16x64xf32, #tpu.memory_space<vmem>>, vector<1x16x64xf32>
    %278 = vector.shape_cast %277 : vector<1x16x64xf32> to vector<16x64xf32>
    %cst_184 = arith.constant dense<0.000000e+00> : vector<16x64xf32>
    %279 = tpu.matmul %276, %278, %cst_184 {dimension_numbers = #tpu.dot_dimension_numbers<[1], [0], [0], [1], [0, 0, 1, 1], [], []>} : vector<16x16xf32>, vector<16x64xf32>, vector<16x64xf32> -> vector<16x64xf32>
    %280 = arith.addf %251, %279 : vector<16x64xf32>
    %c2_185 = arith.constant 2 : index
    %c0_186 = arith.constant 0 : index
    %c0_187 = arith.constant 0 : index
    %281 = vector.load %arg19[%c2_185, %c0_186, %c0_187] : memref<4x64x16xf32, #tpu.memory_space<vmem>>, vector<1x64x16xf32>
    %282 = vector.shape_cast %281 : vector<1x64x16xf32> to vector<64x16xf32>
    %cst_188 = arith.constant dense<0.000000e+00> : vector<16x16xf32>
    %283 = tpu.matmul %221, %282, %cst_188 {dimension_numbers = #tpu.dot_dimension_numbers<[1], [0], [0], [1], [0, 0, 1, 1], [], []>} : vector<16x64xf32>, vector<64x16xf32>, vector<16x16xf32> -> vector<16x16xf32>
    %c2_189 = arith.constant 2 : index
    %c0_190 = arith.constant 0 : index
    %c0_191 = arith.constant 0 : index
    %284 = vector.load %arg20[%c2_189, %c0_190, %c0_191] : memref<4x64x16xf32, #tpu.memory_space<vmem>>, vector<1x64x16xf32>
    %285 = vector.shape_cast %284 : vector<1x64x16xf32> to vector<64x16xf32>
    %cst_192 = arith.constant dense<0.000000e+00> : vector<16x16xf32>
    %286 = tpu.matmul %221, %285, %cst_192 {dimension_numbers = #tpu.dot_dimension_numbers<[1], [0], [0], [1], [0, 0, 1, 1], [], []>} : vector<16x64xf32>, vector<64x16xf32>, vector<16x16xf32> -> vector<16x16xf32>
    %c2_193 = arith.constant 2 : index
    %c0_194 = arith.constant 0 : index
    %c0_195 = arith.constant 0 : index
    %287 = vector.load %arg21[%c2_193, %c0_194, %c0_195] : memref<4x64x16xf32, #tpu.memory_space<vmem>>, vector<1x64x16xf32>
    %288 = vector.shape_cast %287 : vector<1x64x16xf32> to vector<64x16xf32>
    %cst_196 = arith.constant dense<0.000000e+00> : vector<16x16xf32>
    %289 = tpu.matmul %221, %288, %cst_196 {dimension_numbers = #tpu.dot_dimension_numbers<[1], [0], [0], [1], [0, 0, 1, 1], [], []>} : vector<16x64xf32>, vector<64x16xf32>, vector<16x16xf32> -> vector<16x16xf32>
    %cst_197 = arith.constant dense<0.000000e+00> : vector<16x16xf32>
    %290 = tpu.matmul %283, %286, %cst_197 {dimension_numbers = #tpu.dot_dimension_numbers<[1], [1], [0], [0], [0, 0, 1, 0], [], []>} : vector<16x16xf32>, vector<16x16xf32>, vector<16x16xf32> -> vector<16x16xf32>
    %cst_198 = arith.constant 2.500000e-01 : f32
    %291 = vector.broadcast %cst_198 : f32 to vector<16x16xf32>
    %292 = arith.mulf %290, %291 : vector<16x16xf32>
    %c0_199 = arith.constant 0 : index
    %c0_200 = arith.constant 0 : index
    %293 = vector.load %arg1[%c0_199, %c0_200] : memref<16x16xf32, #tpu.memory_space<vmem>>, vector<16x16xf32>
    %294 = arith.addf %292, %293 : vector<16x16xf32>
    %cst_201 = arith.constant dense<0xFF800000> : vector<16xf32>
    %295 = vector.multi_reduction <maximumf>, %294, %cst_201 [1] : vector<16x16xf32> to vector<16xf32>
    %296 = vector.shape_cast %295 : vector<16xf32> to vector<16x1xf32>
    %297 = vector.broadcast %296 : vector<16x1xf32> to vector<16x16xf32>
    %298 = arith.subf %294, %297 : vector<16x16xf32>
    %299 = math.exp %298 : vector<16x16xf32>
    %cst_202 = arith.constant dense<0.000000e+00> : vector<16xf32>
    %300 = vector.multi_reduction <add>, %299, %cst_202 [1] : vector<16x16xf32> to vector<16xf32>
    %301 = vector.shape_cast %300 : vector<16xf32> to vector<16x1xf32>
    %302 = tpu.reciprocal %301 {approx = true} : vector<16x1xf32> -> vector<16x1xf32>
    %303 = vector.broadcast %302 : vector<16x1xf32> to vector<16x16xf32>
    %304 = arith.mulf %299, %303 : vector<16x16xf32>
    %cst_203 = arith.constant dense<0.000000e+00> : vector<16x16xf32>
    %305 = tpu.matmul %304, %289, %cst_203 {dimension_numbers = #tpu.dot_dimension_numbers<[1], [0], [0], [1], [0, 0, 1, 1], [], []>} : vector<16x16xf32>, vector<16x16xf32>, vector<16x16xf32> -> vector<16x16xf32>
    %c2_204 = arith.constant 2 : index
    %c0_205 = arith.constant 0 : index
    %c0_206 = arith.constant 0 : index
    %306 = vector.load %arg22[%c2_204, %c0_205, %c0_206] : memref<4x16x64xf32, #tpu.memory_space<vmem>>, vector<1x16x64xf32>
    %307 = vector.shape_cast %306 : vector<1x16x64xf32> to vector<16x64xf32>
    %cst_207 = arith.constant dense<0.000000e+00> : vector<16x64xf32>
    %308 = tpu.matmul %305, %307, %cst_207 {dimension_numbers = #tpu.dot_dimension_numbers<[1], [0], [0], [1], [0, 0, 1, 1], [], []>} : vector<16x16xf32>, vector<16x64xf32>, vector<16x64xf32> -> vector<16x64xf32>
    %309 = arith.addf %280, %308 : vector<16x64xf32>
    %c3_208 = arith.constant 3 : index
    %c0_209 = arith.constant 0 : index
    %c0_210 = arith.constant 0 : index
    %310 = vector.load %arg19[%c3_208, %c0_209, %c0_210] : memref<4x64x16xf32, #tpu.memory_space<vmem>>, vector<1x64x16xf32>
    %311 = vector.shape_cast %310 : vector<1x64x16xf32> to vector<64x16xf32>
    %cst_211 = arith.constant dense<0.000000e+00> : vector<16x16xf32>
    %312 = tpu.matmul %221, %311, %cst_211 {dimension_numbers = #tpu.dot_dimension_numbers<[1], [0], [0], [1], [0, 0, 1, 1], [], []>} : vector<16x64xf32>, vector<64x16xf32>, vector<16x16xf32> -> vector<16x16xf32>
    %c3_212 = arith.constant 3 : index
    %c0_213 = arith.constant 0 : index
    %c0_214 = arith.constant 0 : index
    %313 = vector.load %arg20[%c3_212, %c0_213, %c0_214] : memref<4x64x16xf32, #tpu.memory_space<vmem>>, vector<1x64x16xf32>
    %314 = vector.shape_cast %313 : vector<1x64x16xf32> to vector<64x16xf32>
    %cst_215 = arith.constant dense<0.000000e+00> : vector<16x16xf32>
    %315 = tpu.matmul %221, %314, %cst_215 {dimension_numbers = #tpu.dot_dimension_numbers<[1], [0], [0], [1], [0, 0, 1, 1], [], []>} : vector<16x64xf32>, vector<64x16xf32>, vector<16x16xf32> -> vector<16x16xf32>
    %c3_216 = arith.constant 3 : index
    %c0_217 = arith.constant 0 : index
    %c0_218 = arith.constant 0 : index
    %316 = vector.load %arg21[%c3_216, %c0_217, %c0_218] : memref<4x64x16xf32, #tpu.memory_space<vmem>>, vector<1x64x16xf32>
    %317 = vector.shape_cast %316 : vector<1x64x16xf32> to vector<64x16xf32>
    %cst_219 = arith.constant dense<0.000000e+00> : vector<16x16xf32>
    %318 = tpu.matmul %221, %317, %cst_219 {dimension_numbers = #tpu.dot_dimension_numbers<[1], [0], [0], [1], [0, 0, 1, 1], [], []>} : vector<16x64xf32>, vector<64x16xf32>, vector<16x16xf32> -> vector<16x16xf32>
    %cst_220 = arith.constant dense<0.000000e+00> : vector<16x16xf32>
    %319 = tpu.matmul %312, %315, %cst_220 {dimension_numbers = #tpu.dot_dimension_numbers<[1], [1], [0], [0], [0, 0, 1, 0], [], []>} : vector<16x16xf32>, vector<16x16xf32>, vector<16x16xf32> -> vector<16x16xf32>
    %cst_221 = arith.constant 2.500000e-01 : f32
    %320 = vector.broadcast %cst_221 : f32 to vector<16x16xf32>
    %321 = arith.mulf %319, %320 : vector<16x16xf32>
    %c0_222 = arith.constant 0 : index
    %c0_223 = arith.constant 0 : index
    %322 = vector.load %arg1[%c0_222, %c0_223] : memref<16x16xf32, #tpu.memory_space<vmem>>, vector<16x16xf32>
    %323 = arith.addf %321, %322 : vector<16x16xf32>
    %cst_224 = arith.constant dense<0xFF800000> : vector<16xf32>
    %324 = vector.multi_reduction <maximumf>, %323, %cst_224 [1] : vector<16x16xf32> to vector<16xf32>
    %325 = vector.shape_cast %324 : vector<16xf32> to vector<16x1xf32>
    %326 = vector.broadcast %325 : vector<16x1xf32> to vector<16x16xf32>
    %327 = arith.subf %323, %326 : vector<16x16xf32>
    %328 = math.exp %327 : vector<16x16xf32>
    %cst_225 = arith.constant dense<0.000000e+00> : vector<16xf32>
    %329 = vector.multi_reduction <add>, %328, %cst_225 [1] : vector<16x16xf32> to vector<16xf32>
    %330 = vector.shape_cast %329 : vector<16xf32> to vector<16x1xf32>
    %331 = tpu.reciprocal %330 {approx = true} : vector<16x1xf32> -> vector<16x1xf32>
    %332 = vector.broadcast %331 : vector<16x1xf32> to vector<16x16xf32>
    %333 = arith.mulf %328, %332 : vector<16x16xf32>
    %cst_226 = arith.constant dense<0.000000e+00> : vector<16x16xf32>
    %334 = tpu.matmul %333, %318, %cst_226 {dimension_numbers = #tpu.dot_dimension_numbers<[1], [0], [0], [1], [0, 0, 1, 1], [], []>} : vector<16x16xf32>, vector<16x16xf32>, vector<16x16xf32> -> vector<16x16xf32>
    %c3_227 = arith.constant 3 : index
    %c0_228 = arith.constant 0 : index
    %c0_229 = arith.constant 0 : index
    %335 = vector.load %arg22[%c3_227, %c0_228, %c0_229] : memref<4x16x64xf32, #tpu.memory_space<vmem>>, vector<1x16x64xf32>
    %336 = vector.shape_cast %335 : vector<1x16x64xf32> to vector<16x64xf32>
    %cst_230 = arith.constant dense<0.000000e+00> : vector<16x64xf32>
    %337 = tpu.matmul %334, %336, %cst_230 {dimension_numbers = #tpu.dot_dimension_numbers<[1], [0], [0], [1], [0, 0, 1, 1], [], []>} : vector<16x16xf32>, vector<16x64xf32>, vector<16x64xf32> -> vector<16x64xf32>
    %338 = arith.addf %309, %337 : vector<16x64xf32>
    %339 = arith.addf %197, %338 : vector<16x64xf32>
    %c0_231 = arith.constant 0 : index
    %c0_232 = arith.constant 0 : index
    %340 = vector.load %arg23[%c0_231, %c0_232] : memref<1x64xf32, #tpu.memory_space<vmem>>, vector<1x64xf32>
    %341 = vector.broadcast %340 : vector<1x64xf32> to vector<16x64xf32>
    %342 = arith.addf %339, %341 : vector<16x64xf32>
    %cst_233 = arith.constant dense<0.000000e+00> : vector<16xf32>
    %343 = vector.multi_reduction <add>, %342, %cst_233 [1] : vector<16x64xf32> to vector<16xf32>
    %344 = vector.shape_cast %343 : vector<16xf32> to vector<16x1xf32>
    %cst_234 = arith.constant 6.400000e+01 : f32
    %345 = vector.broadcast %cst_234 : f32 to vector<16x1xf32>
    %346 = arith.divf %344, %345 : vector<16x1xf32>
    %347 = vector.broadcast %346 : vector<16x1xf32> to vector<16x64xf32>
    %348 = arith.subf %342, %347 : vector<16x64xf32>
    %349 = arith.mulf %348, %348 : vector<16x64xf32>
    %cst_235 = arith.constant dense<0.000000e+00> : vector<16xf32>
    %350 = vector.multi_reduction <add>, %349, %cst_235 [1] : vector<16x64xf32> to vector<16xf32>
    %351 = vector.shape_cast %350 : vector<16xf32> to vector<16x1xf32>
    %cst_236 = arith.constant 6.400000e+01 : f32
    %352 = vector.broadcast %cst_236 : f32 to vector<16x1xf32>
    %353 = arith.divf %351, %352 : vector<16x1xf32>
    %354 = vector.broadcast %346 : vector<16x1xf32> to vector<16x64xf32>
    %355 = arith.subf %342, %354 : vector<16x64xf32>
    %cst_237 = arith.constant 9.99999997E-7 : f32
    %356 = vector.broadcast %cst_237 : f32 to vector<16x1xf32>
    %357 = arith.addf %353, %356 : vector<16x1xf32>
    %358 = math.rsqrt %357 : vector<16x1xf32>
    %359 = vector.broadcast %358 : vector<16x1xf32> to vector<16x64xf32>
    %360 = arith.mulf %355, %359 : vector<16x64xf32>
    %c0_238 = arith.constant 0 : index
    %c0_239 = arith.constant 0 : index
    %361 = vector.load %arg24[%c0_238, %c0_239] : memref<1x64xf32, #tpu.memory_space<vmem>>, vector<1x64xf32>
    %362 = vector.broadcast %361 : vector<1x64xf32> to vector<16x64xf32>
    %363 = arith.mulf %360, %362 : vector<16x64xf32>
    %c0_240 = arith.constant 0 : index
    %c0_241 = arith.constant 0 : index
    %364 = vector.load %arg25[%c0_240, %c0_241] : memref<1x64xf32, #tpu.memory_space<vmem>>, vector<1x64xf32>
    %365 = vector.broadcast %364 : vector<1x64xf32> to vector<16x64xf32>
    %366 = arith.addf %363, %365 : vector<16x64xf32>
    %c0_242 = arith.constant 0 : index
    %c0_243 = arith.constant 0 : index
    %367 = vector.load %arg26[%c0_242, %c0_243] : memref<64x256xf32, #tpu.memory_space<vmem>>, vector<64x256xf32>
    %cst_244 = arith.constant dense<0.000000e+00> : vector<16x256xf32>
    %368 = tpu.matmul %366, %367, %cst_244 {dimension_numbers = #tpu.dot_dimension_numbers<[1], [0], [0], [1], [0, 0, 1, 1], [], []>} : vector<16x64xf32>, vector<64x256xf32>, vector<16x256xf32> -> vector<16x256xf32>
    %c0_245 = arith.constant 0 : index
    %c0_246 = arith.constant 0 : index
    %369 = vector.load %arg27[%c0_245, %c0_246] : memref<1x256xf32, #tpu.memory_space<vmem>>, vector<1x256xf32>
    %370 = vector.broadcast %369 : vector<1x256xf32> to vector<16x256xf32>
    %371 = arith.addf %368, %370 : vector<16x256xf32>
    %372 = arith.mulf %371, %371 : vector<16x256xf32>
    %373 = arith.mulf %371, %372 : vector<16x256xf32>
    %cst_247 = arith.constant 4.471500e-02 : f32
    %374 = vector.broadcast %cst_247 : f32 to vector<16x256xf32>
    %375 = arith.mulf %374, %373 : vector<16x256xf32>
    %376 = arith.addf %371, %375 : vector<16x256xf32>
    %cst_248 = arith.constant 0.797884583 : f32
    %377 = vector.broadcast %cst_248 : f32 to vector<16x256xf32>
    %378 = arith.mulf %377, %376 : vector<16x256xf32>
    %379 = math.tanh %378 : vector<16x256xf32>
    %cst_249 = arith.constant 1.000000e+00 : f32
    %380 = vector.broadcast %cst_249 : f32 to vector<16x256xf32>
    %381 = arith.addf %380, %379 : vector<16x256xf32>
    %cst_250 = arith.constant 5.000000e-01 : f32
    %382 = vector.broadcast %cst_250 : f32 to vector<16x256xf32>
    %383 = arith.mulf %382, %381 : vector<16x256xf32>
    %384 = arith.mulf %371, %383 : vector<16x256xf32>
    %c0_251 = arith.constant 0 : index
    %c0_252 = arith.constant 0 : index
    %385 = vector.load %arg28[%c0_251, %c0_252] : memref<256x64xf32, #tpu.memory_space<vmem>>, vector<256x64xf32>
    %cst_253 = arith.constant dense<0.000000e+00> : vector<16x64xf32>
    %386 = tpu.matmul %384, %385, %cst_253 {dimension_numbers = #tpu.dot_dimension_numbers<[1], [0], [0], [1], [0, 0, 1, 1], [], []>} : vector<16x256xf32>, vector<256x64xf32>, vector<16x64xf32> -> vector<16x64xf32>
    %387 = arith.addf %342, %386 : vector<16x64xf32>
    %c0_254 = arith.constant 0 : index
    %c0_255 = arith.constant 0 : index
    %388 = vector.load %arg29[%c0_254, %c0_255] : memref<1x64xf32, #tpu.memory_space<vmem>>, vector<1x64xf32>
    %389 = vector.broadcast %388 : vector<1x64xf32> to vector<16x64xf32>
    %390 = arith.addf %387, %389 : vector<16x64xf32>
    %391 = vector.extract_strided_slice %390 {offsets = [0, 0], sizes = [1, 64], strides = [1, 1]} : vector<16x64xf32> to vector<1x64xf32>
    %392 = vector.extract_strided_slice %390 {offsets = [8, 0], sizes = [1, 64], strides = [1, 1]} : vector<16x64xf32> to vector<1x64xf32>
    %393 = tpu.concatenate %391, %392 in 0 : vector<1x64xf32>, vector<1x64xf32> -> vector<2x64xf32>
    %cst_256 = arith.constant dense<0.000000e+00> : vector<2xf32>
    %394 = vector.multi_reduction <add>, %393, %cst_256 [1] : vector<2x64xf32> to vector<2xf32>
    %395 = vector.shape_cast %394 : vector<2xf32> to vector<2x1xf32>
    %cst_257 = arith.constant 6.400000e+01 : f32
    %396 = vector.broadcast %cst_257 : f32 to vector<2x1xf32>
    %397 = arith.divf %395, %396 : vector<2x1xf32>
    %398 = vector.broadcast %397 : vector<2x1xf32> to vector<2x64xf32>
    %399 = arith.subf %393, %398 : vector<2x64xf32>
    %400 = arith.mulf %399, %399 : vector<2x64xf32>
    %cst_258 = arith.constant dense<0.000000e+00> : vector<2xf32>
    %401 = vector.multi_reduction <add>, %400, %cst_258 [1] : vector<2x64xf32> to vector<2xf32>
    %402 = vector.shape_cast %401 : vector<2xf32> to vector<2x1xf32>
    %cst_259 = arith.constant 6.400000e+01 : f32
    %403 = vector.broadcast %cst_259 : f32 to vector<2x1xf32>
    %404 = arith.divf %402, %403 : vector<2x1xf32>
    %405 = vector.broadcast %397 : vector<2x1xf32> to vector<2x64xf32>
    %406 = arith.subf %393, %405 : vector<2x64xf32>
    %cst_260 = arith.constant 9.99999997E-7 : f32
    %407 = vector.broadcast %cst_260 : f32 to vector<2x1xf32>
    %408 = arith.addf %404, %407 : vector<2x1xf32>
    %409 = math.rsqrt %408 : vector<2x1xf32>
    %410 = vector.broadcast %409 : vector<2x1xf32> to vector<2x64xf32>
    %411 = arith.mulf %406, %410 : vector<2x64xf32>
    %c0_261 = arith.constant 0 : index
    %c0_262 = arith.constant 0 : index
    %412 = vector.load %arg30[%c0_261, %c0_262] : memref<1x64xf32, #tpu.memory_space<vmem>>, vector<1x64xf32>
    %413 = vector.broadcast %412 : vector<1x64xf32> to vector<2x64xf32>
    %414 = arith.mulf %411, %413 : vector<2x64xf32>
    %c0_263 = arith.constant 0 : index
    %c0_264 = arith.constant 0 : index
    %415 = vector.load %arg31[%c0_263, %c0_264] : memref<1x64xf32, #tpu.memory_space<vmem>>, vector<1x64xf32>
    %416 = vector.broadcast %415 : vector<1x64xf32> to vector<2x64xf32>
    %417 = arith.addf %414, %416 : vector<2x64xf32>
    %c0_265 = arith.constant 0 : index
    %c0_266 = arith.constant 0 : index
    %418 = vector.load %arg32[%c0_265, %c0_266] : memref<1x64xf32, #tpu.memory_space<vmem>>, vector<1x64xf32>
    %419 = vector.broadcast %418 : vector<1x64xf32> to vector<2x64xf32>
    %420 = arith.mulf %417, %419 : vector<2x64xf32>
    %cst_267 = arith.constant dense<0.000000e+00> : vector<2xf32>
    %421 = vector.multi_reduction <add>, %420, %cst_267 [1] : vector<2x64xf32> to vector<2xf32>
    %422 = vector.shape_cast %421 : vector<2xf32> to vector<2x1xf32>
    %c0_268 = arith.constant 0 : index
    %c0_269 = arith.constant 0 : index
    %423 = vector.load %arg33[%c0_268, %c0_269] : memref<1x1xf32, #tpu.memory_space<vmem>>, vector<1x1xf32>
    %424 = vector.broadcast %423 : vector<1x1xf32> to vector<2x1xf32>
    %425 = arith.addf %422, %424 : vector<2x1xf32>
    %c0_270 = arith.constant 0 : index
    %c0_271 = arith.constant 0 : index
    %426 = vector.load %arg34[%c0_270, %c0_271] : memref<2x1xf32, #tpu.memory_space<vmem>>, vector<2x1xf32>
    tpu.vector_store %arg34[%c0_270, %c0_271], %425 {strides = array<i32>} : memref<2x1xf32, #tpu.memory_space<vmem>>, vector<2x1xf32>,
    return
  }
}

</mosaic_0001>

<llo_original>
// kernel: vit_forward.1
$region0: #{vit_forward.1}
  #allocation0 [shape = 'u32[]', space=smem, size = 0x4, offset = 0x4, fixed_abs, tag = 'smem constant byte address 0x4 - core index']
  #allocation1 [shape = 'u32[72,128]{1,0:T(1,128)}', space=vmem, size = 0x9000, scoped, tag = 'internal scratch']
  #allocation2 [shape = 'f32[1,1]{1,0:T(1,128)S(1)}', space=vmem, size = 0x200, scoped, tag = 'scoped memory for vit_forward.1']
  %s0 = inlined_call_operand.smem [shape: u32[35], index: -1, kind: input, shape index: {}]
  %s1 = sld [smem:[%s0]]
  %s2 = scalar_lea.smem %s0, 1
  %s3 = sld [smem:[%s2]]
  %s4 = scalar_lea.smem %s0, 2
  %s5 = sld [smem:[%s4]]
  %s6 = scalar_lea.smem %s0, 3
  %s7 = sld [smem:[%s6]]
  %s8 = scalar_lea.smem %s0, 4
  %s9 = sld [smem:[%s8]]
  %s10 = scalar_lea.smem %s0, 5
  %s11 = sld [smem:[%s10]]
  %s12 = scalar_lea.smem %s0, 6
  %s13 = sld [smem:[%s12]]
  %s14 = scalar_lea.smem %s0, 7
  %s15 = sld [smem:[%s14]]
  %s16 = scalar_lea.smem %s0, 8
  %s17 = sld [smem:[%s16]]
  %s18 = scalar_lea.smem %s0, 9
  %s19 = sld [smem:[%s18]]
  %s20 = scalar_lea.smem %s0, 10
  %s21 = sld [smem:[%s20]]
  %s22 = scalar_lea.smem %s0, 11
  %s23 = sld [smem:[%s22]]
  %s24 = scalar_lea.smem %s0, 12
  %s25 = sld [smem:[%s24]]
  %s26 = scalar_lea.smem %s0, 13
  %s27 = sld [smem:[%s26]]
  %s28 = scalar_lea.smem %s0, 14
  %s29 = sld [smem:[%s28]]
  %s30 = scalar_lea.smem %s0, 15
  %s31 = sld [smem:[%s30]]
  %s32 = scalar_lea.smem %s0, 16
  %s33 = sld [smem:[%s32]]
  %s34 = scalar_lea.smem %s0, 17
  %s35 = sld [smem:[%s34]]
  %s36 = scalar_lea.smem %s0, 18
  %s37 = sld [smem:[%s36]]
  %s38 = scalar_lea.smem %s0, 19
  %s39 = sld [smem:[%s38]]
  %s40 = scalar_lea.smem %s0, 20
  %s41 = sld [smem:[%s40]]
  %s42 = scalar_lea.smem %s0, 21
  %s43 = sld [smem:[%s42]]
  %s44 = scalar_lea.smem %s0, 22
  %s45 = sld [smem:[%s44]]
  %s46 = scalar_lea.smem %s0, 23
  %s47 = sld [smem:[%s46]]
  %s48 = scalar_lea.smem %s0, 24
  %s49 = sld [smem:[%s48]]
  %s50 = scalar_lea.smem %s0, 25
  %s51 = sld [smem:[%s50]]
  %s52 = scalar_lea.smem %s0, 26
  %s53 = sld [smem:[%s52]]
  %s54 = scalar_lea.smem %s0, 27
  %s55 = sld [smem:[%s54]]
  %s56 = scalar_lea.smem %s0, 28
  %s57 = sld [smem:[%s56]]
  %s58 = scalar_lea.smem %s0, 29
  %s59 = sld [smem:[%s58]]
  %s60 = scalar_lea.smem %s0, 30
  %s61 = sld [smem:[%s60]]
  %s62 = scalar_lea.smem %s0, 31
  %s63 = sld [smem:[%s62]]
  %s64 = scalar_lea.smem %s0, 32
  %s65 = sld [smem:[%s64]]
  %s66 = scalar_lea.smem %s0, 33
  %s67 = sld [smem:[%s66]]
  %s68 = scalar_lea.smem %s0, 34
  %s69 = sld [smem:[%s68]]
  %s70 = sld [smem:[#allocation0]]
  $region146: #{vit_forward.1} parent=0
    _
  %s72 = ssub.s32 1, %s70
  %s73 = scalar_select 0, %s72, %s70
  %v74 = vstv %s67
  %75 = vst [vmem:[#allocation2] sm:$0x1] %v74
  // Predicated region
  $region2: #{vit_forward.1} parent=0 // pred_check
    _
  $region3: #{vit_forward.1} parent=0 // pred_check_branch
    %77 = sbr.rel (0) target = $region5
  $region4: #{vit_forward.1} parent=0 // pred_region
    _
  $region5: #{vit_forward.1} parent=0 // pred_fallthru
    _
  // Predicated region
  $region6: #{vit_forward.1} parent=0 // pred_check
    _
  $region7: #{vit_forward.1} parent=0 // pred_check_branch
    %79 = sbr.rel (0) target = $region9
  $region8: #{vit_forward.1} parent=0 // pred_region
    _
  $region9: #{vit_forward.1} parent=0 // pred_fallthru
    _
  // Predicated region
  $region10: #{vit_forward.1} parent=0 // pred_check
    _
  $region11: #{vit_forward.1} parent=0 // pred_check_branch
    %81 = sbr.rel (0) target = $region13
  $region12: #{vit_forward.1} parent=0 // pred_region
    _
  $region13: #{vit_forward.1} parent=0 // pred_fallthru
    _
  // Predicated region
  $region14: #{vit_forward.1} parent=0 // pred_check
    _
  $region15: #{vit_forward.1} parent=0 // pred_check_branch
    %83 = sbr.rel (0) target = $region17
  $region16: #{vit_forward.1} parent=0 // pred_region
    _
  $region17: #{vit_forward.1} parent=0 // pred_fallthru
    _
  // Predicated region
  $region18: #{vit_forward.1} parent=0 // pred_check
    _
  $region19: #{vit_forward.1} parent=0 // pred_check_branch
    %85 = sbr.rel (0) target = $region21
  $region20: #{vit_forward.1} parent=0 // pred_region
    _
  $region21: #{vit_forward.1} parent=0 // pred_fallthru
    _
  // Predicated region
  $region22: #{vit_forward.1} parent=0 // pred_check
    _
  $region23: #{vit_forward.1} parent=0 // pred_check_branch
    %87 = sbr.rel (0) target = $region25
  $region24: #{vit_forward.1} parent=0 // pred_region
    _
  $region25: #{vit_forward.1} parent=0 // pred_fallthru
    _
  // Predicated region
  $region26: #{vit_forward.1} parent=0 // pred_check
    _
  $region27: #{vit_forward.1} parent=0 // pred_check_branch
    %89 = sbr.rel (0) target = $region29
  $region28: #{vit_forward.1} parent=0 // pred_region
    _
  $region29: #{vit_forward.1} parent=0 // pred_fallthru
    _
  // Predicated region
  $region30: #{vit_forward.1} parent=0 // pred_check
    _
  $region31: #{vit_forward.1} parent=0 // pred_check_branch
    %91 = sbr.rel (0) target = $region33
  $region32: #{vit_forward.1} parent=0 // pred_region
    _
  $region33: #{vit_forward.1} parent=0 // pred_fallthru
    _
  // Predicated region
  $region34: #{vit_forward.1} parent=0 // pred_check
    _
  $region35: #{vit_forward.1} parent=0 // pred_check_branch
    %93 = sbr.rel (0) target = $region37
  $region36: #{vit_forward.1} parent=0 // pred_region
    _
  $region37: #{vit_forward.1} parent=0 // pred_fallthru
    _
  // Predicated region
  $region38: #{vit_forward.1} parent=0 // pred_check
    _
  $region39: #{vit_forward.1} parent=0 // pred_check_branch
    %95 = sbr.rel (0) target = $region41
  $region40: #{vit_forward.1} parent=0 // pred_region
    _
  $region41: #{vit_forward.1} parent=0 // pred_fallthru
    _
  // Predicated region
  $region42: #{vit_forward.1} parent=0 // pred_check
    _
  $region43: #{vit_forward.1} parent=0 // pred_check_branch
    %97 = sbr.rel (0) target = $region45
  $region44: #{vit_forward.1} parent=0 // pred_region
    _
  $region45: #{vit_forward.1} parent=0 // pred_fallthru
    _
  // Predicated region
  $region46: #{vit_forward.1} parent=0 // pred_check
    _
  $region47: #{vit_forward.1} parent=0 // pred_check_branch
    %99 = sbr.rel (0) target = $region49
  $region48: #{vit_forward.1} parent=0 // pred_region
    _
  $region49: #{vit_forward.1} parent=0 // pred_fallthru
    _
  // Predicated region
  $region50: #{vit_forward.1} parent=0 // pred_check
    _
  $region51: #{vit_forward.1} parent=0 // pred_check_branch
    %101 = sbr.rel (0) target = $region53
  $region52: #{vit_forward.1} parent=0 // pred_region
    _
  $region53: #{vit_forward.1} parent=0 // pred_fallthru
    _
  // Predicated region
  $region54: #{vit_forward.1} parent=0 // pred_check
    _
  $region55: #{vit_forward.1} parent=0 // pred_check_branch
    %103 = sbr.rel (0) target = $region57
  $region56: #{vit_forward.1} parent=0 // pred_region
    _
  $region57: #{vit_forward.1} parent=0 // pred_fallthru
    _
  // Predicated region
  $region58: #{vit_forward.1} parent=0 // pred_check
    _
  $region59: #{vit_forward.1} parent=0 // pred_check_branch
    %105 = sbr.rel (0) target = $region61
  $region60: #{vit_forward.1} parent=0 // pred_region
    _
  $region61: #{vit_forward.1} parent=0 // pred_fallthru
    _
  // Predicated region
  $region62: #{vit_forward.1} parent=0 // pred_check
    _
  $region63: #{vit_forward.1} parent=0 // pred_check_branch
    %107 = sbr.rel (0) target = $region65
  $region64: #{vit_forward.1} parent=0 // pred_region
    _
  $region65: #{vit_forward.1} parent=0 // pred_fallthru
    _
  // Predicated region
  $region66: #{vit_forward.1} parent=0 // pred_check
    _
  $region67: #{vit_forward.1} parent=0 // pred_check_branch
    %109 = sbr.rel (0) target = $region69
  $region68: #{vit_forward.1} parent=0 // pred_region
    _
  $region69: #{vit_forward.1} parent=0 // pred_fallthru
    _
  // Predicated region
  $region70: #{vit_forward.1} parent=0 // pred_check
    _
  $region71: #{vit_forward.1} parent=0 // pred_check_branch
    %111 = sbr.rel (0) target = $region73
  $region72: #{vit_forward.1} parent=0 // pred_region
    _
  $region73: #{vit_forward.1} parent=0 // pred_fallthru
    _
  // Predicated region
  $region74: #{vit_forward.1} parent=0 // pred_check
    _
  $region75: #{vit_forward.1} parent=0 // pred_check_branch
    %113 = sbr.rel (0) target = $region77
  $region76: #{vit_forward.1} parent=0 // pred_region
    _
  $region77: #{vit_forward.1} parent=0 // pred_fallthru
    _
  // Predicated region
  $region78: #{vit_forward.1} parent=0 // pred_check
    _
  $region79: #{vit_forward.1} parent=0 // pred_check_branch
    %115 = sbr.rel (0) target = $region81
  $region80: #{vit_forward.1} parent=0 // pred_region
    _
  $region81: #{vit_forward.1} parent=0 // pred_fallthru
    _
  // Predicated region
  $region82: #{vit_forward.1} parent=0 // pred_check
    _
  $region83: #{vit_forward.1} parent=0 // pred_check_branch
    %117 = sbr.rel (0) target = $region85
  $region84: #{vit_forward.1} parent=0 // pred_region
    _
  $region85: #{vit_forward.1} parent=0 // pred_fallthru
    _
  // Predicated region
  $region86: #{vit_forward.1} parent=0 // pred_check
    _
  $region87: #{vit_forward.1} parent=0 // pred_check_branch
    %119 = sbr.rel (0) target = $region89
  $region88: #{vit_forward.1} parent=0 // pred_region
    _
  $region89: #{vit_forward.1} parent=0 // pred_fallthru
    _
  // Predicated region
  $region90: #{vit_forward.1} parent=0 // pred_check
    _
  $region91: #{vit_forward.1} parent=0 // pred_check_branch
    %121 = sbr.rel (0) target = $region93
  $region92: #{vit_forward.1} parent=0 // pred_region
    _
  $region93: #{vit_forward.1} parent=0 // pred_fallthru
    _
  // Predicated region
  $region94: #{vit_forward.1} parent=0 // pred_check
    _
  $region95: #{vit_forward.1} parent=0 // pred_check_branch
    %123 = sbr.rel (0) target = $region97
  $region96: #{vit_forward.1} parent=0 // pred_region
    _
  $region97: #{vit_forward.1} parent=0 // pred_fallthru
    _
  // Predicated region
  $region98: #{vit_forward.1} parent=0 // pred_check
    _
  $region99: #{vit_forward.1} parent=0 // pred_check_branch
    %125 = sbr.rel (0) target = $region101
  $region100: #{vit_forward.1} parent=0 // pred_region
    _
  $region101: #{vit_forward.1} parent=0 // pred_fallthru
    _
  // Predicated region
  $region102: #{vit_forward.1} parent=0 // pred_check
    _
  $region103: #{vit_forward.1} parent=0 // pred_check_branch
    %127 = sbr.rel (0) target = $region105
  $region104: #{vit_forward.1} parent=0 // pred_region
    _
  $region105: #{vit_forward.1} parent=0 // pred_fallthru
    _
  // Predicated region
  $region106: #{vit_forward.1} parent=0 // pred_check
    _
  $region107: #{vit_forward.1} parent=0 // pred_check_branch
    %129 = sbr.rel (0) target = $region109
  $region108: #{vit_forward.1} parent=0 // pred_region
    _
  $region109: #{vit_forward.1} parent=0 // pred_fallthru
    _
  // Predicated region
  $region110: #{vit_forward.1} parent=0 // pred_check
    _
  $region111: #{vit_forward.1} parent=0 // pred_check_branch
    %131 = sbr.rel (0) target = $region113
  $region112: #{vit_forward.1} parent=0 // pred_region
    _
  $region113: #{vit_forward.1} parent=0 // pred_fallthru
    _
  // Predicated region
  $region114: #{vit_forward.1} parent=0 // pred_check
    _
  $region115: #{vit_forward.1} parent=0 // pred_check_branch
    %133 = sbr.rel (0) target = $region117
  $region116: #{vit_forward.1} parent=0 // pred_region
    _
  $region117: #{vit_forward.1} parent=0 // pred_fallthru
    _
  // Predicated region
  $region118: #{vit_forward.1} parent=0 // pred_check
    _
  $region119: #{vit_forward.1} parent=0 // pred_check_branch
    %135 = sbr.rel (0) target = $region121
  $region120: #{vit_forward.1} parent=0 // pred_region
    _
  $region121: #{vit_forward.1} parent=0 // pred_fallthru
    _
  // Predicated region
  $region122: #{vit_forward.1} parent=0 // pred_check
    _
  $region123: #{vit_forward.1} parent=0 // pred_check_branch
    %137 = sbr.rel (0) target = $region125
  $region124: #{vit_forward.1} parent=0 // pred_region
    _
  $region125: #{vit_forward.1} parent=0 // pred_fallthru
    _
  // Predicated region
  $region126: #{vit_forward.1} parent=0 // pred_check
    _
  $region127: #{vit_forward.1} parent=0 // pred_check_branch
    %139 = sbr.rel (0) target = $region129
  $region128: #{vit_forward.1} parent=0 // pred_region
    _
  $region129: #{vit_forward.1} parent=0 // pred_fallthru
    _
  // Predicated region
  $region130: #{vit_forward.1} parent=0 // pred_check
    _
  $region131: #{vit_forward.1} parent=0 // pred_check_branch
    %141 = sbr.rel (0) target = $region133
  $region132: #{vit_forward.1} parent=0 // pred_region
    _
  $region133: #{vit_forward.1} parent=0 // pred_fallthru
    _
  // Predicated region
  $region134: #{vit_forward.1} parent=0 // pred_check
    _
  $region135: #{vit_forward.1} parent=0 // pred_check_branch
    %143 = sbr.rel (0) target = $region137
  $region136: #{vit_forward.1} parent=0 // pred_region
    _
  $region137: #{vit_forward.1} parent=0 // pred_fallthru
    _
  %v144 = vld [vmem:[%s1] sm:$0xff]
  %v145 = vld [vmem:[%s1 + $0x8] sm:$0xff]
  %v146 = vld [vmem:[%s1 + $0x10] sm:$0xff]
  %v147 = vld [vmem:[%s1 + $0x18] sm:$0xff]
  %v148 = vld [vmem:[%s1 + $0x20] sm:$0xff]
  %v149 = vld [vmem:[%s1 + $0x28] sm:$0xff]
  %v150 = vld [vmem:[%s1 + $0x30] sm:$0xff]
  %v151 = vld [vmem:[%s1 + $0x38] sm:$0xff]
  %v152 = vld [vmem:[%s1 + $0x40] sm:$0xff]
  %v153 = vld [vmem:[%s1 + $0x48] sm:$0xff]
  %v154 = vld [vmem:[%s1 + $0x50] sm:$0xff]
  %v155 = vld [vmem:[%s1 + $0x58] sm:$0xff]
  %v156 = vld [vmem:[%s5] sm:$0xff]
  %v157 = vld [vmem:[%s5 + $0x8] sm:$0xff]
  %v158 = vld [vmem:[%s5 + $0x10] sm:$0xff]
  %v159 = vld [vmem:[%s5 + $0x18] sm:$0xff]
  %v160 = vld [vmem:[%s5 + $0x20] sm:$0xff]
  %v161 = vld [vmem:[%s5 + $0x28] sm:$0xff]
  %v162 = vld [vmem:[%s5 + $0x30] sm:$0xff]
  %v163 = vld [vmem:[%s5 + $0x38] sm:$0xff]
  %v164 = vld [vmem:[%s5 + $0x40] sm:$0xff]
  %v165 = vld [vmem:[%s5 + $0x48] sm:$0xff]
  %v166 = vld [vmem:[%s5 + $0x50] sm:$0xff]
  %v167 = vld [vmem:[%s5 + $0x58] sm:$0xff]
  %v168 = vld [vmem:[%s5 + $0x60] sm:$0xff]
  %v169 = vld [vmem:[%s5 + $0x68] sm:$0xff]
  %v170 = vld [vmem:[%s5 + $0x70] sm:$0xff]
  %v171 = vld [vmem:[%s5 + $0x78] sm:$0xff]
  %v172 = vld [vmem:[%s5 + $0x80] sm:$0xff]
  %v173 = vld [vmem:[%s5 + $0x88] sm:$0xff]
  %v174 = vld [vmem:[%s5 + $0x90] sm:$0xff]
  %v175 = vld [vmem:[%s5 + $0x98] sm:$0xff]
  %v176 = vld [vmem:[%s5 + $0xa0] sm:$0xff]
  %v177 = vld [vmem:[%s5 + $0xa8] sm:$0xff]
  %v178 = vld [vmem:[%s5 + $0xb0] sm:$0xff]
  %v179 = vld [vmem:[%s5 + $0xb8] sm:$0xff]
  %v180 = vld [vmem:[%s5 + $0xc0] sm:$0xff]
  %v181 = vld [vmem:[%s5 + $0xc8] sm:$0xff]
  %v182 = vld [vmem:[%s5 + $0xd0] sm:$0xff]
  %v183 = vld [vmem:[%s5 + $0xd8] sm:$0xff]
  %v184 = vld [vmem:[%s5 + $0xe0] sm:$0xff]
  %v185 = vld [vmem:[%s5 + $0xe8] sm:$0xff]
  %v186 = vld [vmem:[%s5 + $0xf0] sm:$0xff]
  %v187 = vld [vmem:[%s5 + $0xf8] sm:$0xff]
  %v188 = vld [vmem:[%s5 + $0x100] sm:$0xff]
  %v189 = vld [vmem:[%s5 + $0x108] sm:$0xff]
  %v190 = vld [vmem:[%s5 + $0x110] sm:$0xff]
  %v191 = vld [vmem:[%s5 + $0x118] sm:$0xff]
  %v192 = vld [vmem:[%s5 + $0x120] sm:$0xff]
  %v193 = vld [vmem:[%s5 + $0x128] sm:$0xff]
  %v194 = vld [vmem:[%s5 + $0x130] sm:$0xff]
  %v195 = vld [vmem:[%s5 + $0x138] sm:$0xff]
  %v196 = vld [vmem:[%s5 + $0x140] sm:$0xff]
  %v197 = vld [vmem:[%s5 + $0x148] sm:$0xff]
  %v198 = vld [vmem:[%s5 + $0x150] sm:$0xff]
  %v199 = vld [vmem:[%s5 + $0x158] sm:$0xff]
  %v200 = vld [vmem:[%s5 + $0x160] sm:$0xff]
  %v201 = vld [vmem:[%s5 + $0x168] sm:$0xff]
  %v202 = vld [vmem:[%s5 + $0x170] sm:$0xff]
  %v203 = vld [vmem:[%s5 + $0x178] sm:$0xff]
  %v204 = vld [vmem:[%s5 + $0x180] sm:$0xff]
  %v205 = vld [vmem:[%s5 + $0x188] sm:$0xff]
  %v206 = vld [vmem:[%s5 + $0x190] sm:$0xff]
  %v207 = vld [vmem:[%s5 + $0x198] sm:$0xff]
  %v208 = vld [vmem:[%s5 + $0x1a0] sm:$0xff]
  %v209 = vld [vmem:[%s5 + $0x1a8] sm:$0xff]
  %v210 = vld [vmem:[%s5 + $0x1b0] sm:$0xff]
  %v211 = vld [vmem:[%s5 + $0x1b8] sm:$0xff]
  %v212 = vld [vmem:[%s5 + $0x1c0] sm:$0xff]
  %v213 = vld [vmem:[%s5 + $0x1c8] sm:$0xff]
  %v214 = vld [vmem:[%s5 + $0x1d0] sm:$0xff]
  %v215 = vld [vmem:[%s5 + $0x1d8] sm:$0xff]
  %v216 = vld [vmem:[%s5 + $0x1e0] sm:$0xff]
  %v217 = vld [vmem:[%s5 + $0x1e8] sm:$0xff]
  %v218 = vld [vmem:[%s5 + $0x1f0] sm:$0xff]
  %v219 = vld [vmem:[%s5 + $0x1f8] sm:$0xff]
  %v220 = vld [vmem:[%s5 + $0x200] sm:$0xff]
  %v221 = vld [vmem:[%s5 + $0x208] sm:$0xff]
  %v222 = vld [vmem:[%s5 + $0x210] sm:$0xff]
  %v223 = vld [vmem:[%s5 + $0x218] sm:$0xff]
  %v224 = vld [vmem:[%s5 + $0x220] sm:$0xff]
  %v225 = vld [vmem:[%s5 + $0x228] sm:$0xff]
  %v226 = vld [vmem:[%s5 + $0x230] sm:$0xff]
  %v227 = vld [vmem:[%s5 + $0x238] sm:$0xff]
  %v228 = vld [vmem:[%s5 + $0x240] sm:$0xff]
  %v229 = vld [vmem:[%s5 + $0x248] sm:$0xff]
  %v230 = vld [vmem:[%s5 + $0x250] sm:$0xff]
  %v231 = vld [vmem:[%s5 + $0x258] sm:$0xff]
  %v232 = vld [vmem:[%s5 + $0x260] sm:$0xff]
  %v233 = vld [vmem:[%s5 + $0x268] sm:$0xff]
  %v234 = vld [vmem:[%s5 + $0x270] sm:$0xff]
  %v235 = vld [vmem:[%s5 + $0x278] sm:$0xff]
  %v236 = vld [vmem:[%s5 + $0x280] sm:$0xff]
  %v237 = vld [vmem:[%s5 + $0x288] sm:$0xff]
  %v238 = vld [vmem:[%s5 + $0x290] sm:$0xff]
  %v239 = vld [vmem:[%s5 + $0x298] sm:$0xff]
  %v240 = vld [vmem:[%s5 + $0x2a0] sm:$0xff]
  %v241 = vld [vmem:[%s5 + $0x2a8] sm:$0xff]
  %v242 = vld [vmem:[%s5 + $0x2b0] sm:$0xff]
  %v243 = vld [vmem:[%s5 + $0x2b8] sm:$0xff]
  %v244 = vld [vmem:[%s5 + $0x2c0] sm:$0xff]
  %v245 = vld [vmem:[%s5 + $0x2c8] sm:$0xff]
  %v246 = vld [vmem:[%s5 + $0x2d0] sm:$0xff]
  %v247 = vld [vmem:[%s5 + $0x2d8] sm:$0xff]
  %v248 = vld [vmem:[%s5 + $0x2e0] sm:$0xff]
  %v249 = vld [vmem:[%s5 + $0x2e8] sm:$0xff]
  %v250 = vld [vmem:[%s5 + $0x2f0] sm:$0xff]
  %v251 = vld [vmem:[%s5 + $0x2f8] sm:$0xff]
  %v252 = vld [vmem:[%s7] sm:$0xff]
  %v253 = vld [vmem:[%s7 + $0x8] sm:$0xff]
  %254 = vmatpush.msra.mxu0 %v171
  %255 = vmatpush.msra.mxu0 %v170
  %256 = vmatpush.msra.mxu0 %v169
  %257 = vmatpush.msra.mxu0 %v168
  %258 = vmatpush.msra.mxu0 %v167
  %259 = vmatpush.msra.mxu0 %v166
  %260 = vmatpush.msra.mxu0 %v165
  %261 = vmatpush.msra.mxu0 %v164
  %262 = vmatpush.msra.mxu0 %v163
  %263 = vmatpush.msra.mxu0 %v162
  %264 = vmatpush.msra.mxu0 %v161
  %265 = vmatpush.msra.mxu0 %v160
  %266 = vmatpush.msra.mxu0 %v159
  %267 = vmatpush.msra.mxu0 %v158
  %268 = vmatpush.msra.mxu0 %v157
  %269 = vmatpush.msra.mxu0 %v156
  %270 = vmatmul.f32.gmra.mxu0 %v144
  %v271 = vpop.f32.mrf.mxu0
  %v272 = vadd.f32 %v252, %v271
  %273 = vmatmul.f32.gmra.mxu0 %v150
  %v274 = vpop.f32.mrf.mxu0
  %v275 = vadd.f32 %v253, %v274
  %276 = vdwg.mxu0
  %277 = vmatpush.msra.mxu0 %v187
  %278 = vmatpush.msra.mxu0 %v186
  %279 = vmatpush.msra.mxu0 %v185
  %280 = vmatpush.msra.mxu0 %v184
  %281 = vmatpush.msra.mxu0 %v183
  %282 = vmatpush.msra.mxu0 %v182
  %283 = vmatpush.msra.mxu0 %v181
  %284 = vmatpush.msra.mxu0 %v180
  %285 = vmatpush.msra.mxu0 %v179
  %286 = vmatpush.msra.mxu0 %v178
  %287 = vmatpush.msra.mxu0 %v177
  %288 = vmatpush.msra.mxu0 %v176
  %289 = vmatpush.msra.mxu0 %v175
  %290 = vmatpush.msra.mxu0 %v174
  %291 = vmatpush.msra.mxu0 %v173
  %292 = vmatpush.msra.mxu0 %v172
  %293 = vmatmul.f32.gmra.mxu0 %v145
  %v294 = vpop.f32.mrf.mxu0
  %v295 = vadd.f32 %v272, %v294
  %296 = vmatmul.f32.gmra.mxu0 %v151
  %v297 = vpop.f32.mrf.mxu0
  %v298 = vadd.f32 %v275, %v297
  %299 = vdwg.mxu0
  %300 = vmatpush.msra.mxu0 %v203
  %301 = vmatpush.msra.mxu0 %v202
  %302 = vmatpush.msra.mxu0 %v201
  %303 = vmatpush.msra.mxu0 %v200
  %304 = vmatpush.msra.mxu0 %v199
  %305 = vmatpush.msra.mxu0 %v198
  %306 = vmatpush.msra.mxu0 %v197
  %307 = vmatpush.msra.mxu0 %v196
  %308 = vmatpush.msra.mxu0 %v195
  %309 = vmatpush.msra.mxu0 %v194
  %310 = vmatpush.msra.mxu0 %v193
  %311 = vmatpush.msra.mxu0 %v192
  %312 = vmatpush.msra.mxu0 %v191
  %313 = vmatpush.msra.mxu0 %v190
  %314 = vmatpush.msra.mxu0 %v189
  %315 = vmatpush.msra.mxu0 %v188
  %316 = vmatmul.f32.gmra.mxu0 %v146
  %v317 = vpop.f32.mrf.mxu0
  %v318 = vadd.f32 %v295, %v317
  %319 = vmatmul.f32.gmra.mxu0 %v152
  %v320 = vpop.f32.mrf.mxu0
  %v321 = vadd.f32 %v298, %v320
  %322 = vdwg.mxu0
  %323 = vmatpush.msra.mxu0 %v219
  %324 = vmatpush.msra.mxu0 %v218
  %325 = vmatpush.msra.mxu0 %v217
  %326 = vmatpush.msra.mxu0 %v216
  %327 = vmatpush.msra.mxu0 %v215
  %328 = vmatpush.msra.mxu0 %v214
  %329 = vmatpush.msra.mxu0 %v213
  %330 = vmatpush.msra.mxu0 %v212
  %331 = vmatpush.msra.mxu0 %v211
  %332 = vmatpush.msra.mxu0 %v210
  %333 = vmatpush.msra.mxu0 %v209
  %334 = vmatpush.msra.mxu0 %v208
  %335 = vmatpush.msra.mxu0 %v207
  %336 = vmatpush.msra.mxu0 %v206
  %337 = vmatpush.msra.mxu0 %v205
  %338 = vmatpush.msra.mxu0 %v204
  %339 = vmatmul.f32.gmra.mxu0 %v147
  %v340 = vpop.f32.mrf.mxu0
  %v341 = vadd.f32 %v318, %v340
  %342 = vmatmul.f32.gmra.mxu0 %v153
  %v343 = vpop.f32.mrf.mxu0
  %v344 = vadd.f32 %v321, %v343
  %345 = vdwg.mxu0
  %346 = vmatpush.msra.mxu0 %v235
  %347 = vmatpush.msra.mxu0 %v234
  %348 = vmatpush.msra.mxu0 %v233
  %349 = vmatpush.msra.mxu0 %v232
  %350 = vmatpush.msra.mxu0 %v231
  %351 = vmatpush.msra.mxu0 %v230
  %352 = vmatpush.msra.mxu0 %v229
  %353 = vmatpush.msra.mxu0 %v228
  %354 = vmatpush.msra.mxu0 %v227
  %355 = vmatpush.msra.mxu0 %v226
  %356 = vmatpush.msra.mxu0 %v225
  %357 = vmatpush.msra.mxu0 %v224
  %358 = vmatpush.msra.mxu0 %v223
  %359 = vmatpush.msra.mxu0 %v222
  %360 = vmatpush.msra.mxu0 %v221
  %361 = vmatpush.msra.mxu0 %v220
  %362 = vmatmul.f32.gmra.mxu0 %v148
  %v363 = vpop.f32.mrf.mxu0
  %v364 = vadd.f32 %v341, %v363
  %365 = vmatmul.f32.gmra.mxu0 %v154
  %v366 = vpop.f32.mrf.mxu0
  %v367 = vadd.f32 %v344, %v366
  %368 = vdwg.mxu0
  %369 = vmatpush.msra.mxu0 %v251
  %370 = vmatpush.msra.mxu0 %v250
  %371 = vmatpush.msra.mxu0 %v249
  %372 = vmatpush.msra.mxu0 %v248
  %373 = vmatpush.msra.mxu0 %v247
  %374 = vmatpush.msra.mxu0 %v246
  %375 = vmatpush.msra.mxu0 %v245
  %376 = vmatpush.msra.mxu0 %v244
  %377 = vmatpush.msra.mxu0 %v243
  %378 = vmatpush.msra.mxu0 %v242
  %379 = vmatpush.msra.mxu0 %v241
  %380 = vmatpush.msra.mxu0 %v240
  %381 = vmatpush.msra.mxu0 %v239
  %382 = vmatpush.msra.mxu0 %v238
  %383 = vmatpush.msra.mxu0 %v237
  %384 = vmatpush.msra.mxu0 %v236
  %385 = vmatmul.f32.gmra.mxu0 %v149
  %v386 = vpop.f32.mrf.mxu0
  %v387 = vadd.f32 %v364, %v386
  %388 = vmatmul.f32.gmra.mxu0 %v155
  %v389 = vpop.f32.mrf.mxu0
  %v390 = vadd.f32 %v367, %v389
  %391 = vdwg.mxu0
  %vm392 = vcmask 523264
  %v393 = vsel %vm392, %v387, 0.0
  %394 = vadd.xlane.f32.xlu0 %v393
  %v395 = vpop.xlane.xlu0 %394
  %v396 = vsel %vm392, %v390, 0.0
  %397 = vadd.xlane.f32.xlu0 %v396
  %v398 = vpop.xlane.xlu0 %397
  %v399 = vrcp.pop 64.0
  %v400 = vmul.f32 64.0, %v399
  %v401 = vsub.f32 1.0, %v400
  %v402 = vmul.f32 %v399, %v401
  %v403 = vadd.f32 %v399, %v402
  %vm404 = vweird.f32 %v399
  %v405 = vsel %vm404, %v399, %v403
  %v406 = vmul.f32 %v395, %v405
  %v407 = vmul.f32 %v398, %v405
  %v408 = vsub.f32 %v387, %v406
  %v409 = vsub.f32 %v390, %v407
  %v410 = vmul.f32 %v408, %v408
  %v411 = vmul.f32 %v409, %v409
  %v412 = vsel %vm392, %v410, 0.0
  %413 = vadd.xlane.f32.xlu0 %v412
  %v414 = vpop.xlane.xlu0 %413
  %v415 = vsel %vm392, %v411, 0.0
  %416 = vadd.xlane.f32.xlu0 %v415
  %v417 = vpop.xlane.xlu0 %416
  %v418 = vmul.f32 %v414, %v405
  %v419 = vmul.f32 %v417, %v405
  %v420 = vadd.f32 %v418, 1e-06
  %v421 = vadd.f32 %v419, 1e-06
  %v422 = vrsqrt.pop %v420
  %v423 = vmul.f32 %v422, %v420
  %v424 = vmul.f32 %v423, %v422
  %v425 = vmul.f32 0.5, %v424
  %v426 = vsub.f32 1.5, %v425
  %v427 = vmul.f32 %v422, %v426
  %vm428 = vweird.f32 %v420
  %vm429 = vweird.f32 %v422
  %vm430 = vmor %vm428, %vm429
  %v431 = vsel %vm430, %v422, %v427
  %v432 = vrsqrt.pop %v421
  %v433 = vmul.f32 %v432, %v421
  %v434 = vmul.f32 %v433, %v432
  %v435 = vmul.f32 0.5, %v434
  %v436 = vsub.f32 1.5, %v435
  %v437 = vmul.f32 %v432, %v436
  %vm438 = vweird.f32 %v421
  %vm439 = vweird.f32 %v432
  %vm440 = vmor %vm438, %vm439
  %v441 = vsel %vm440, %v432, %v437
  %v442 = vmul.f32 %v408, %v431
  %v443 = vmul.f32 %v409, %v441
  %v444 = vld [vmem:[%s9] sm:$0x1]
  %v446 = vperm.slane %v444, 0
  %v448 = vmul.f32 %v442, %v446
  %v449 = vmul.f32 %v443, %v446
  %v450 = vld [vmem:[%s11] sm:$0x1]
  %v452 = vperm.slane %v450, 0
  %v454 = vadd.f32 %v448, %v452
  %v455 = vadd.f32 %v449, %v452
  %v456 = vld [vmem:[%s13] sm:$0xff]
  %v457 = vld [vmem:[%s13 + $0x8] sm:$0xff]
  %v458 = vld [vmem:[%s13 + $0x10] sm:$0xff]
  %v459 = vld [vmem:[%s13 + $0x18] sm:$0xff]
  %v460 = vld [vmem:[%s13 + $0x20] sm:$0xff]
  %v461 = vld [vmem:[%s13 + $0x28] sm:$0xff]
  %v462 = vld [vmem:[%s13 + $0x30] sm:$0xff]
  %v463 = vld [vmem:[%s13 + $0x38] sm:$0xff]
  %v465 = vsel %vm392, %v454, 0
  %v468 = vsel %vm392, %v455, 0
  %470 = vmatpush.msra.mxu0 0.0
  %471 = vmatpush.msra.mxu0 0.0
  %472 = vmatpush.msra.mxu0 0.0
  %473 = vmatpush.msra.mxu0 0.0
  %474 = vmatpush.msra.mxu0 0.0
  %475 = vmatpush.msra.mxu0 0.0
  %476 = vmatpush.msra.mxu0 0.0
  %477 = vmatpush.msra.mxu0 0.0
  %478 = vmatpush.msra.mxu0 %v463
  %479 = vmatpush.msra.mxu0 %v462
  %480 = vmatpush.msra.mxu0 %v461
  %481 = vmatpush.msra.mxu0 %v460
  %482 = vmatpush.msra.mxu0 %v459
  %483 = vmatpush.msra.mxu0 %v458
  %484 = vmatpush.msra.mxu0 %v457
  %485 = vmatpush.msra.mxu0 %v456
  %486 = vmatmul.f32.gmra.mxu0 %v465
  %v487 = vpop.f32.mrf.mxu0
  %v488 = vadd.f32 0.0, %v487
  %489 = vmatmul.f32.gmra.mxu0 %v468
  %v490 = vpop.f32.mrf.mxu0
  %v491 = vadd.f32 0.0, %v490
  %492 = vdwg.mxu0
  %v493 = vld [vmem:[%s15] sm:$0xff]
  %v494 = vld [vmem:[%s15 + $0x8] sm:$0xff]
  %v495 = vld [vmem:[%s15 + $0x10] sm:$0xff]
  %v496 = vld [vmem:[%s15 + $0x18] sm:$0xff]
  %v497 = vld [vmem:[%s15 + $0x20] sm:$0xff]
  %v498 = vld [vmem:[%s15 + $0x28] sm:$0xff]
  %v499 = vld [vmem:[%s15 + $0x30] sm:$0xff]
  %v500 = vld [vmem:[%s15 + $0x38] sm:$0xff]
  %501 = vmatpush.msra.mxu0 0.0
  %502 = vmatpush.msra.mxu0 0.0
  %503 = vmatpush.msra.mxu0 0.0
  %504 = vmatpush.msra.mxu0 0.0
  %505 = vmatpush.msra.mxu0 0.0
  %506 = vmatpush.msra.mxu0 0.0
  %507 = vmatpush.msra.mxu0 0.0
  %508 = vmatpush.msra.mxu0 0.0
  %509 = vmatpush.msra.mxu0 %v500
  %510 = vmatpush.msra.mxu0 %v499
  %511 = vmatpush.msra.mxu0 %v498
  %512 = vmatpush.msra.mxu0 %v497
  %513 = vmatpush.msra.mxu0 %v496
  %514 = vmatpush.msra.mxu0 %v495
  %515 = vmatpush.msra.mxu0 %v494
  %516 = vmatpush.msra.mxu0 %v493
  %517 = vmatmul.f32.gmra.mxu0 %v465
  %v518 = vpop.f32.mrf.mxu0
  %v519 = vadd.f32 0.0, %v518
  %520 = vmatmul.f32.gmra.mxu0 %v468
  %v521 = vpop.f32.mrf.mxu0
  %v522 = vadd.f32 0.0, %v521
  %523 = vdwg.mxu0
  %v524 = vld [vmem:[%s17] sm:$0xff]
  %v525 = vld [vmem:[%s17 + $0x8] sm:$0xff]
  %v526 = vld [vmem:[%s17 + $0x10] sm:$0xff]
  %v527 = vld [vmem:[%s17 + $0x18] sm:$0xff]
  %v528 = vld [vmem:[%s17 + $0x20] sm:$0xff]
  %v529 = vld [vmem:[%s17 + $0x28] sm:$0xff]
  %v530 = vld [vmem:[%s17 + $0x30] sm:$0xff]
  %v531 = vld [vmem:[%s17 + $0x38] sm:$0xff]
  %532 = vmatpush.msra.mxu0 0.0
  %533 = vmatpush.msra.mxu0 0.0
  %534 = vmatpush.msra.mxu0 0.0
  %535 = vmatpush.msra.mxu0 0.0
  %536 = vmatpush.msra.mxu0 0.0
  %537 = vmatpush.msra.mxu0 0.0
  %538 = vmatpush.msra.mxu0 0.0
  %539 = vmatpush.msra.mxu0 0.0
  %540 = vmatpush.msra.mxu0 %v531
  %541 = vmatpush.msra.mxu0 %v530
  %542 = vmatpush.msra.mxu0 %v529
  %543 = vmatpush.msra.mxu0 %v528
  %544 = vmatpush.msra.mxu0 %v527
  %545 = vmatpush.msra.mxu0 %v526
  %546 = vmatpush.msra.mxu0 %v525
  %547 = vmatpush.msra.mxu0 %v524
  %548 = vmatmul.f32.gmra.mxu0 %v465
  %v549 = vpop.f32.mrf.mxu0
  %v550 = vadd.f32 0.0, %v549
  %551 = vmatmul.f32.gmra.mxu0 %v468
  %v552 = vpop.f32.mrf.mxu0
  %v553 = vadd.f32 0.0, %v552
  %554 = vdwg.mxu0
  %vm555 = vcmask 130048
  %v557 = vsel %vm555, %v488, 0
  %v560 = vsel %vm555, %v491, 0
  %v563 = vsel %vm555, %v519, 0
  %v566 = vsel %vm555, %v522, 0
  %568 = vmatpush.xpose.msra.mxu0 0.0
  %569 = vmatpush.xpose.msra.mxu0 0.0
  %570 = vmatpush.xpose.msra.mxu0 0.0
  %571 = vmatpush.xpose.msra.mxu0 0.0
  %572 = vmatpush.xpose.msra.mxu0 0.0
  %573 = vmatpush.xpose.msra.mxu0 0.0
  %574 = vmatpush.xpose.msra.mxu0 0.0
  %575 = vmatpush.xpose.msra.mxu0 0.0
  %576 = vmatpush.xpose.msra.mxu0 0.0
  %577 = vmatpush.xpose.msra.mxu0 0.0
  %578 = vmatpush.xpose.msra.mxu0 0.0
  %579 = vmatpush.xpose.msra.mxu0 0.0
  %580 = vmatpush.xpose.msra.mxu0 0.0
  %581 = vmatpush.xpose.msra.mxu0 0.0
  %582 = vmatpush.xpose.msra.mxu0 %v566
  %583 = vmatpush.xpose.msra.mxu0 %v563
  %584 = vmatmul.f32.gmra.mxu0 %v557
  %v585 = vpop.f32.mrf.mxu0
  %v586 = vadd.f32 0.0, %v585
  %587 = vmatmul.f32.gmra.mxu0 %v560
  %v588 = vpop.f32.mrf.mxu0
  %v589 = vadd.f32 0.0, %v588
  %590 = vdwg.mxu0
  %v591 = vmul.f32 %v586, 0.25
  %v592 = vmul.f32 %v589, 0.25
  %v593 = vld [vmem:[%s3] sm:$0xff]
  %v594 = vld [vmem:[%s3 + $0x8] sm:$0xff]
  %v595 = vadd.f32 %v591, %v593
  %v596 = vadd.f32 %v592, %v594
  %v597 = vsel %vm555, %v595, -inf
  %598 = vmax.xlane.f32.xlu0 %v597
  %v599 = vpop.xlane.xlu0 %598
  %v600 = vsel %vm555, %v596, -inf
  %601 = vmax.xlane.f32.xlu0 %v600
  %v602 = vpop.xlane.xlu0 %601
  %v603 = vsub.f32 %v595, %v599
  %v604 = vsub.f32 %v596, %v602
  %v605 = vmul.f32 %v603, 1.442695
  %v606 = vpow.pop %v605
  %v607 = vmul.f32 %v604, 1.442695
  %v608 = vpow.pop %v607
  %v609 = vsel %vm555, %v606, 0.0
  %610 = vadd.xlane.f32.xlu0 %v609
  %v611 = vpop.xlane.xlu0 %610
  %v612 = vsel %vm555, %v608, 0.0
  %613 = vadd.xlane.f32.xlu0 %v612
  %v614 = vpop.xlane.xlu0 %613
  %v615 = vrcp.pop %v611
  %v616 = vrcp.pop %v614
  %v617 = vmul.f32 %v606, %v615
  %v618 = vmul.f32 %v608, %v616
  %v620 = vsel %vm555, %v617, 0
  %v623 = vsel %vm555, %v618, 0
  %625 = vmatpush.msra.mxu0 0.0
  %626 = vmatpush.msra.mxu0 0.0
  %627 = vmatpush.msra.mxu0 0.0
  %628 = vmatpush.msra.mxu0 0.0
  %629 = vmatpush.msra.mxu0 0.0
  %630 = vmatpush.msra.mxu0 0.0
  %631 = vmatpush.msra.mxu0 0.0
  %632 = vmatpush.msra.mxu0 0.0
  %633 = vmatpush.msra.mxu0 0.0
  %634 = vmatpush.msra.mxu0 0.0
  %635 = vmatpush.msra.mxu0 0.0
  %636 = vmatpush.msra.mxu0 0.0
  %637 = vmatpush.msra.mxu0 0.0
  %638 = vmatpush.msra.mxu0 0.0
  %639 = vmatpush.msra.mxu0 %v553
  %640 = vmatpush.msra.mxu0 %v550
  %641 = vmatmul.f32.gmra.mxu0 %v620
  %v642 = vpop.f32.mrf.mxu0
  %v643 = vadd.f32 0.0, %v642
  %644 = vmatmul.f32.gmra.mxu0 %v623
  %v645 = vpop.f32.mrf.mxu0
  %v646 = vadd.f32 0.0, %v645
  %647 = vdwg.mxu0
  %v648 = vld [vmem:[%s19] sm:$0xff]
  %v649 = vld [vmem:[%s19 + $0x8] sm:$0xff]
  %s650 = scalar_lea.vmem %s13, 64
  %v651 = vld [vmem:[%s650] sm:$0xff]
  %v652 = vld [vmem:[%s650 + $0x8] sm:$0xff]
  %v653 = vld [vmem:[%s650 + $0x10] sm:$0xff]
  %v654 = vld [vmem:[%s650 + $0x18] sm:$0xff]
  %v655 = vld [vmem:[%s650 + $0x20] sm:$0xff]
  %v656 = vld [vmem:[%s650 + $0x28] sm:$0xff]
  %v657 = vld [vmem:[%s650 + $0x30] sm:$0xff]
  %v658 = vld [vmem:[%s650 + $0x38] sm:$0xff]
  %659 = vmatpush.msra.mxu0 0.0
  %660 = vmatpush.msra.mxu0 0.0
  %661 = vmatpush.msra.mxu0 0.0
  %662 = vmatpush.msra.mxu0 0.0
  %663 = vmatpush.msra.mxu0 0.0
  %664 = vmatpush.msra.mxu0 0.0
  %665 = vmatpush.msra.mxu0 0.0
  %666 = vmatpush.msra.mxu0 0.0
  %667 = vmatpush.msra.mxu0 %v658
  %668 = vmatpush.msra.mxu0 %v657
  %669 = vmatpush.msra.mxu0 %v656
  %670 = vmatpush.msra.mxu0 %v655
  %671 = vmatpush.msra.mxu0 %v654
  %672 = vmatpush.msra.mxu0 %v653
  %673 = vmatpush.msra.mxu0 %v652
  %674 = vmatpush.msra.mxu0 %v651
  %675 = vmatmul.f32.gmra.mxu0 %v465
  %v676 = vpop.f32.mrf.mxu0
  %v677 = vadd.f32 0.0, %v676
  %678 = vmatmul.f32.gmra.mxu0 %v468
  %v679 = vpop.f32.mrf.mxu0
  %v680 = vadd.f32 0.0, %v679
  %681 = vdwg.mxu0
  %s682 = scalar_lea.vmem %s15, 64
  %v683 = vld [vmem:[%s682] sm:$0xff]
  %v684 = vld [vmem:[%s682 + $0x8] sm:$0xff]
  %v685 = vld [vmem:[%s682 + $0x10] sm:$0xff]
  %v686 = vld [vmem:[%s682 + $0x18] sm:$0xff]
  %v687 = vld [vmem:[%s682 + $0x20] sm:$0xff]
  %v688 = vld [vmem:[%s682 + $0x28] sm:$0xff]
  %v689 = vld [vmem:[%s682 + $0x30] sm:$0xff]
  %v690 = vld [vmem:[%s682 + $0x38] sm:$0xff]
  %691 = vmatpush.msra.mxu0 0.0
  %692 = vmatpush.msra.mxu0 0.0
  %693 = vmatpush.msra.mxu0 0.0
  %694 = vmatpush.msra.mxu0 0.0
  %695 = vmatpush.msra.mxu0 0.0
  %696 = vmatpush.msra.mxu0 0.0
  %697 = vmatpush.msra.mxu0 0.0
  %698 = vmatpush.msra.mxu0 0.0
  %699 = vmatpush.msra.mxu0 %v690
  %700 = vmatpush.msra.mxu0 %v689
  %701 = vmatpush.msra.mxu0 %v688
  %702 = vmatpush.msra.mxu0 %v687
  %703 = vmatpush.msra.mxu0 %v686
  %704 = vmatpush.msra.mxu0 %v685
  %705 = vmatpush.msra.mxu0 %v684
  %706 = vmatpush.msra.mxu0 %v683
  %707 = vmatmul.f32.gmra.mxu0 %v465
  %v708 = vpop.f32.mrf.mxu0
  %v709 = vadd.f32 0.0, %v708
  %710 = vmatmul.f32.gmra.mxu0 %v468
  %v711 = vpop.f32.mrf.mxu0
  %v712 = vadd.f32 0.0, %v711
  %713 = vdwg.mxu0
  %s714 = scalar_lea.vmem %s17, 64
  %v715 = vld [vmem:[%s714] sm:$0xff]
  %v716 = vld [vmem:[%s714 + $0x8] sm:$0xff]
  %v717 = vld [vmem:[%s714 + $0x10] sm:$0xff]
  %v718 = vld [vmem:[%s714 + $0x18] sm:$0xff]
  %v719 = vld [vmem:[%s714 + $0x20] sm:$0xff]
  %v720 = vld [vmem:[%s714 + $0x28] sm:$0xff]
  %v721 = vld [vmem:[%s714 + $0x30] sm:$0xff]
  %v722 = vld [vmem:[%s714 + $0x38] sm:$0xff]
  %723 = vmatpush.msra.mxu0 0.0
  %724 = vmatpush.msra.mxu0 0.0
  %725 = vmatpush.msra.mxu0 0.0
  %726 = vmatpush.msra.mxu0 0.0
  %727 = vmatpush.msra.mxu0 0.0
  %728 = vmatpush.msra.mxu0 0.0
  %729 = vmatpush.msra.mxu0 0.0
  %730 = vmatpush.msra.mxu0 0.0
  %731 = vmatpush.msra.mxu0 %v722
  %732 = vmatpush.msra.mxu0 %v721
  %733 = vmatpush.msra.mxu0 %v720
  %734 = vmatpush.msra.mxu0 %v719
  %735 = vmatpush.msra.mxu0 %v718
  %736 = vmatpush.msra.mxu0 %v717
  %737 = vmatpush.msra.mxu0 %v716
  %738 = vmatpush.msra.mxu0 %v715
  %739 = vmatmul.f32.gmra.mxu0 %v465
  %v740 = vpop.f32.mrf.mxu0
  %v741 = vadd.f32 0.0, %v740
  %742 = vmatmul.f32.gmra.mxu0 %v468
  %v743 = vpop.f32.mrf.mxu0
  %v744 = vadd.f32 0.0, %v743
  %745 = vdwg.mxu0
  %v747 = vsel %vm555, %v677, 0
  %v750 = vsel %vm555, %v680, 0
  %v753 = vsel %vm555, %v709, 0
  %v756 = vsel %vm555, %v712, 0
  %758 = vmatpush.xpose.msra.mxu0 0.0
  %759 = vmatpush.xpose.msra.mxu0 0.0
  %760 = vmatpush.xpose.msra.mxu0 0.0
  %761 = vmatpush.xpose.msra.mxu0 0.0
  %762 = vmatpush.xpose.msra.mxu0 0.0
  %763 = vmatpush.xpose.msra.mxu0 0.0
  %764 = vmatpush.xpose.msra.mxu0 0.0
  %765 = vmatpush.xpose.msra.mxu0 0.0
  %766 = vmatpush.xpose.msra.mxu0 0.0
  %767 = vmatpush.xpose.msra.mxu0 0.0
  %768 = vmatpush.xpose.msra.mxu0 0.0
  %769 = vmatpush.xpose.msra.mxu0 0.0
  %770 = vmatpush.xpose.msra.mxu0 0.0
  %771 = vmatpush.xpose.msra.mxu0 0.0
  %772 = vmatpush.xpose.msra.mxu0 %v756
  %773 = vmatpush.xpose.msra.mxu0 %v753
  %774 = vmatmul.f32.gmra.mxu0 %v747
  %v775 = vpop.f32.mrf.mxu0
  %v776 = vadd.f32 0.0, %v775
  %777 = vmatmul.f32.gmra.mxu0 %v750
  %v778 = vpop.f32.mrf.mxu0
  %v779 = vadd.f32 0.0, %v778
  %780 = vdwg.mxu0
  %v781 = vmul.f32 %v776, 0.25
  %v782 = vmul.f32 %v779, 0.25
  %v783 = vadd.f32 %v781, %v593
  %v784 = vadd.f32 %v782, %v594
  %v785 = vsel %vm555, %v783, -inf
  %786 = vmax.xlane.f32.xlu0 %v785
  %v787 = vpop.xlane.xlu0 %786
  %v788 = vsel %vm555, %v784, -inf
  %789 = vmax.xlane.f32.xlu0 %v788
  %v790 = vpop.xlane.xlu0 %789
  %v791 = vsub.f32 %v783, %v787
  %v792 = vsub.f32 %v784, %v790
  %v793 = vmul.f32 %v791, 1.442695
  %v794 = vpow.pop %v793
  %v795 = vmul.f32 %v792, 1.442695
  %v796 = vpow.pop %v795
  %v797 = vsel %vm555, %v794, 0.0
  %798 = vadd.xlane.f32.xlu0 %v797
  %v799 = vpop.xlane.xlu0 %798
  %v800 = vsel %vm555, %v796, 0.0
  %801 = vadd.xlane.f32.xlu0 %v800
  %v802 = vpop.xlane.xlu0 %801
  %v803 = vrcp.pop %v799
  %v804 = vrcp.pop %v802
  %v805 = vmul.f32 %v794, %v803
  %v806 = vmul.f32 %v796, %v804
  %v808 = vsel %vm555, %v805, 0
  %v811 = vsel %vm555, %v806, 0
  %813 = vmatpush.msra.mxu0 0.0
  %814 = vmatpush.msra.mxu0 0.0
  %815 = vmatpush.msra.mxu0 0.0
  %816 = vmatpush.msra.mxu0 0.0
  %817 = vmatpush.msra.mxu0 0.0
  %818 = vmatpush.msra.mxu0 0.0
  %819 = vmatpush.msra.mxu0 0.0
  %820 = vmatpush.msra.mxu0 0.0
  %821 = vmatpush.msra.mxu0 0.0
  %822 = vmatpush.msra.mxu0 0.0
  %823 = vmatpush.msra.mxu0 0.0
  %824 = vmatpush.msra.mxu0 0.0
  %825 = vmatpush.msra.mxu0 0.0
  %826 = vmatpush.msra.mxu0 0.0
  %827 = vmatpush.msra.mxu0 %v744
  %828 = vmatpush.msra.mxu0 %v741
  %829 = vmatmul.f32.gmra.mxu0 %v808
  %v830 = vpop.f32.mrf.mxu0
  %v831 = vadd.f32 0.0, %v830
  %832 = vmatmul.f32.gmra.mxu0 %v811
  %v833 = vpop.f32.mrf.mxu0
  %v834 = vadd.f32 0.0, %v833
  %835 = vdwg.mxu0
  %s836 = scalar_lea.vmem %s19, 16
  %v837 = vld [vmem:[%s836] sm:$0xff]
  %v838 = vld [vmem:[%s836 + $0x8] sm:$0xff]
  %v840 = vsel %vm555, %v831, 0
  %v843 = vsel %vm555, %v834, 0
  %845 = vmatpush.msra.mxu0 0.0
  %846 = vmatpush.msra.mxu0 0.0
  %847 = vmatpush.msra.mxu0 0.0
  %848 = vmatpush.msra.mxu0 0.0
  %849 = vmatpush.msra.mxu0 0.0
  %850 = vmatpush.msra.mxu0 0.0
  %851 = vmatpush.msra.mxu0 0.0
  %852 = vmatpush.msra.mxu0 0.0
  %853 = vmatpush.msra.mxu0 0.0
  %854 = vmatpush.msra.mxu0 0.0
  %855 = vmatpush.msra.mxu0 0.0
  %856 = vmatpush.msra.mxu0 0.0
  %857 = vmatpush.msra.mxu0 0.0
  %858 = vmatpush.msra.mxu0 0.0
  %859 = vmatpush.msra.mxu0 %v838
  %860 = vmatpush.msra.mxu0 %v837
  %861 = vmatmul.f32.gmra.mxu0 %v840
  %v862 = vpop.f32.mrf.mxu0
  %v863 = vadd.f32 0.0, %v862
  %864 = vmatmul.f32.gmra.mxu0 %v843
  %v865 = vpop.f32.mrf.mxu0
  %v866 = vadd.f32 0.0, %v865
  %867 = vdwg.mxu0
  %v869 = vsel %vm555, %v643, 0
  %v872 = vsel %vm555, %v646, 0
  %874 = vmatpush.msra.mxu0 0.0
  %875 = vmatpush.msra.mxu0 0.0
  %876 = vmatpush.msra.mxu0 0.0
  %877 = vmatpush.msra.mxu0 0.0
  %878 = vmatpush.msra.mxu0 0.0
  %879 = vmatpush.msra.mxu0 0.0
  %880 = vmatpush.msra.mxu0 0.0
  %881 = vmatpush.msra.mxu0 0.0
  %882 = vmatpush.msra.mxu0 0.0
  %883 = vmatpush.msra.mxu0 0.0
  %884 = vmatpush.msra.mxu0 0.0
  %885 = vmatpush.msra.mxu0 0.0
  %886 = vmatpush.msra.mxu0 0.0
  %887 = vmatpush.msra.mxu0 0.0
  %888 = vmatpush.msra.mxu0 %v649
  %889 = vmatpush.msra.mxu0 %v648
  %890 = vmatmul.f32.gmra.mxu0 %v869
  %v891 = vpop.f32.mrf.mxu0
  %v892 = vadd.f32 %v863, %v891
  %893 = vmatmul.f32.gmra.mxu0 %v872
  %v894 = vpop.f32.mrf.mxu0
  %v895 = vadd.f32 %v866, %v894
  %896 = vdwg.mxu0
  %s897 = scalar_lea.vmem %s13, 128
  %v898 = vld [vmem:[%s897] sm:$0xff]
  %v899 = vld [vmem:[%s897 + $0x8] sm:$0xff]
  %v900 = vld [vmem:[%s897 + $0x10] sm:$0xff]
  %v901 = vld [vmem:[%s897 + $0x18] sm:$0xff]
  %v902 = vld [vmem:[%s897 + $0x20] sm:$0xff]
  %v903 = vld [vmem:[%s897 + $0x28] sm:$0xff]
  %v904 = vld [vmem:[%s897 + $0x30] sm:$0xff]
  %v905 = vld [vmem:[%s897 + $0x38] sm:$0xff]
  %906 = vmatpush.msra.mxu0 0.0
  %907 = vmatpush.msra.mxu0 0.0
  %908 = vmatpush.msra.mxu0 0.0
  %909 = vmatpush.msra.mxu0 0.0
  %910 = vmatpush.msra.mxu0 0.0
  %911 = vmatpush.msra.mxu0 0.0
  %912 = vmatpush.msra.mxu0 0.0
  %913 = vmatpush.msra.mxu0 0.0
  %914 = vmatpush.msra.mxu0 %v905
  %915 = vmatpush.msra.mxu0 %v904
  %916 = vmatpush.msra.mxu0 %v903
  %917 = vmatpush.msra.mxu0 %v902
  %918 = vmatpush.msra.mxu0 %v901
  %919 = vmatpush.msra.mxu0 %v900
  %920 = vmatpush.msra.mxu0 %v899
  %921 = vmatpush.msra.mxu0 %v898
  %922 = vmatmul.f32.gmra.mxu0 %v465
  %v923 = vpop.f32.mrf.mxu0
  %v924 = vadd.f32 0.0, %v923
  %925 = vmatmul.f32.gmra.mxu0 %v468
  %v926 = vpop.f32.mrf.mxu0
  %v927 = vadd.f32 0.0, %v926
  %928 = vdwg.mxu0
  %s929 = scalar_lea.vmem %s15, 128
  %v930 = vld [vmem:[%s929] sm:$0xff]
  %v931 = vld [vmem:[%s929 + $0x8] sm:$0xff]
  %v932 = vld [vmem:[%s929 + $0x10] sm:$0xff]
  %v933 = vld [vmem:[%s929 + $0x18] sm:$0xff]
  %v934 = vld [vmem:[%s929 + $0x20] sm:$0xff]
  %v935 = vld [vmem:[%s929 + $0x28] sm:$0xff]
  %v936 = vld [vmem:[%s929 + $0x30] sm:$0xff]
  %v937 = vld [vmem:[%s929 + $0x38] sm:$0xff]
  %938 = vmatpush.msra.mxu0 0.0
  %939 = vmatpush.msra.mxu0 0.0
  %940 = vmatpush.msra.mxu0 0.0
  %941 = vmatpush.msra.mxu0 0.0
  %942 = vmatpush.msra.mxu0 0.0
  %943 = vmatpush.msra.mxu0 0.0
  %944 = vmatpush.msra.mxu0 0.0
  %945 = vmatpush.msra.mxu0 0.0
  %946 = vmatpush.msra.mxu0 %v937
  %947 = vmatpush.msra.mxu0 %v936
  %948 = vmatpush.msra.mxu0 %v935
  %949 = vmatpush.msra.mxu0 %v934
  %950 = vmatpush.msra.mxu0 %v933
  %951 = vmatpush.msra.mxu0 %v932
  %952 = vmatpush.msra.mxu0 %v931
  %953 = vmatpush.msra.mxu0 %v930
  %954 = vmatmul.f32.gmra.mxu0 %v465
  %v955 = vpop.f32.mrf.mxu0
  %v956 = vadd.f32 0.0, %v955
  %957 = vmatmul.f32.gmra.mxu0 %v468
  %v958 = vpop.f32.mrf.mxu0
  %v959 = vadd.f32 0.0, %v958
  %960 = vdwg.mxu0
  %s961 = scalar_lea.vmem %s17, 128
  %v962 = vld [vmem:[%s961] sm:$0xff]
  %v963 = vld [vmem:[%s961 + $0x8] sm:$0xff]
  %v964 = vld [vmem:[%s961 + $0x10] sm:$0xff]
  %v965 = vld [vmem:[%s961 + $0x18] sm:$0xff]
  %v966 = vld [vmem:[%s961 + $0x20] sm:$0xff]
  %v967 = vld [vmem:[%s961 + $0x28] sm:$0xff]
  %v968 = vld [vmem:[%s961 + $0x30] sm:$0xff]
  %v969 = vld [vmem:[%s961 + $0x38] sm:$0xff]
  %970 = vmatpush.msra.mxu0 0.0
  %971 = vmatpush.msra.mxu0 0.0
  %972 = vmatpush.msra.mxu0 0.0
  %973 = vmatpush.msra.mxu0 0.0
  %974 = vmatpush.msra.mxu0 0.0
  %975 = vmatpush.msra.mxu0 0.0
  %976 = vmatpush.msra.mxu0 0.0
  %977 = vmatpush.msra.mxu0 0.0
  %978 = vmatpush.msra.mxu0 %v969
  %979 = vmatpush.msra.mxu0 %v968
  %980 = vmatpush.msra.mxu0 %v967
  %981 = vmatpush.msra.mxu0 %v966
  %982 = vmatpush.msra.mxu0 %v965
  %983 = vmatpush.msra.mxu0 %v964
  %984 = vmatpush.msra.mxu0 %v963
  %985 = vmatpush.msra.mxu0 %v962
  %986 = vmatmul.f32.gmra.mxu0 %v465
  %v987 = vpop.f32.mrf.mxu0
  %v988 = vadd.f32 0.0, %v987
  %989 = vmatmul.f32.gmra.mxu0 %v468
  %v990 = vpop.f32.mrf.mxu0
  %v991 = vadd.f32 0.0, %v990
  %992 = vdwg.mxu0
  %v994 = vsel %vm555, %v924, 0
  %v997 = vsel %vm555, %v927, 0
  %v1000 = vsel %vm555, %v956, 0
  %v1003 = vsel %vm555, %v959, 0
  %1005 = vmatpush.xpose.msra.mxu0 0.0
  %1006 = vmatpush.xpose.msra.mxu0 0.0
  %1007 = vmatpush.xpose.msra.mxu0 0.0
  %1008 = vmatpush.xpose.msra.mxu0 0.0
  %1009 = vmatpush.xpose.msra.mxu0 0.0
  %1010 = vmatpush.xpose.msra.mxu0 0.0
  %1011 = vmatpush.xpose.msra.mxu0 0.0
  %1012 = vmatpush.xpose.msra.mxu0 0.0
  %1013 = vmatpush.xpose.msra.mxu0 0.0
  %1014 = vmatpush.xpose.msra.mxu0 0.0
  %1015 = vmatpush.xpose.msra.mxu0 0.0
  %1016 = vmatpush.xpose.msra.mxu0 0.0
  %1017 = vmatpush.xpose.msra.mxu0 0.0
  %1018 = vmatpush.xpose.msra.mxu0 0.0
  %1019 = vmatpush.xpose.msra.mxu0 %v1003
  %1020 = vmatpush.xpose.msra.mxu0 %v1000
  %1021 = vmatmul.f32.gmra.mxu0 %v994
  %v1022 = vpop.f32.mrf.mxu0
  %v1023 = vadd.f32 0.0, %v1022
  %1024 = vmatmul.f32.gmra.mxu0 %v997
  %v1025 = vpop.f32.mrf.mxu0
  %v1026 = vadd.f32 0.0, %v1025
  %1027 = vdwg.mxu0
  %v1028 = vmul.f32 %v1023, 0.25
  %v1029 = vmul.f32 %v1026, 0.25
  %v1030 = vadd.f32 %v1028, %v593
  %v1031 = vadd.f32 %v1029, %v594
  %v1032 = vsel %vm555, %v1030, -inf
  %1033 = vmax.xlane.f32.xlu0 %v1032
  %v1034 = vpop.xlane.xlu0 %1033
  %v1035 = vsel %vm555, %v1031, -inf
  %1036 = vmax.xlane.f32.xlu0 %v1035
  %v1037 = vpop.xlane.xlu0 %1036
  %v1038 = vsub.f32 %v1030, %v1034
  %v1039 = vsub.f32 %v1031, %v1037
  %v1040 = vmul.f32 %v1038, 1.442695
  %v1041 = vpow.pop %v1040
  %v1042 = vmul.f32 %v1039, 1.442695
  %v1043 = vpow.pop %v1042
  %v1044 = vsel %vm555, %v1041, 0.0
  %1045 = vadd.xlane.f32.xlu0 %v1044
  %v1046 = vpop.xlane.xlu0 %1045
  %v1047 = vsel %vm555, %v1043, 0.0
  %1048 = vadd.xlane.f32.xlu0 %v1047
  %v1049 = vpop.xlane.xlu0 %1048
  %v1050 = vrcp.pop %v1046
  %v1051 = vrcp.pop %v1049
  %v1052 = vmul.f32 %v1041, %v1050
  %v1053 = vmul.f32 %v1043, %v1051
  %v1055 = vsel %vm555, %v1052, 0
  %v1058 = vsel %vm555, %v1053, 0
  %1060 = vmatpush.msra.mxu0 0.0
  %1061 = vmatpush.msra.mxu0 0.0
  %1062 = vmatpush.msra.mxu0 0.0
  %1063 = vmatpush.msra.mxu0 0.0
  %1064 = vmatpush.msra.mxu0 0.0
  %1065 = vmatpush.msra.mxu0 0.0
  %1066 = vmatpush.msra.mxu0 0.0
  %1067 = vmatpush.msra.mxu0 0.0
  %1068 = vmatpush.msra.mxu0 0.0
  %1069 = vmatpush.msra.mxu0 0.0
  %1070 = vmatpush.msra.mxu0 0.0
  %1071 = vmatpush.msra.mxu0 0.0
  %1072 = vmatpush.msra.mxu0 0.0
  %1073 = vmatpush.msra.mxu0 0.0
  %1074 = vmatpush.msra.mxu0 %v991
  %1075 = vmatpush.msra.mxu0 %v988
  %1076 = vmatmul.f32.gmra.mxu0 %v1055
  %v1077 = vpop.f32.mrf.mxu0
  %v1078 = vadd.f32 0.0, %v1077
  %1079 = vmatmul.f32.gmra.mxu0 %v1058
  %v1080 = vpop.f32.mrf.mxu0
  %v1081 = vadd.f32 0.0, %v1080
  %1082 = vdwg.mxu0
  %s1083 = scalar_lea.vmem %s19, 32
  %v1084 = vld [vmem:[%s1083] sm:$0xff]
  %v1085 = vld [vmem:[%s1083 + $0x8] sm:$0xff]
  %v1087 = vsel %vm555, %v1078, 0
  %v1090 = vsel %vm555, %v1081, 0
  %1092 = vmatpush.msra.mxu0 0.0
  %1093 = vmatpush.msra.mxu0 0.0
  %1094 = vmatpush.msra.mxu0 0.0
  %1095 = vmatpush.msra.mxu0 0.0
  %1096 = vmatpush.msra.mxu0 0.0
  %1097 = vmatpush.msra.mxu0 0.0
  %1098 = vmatpush.msra.mxu0 0.0
  %1099 = vmatpush.msra.mxu0 0.0
  %1100 = vmatpush.msra.mxu0 0.0
  %1101 = vmatpush.msra.mxu0 0.0
  %1102 = vmatpush.msra.mxu0 0.0
  %1103 = vmatpush.msra.mxu0 0.0
  %1104 = vmatpush.msra.mxu0 0.0
  %1105 = vmatpush.msra.mxu0 0.0
  %1106 = vmatpush.msra.mxu0 %v1085
  %1107 = vmatpush.msra.mxu0 %v1084
  %1108 = vmatmul.f32.gmra.mxu0 %v1087
  %v1109 = vpop.f32.mrf.mxu0
  %v1110 = vadd.f32 0.0, %v1109
  %1111 = vmatmul.f32.gmra.mxu0 %v1090
  %v1112 = vpop.f32.mrf.mxu0
  %v1113 = vadd.f32 0.0, %v1112
  %1114 = vdwg.mxu0
  %v1115 = vadd.f32 %v892, %v1110
  %v1116 = vadd.f32 %v895, %v1113
  %s1117 = scalar_lea.vmem %s13, 192
  %v1118 = vld [vmem:[%s1117] sm:$0xff]
  %v1119 = vld [vmem:[%s1117 + $0x8] sm:$0xff]
  %v1120 = vld [vmem:[%s1117 + $0x10] sm:$0xff]
  %v1121 = vld [vmem:[%s1117 + $0x18] sm:$0xff]
  %v1122 = vld [vmem:[%s1117 + $0x20] sm:$0xff]
  %v1123 = vld [vmem:[%s1117 + $0x28] sm:$0xff]
  %v1124 = vld [vmem:[%s1117 + $0x30] sm:$0xff]
  %v1125 = vld [vmem:[%s1117 + $0x38] sm:$0xff]
  %1126 = vmatpush.msra.mxu0 0.0
  %1127 = vmatpush.msra.mxu0 0.0
  %1128 = vmatpush.msra.mxu0 0.0
  %1129 = vmatpush.msra.mxu0 0.0
  %1130 = vmatpush.msra.mxu0 0.0
  %1131 = vmatpush.msra.mxu0 0.0
  %1132 = vmatpush.msra.mxu0 0.0
  %1133 = vmatpush.msra.mxu0 0.0
  %1134 = vmatpush.msra.mxu0 %v1125
  %1135 = vmatpush.msra.mxu0 %v1124
  %1136 = vmatpush.msra.mxu0 %v1123
  %1137 = vmatpush.msra.mxu0 %v1122
  %1138 = vmatpush.msra.mxu0 %v1121
  %1139 = vmatpush.msra.mxu0 %v1120
  %1140 = vmatpush.msra.mxu0 %v1119
  %1141 = vmatpush.msra.mxu0 %v1118
  %1142 = vmatmul.f32.gmra.mxu0 %v465
  %v1143 = vpop.f32.mrf.mxu0
  %v1144 = vadd.f32 0.0, %v1143
  %1145 = vmatmul.f32.gmra.mxu0 %v468
  %v1146 = vpop.f32.mrf.mxu0
  %v1147 = vadd.f32 0.0, %v1146
  %1148 = vdwg.mxu0
  %s1149 = scalar_lea.vmem %s15, 192
  %v1150 = vld [vmem:[%s1149] sm:$0xff]
  %v1151 = vld [vmem:[%s1149 + $0x8] sm:$0xff]
  %v1152 = vld [vmem:[%s1149 + $0x10] sm:$0xff]
  %v1153 = vld [vmem:[%s1149 + $0x18] sm:$0xff]
  %v1154 = vld [vmem:[%s1149 + $0x20] sm:$0xff]
  %v1155 = vld [vmem:[%s1149 + $0x28] sm:$0xff]
  %v1156 = vld [vmem:[%s1149 + $0x30] sm:$0xff]
  %v1157 = vld [vmem:[%s1149 + $0x38] sm:$0xff]
  %1158 = vmatpush.msra.mxu0 0.0
  %1159 = vmatpush.msra.mxu0 0.0
  %1160 = vmatpush.msra.mxu0 0.0
  %1161 = vmatpush.msra.mxu0 0.0
  %1162 = vmatpush.msra.mxu0 0.0
  %1163 = vmatpush.msra.mxu0 0.0
  %1164 = vmatpush.msra.mxu0 0.0
  %1165 = vmatpush.msra.mxu0 0.0
  %1166 = vmatpush.msra.mxu0 %v1157
  %1167 = vmatpush.msra.mxu0 %v1156
  %1168 = vmatpush.msra.mxu0 %v1155
  %1169 = vmatpush.msra.mxu0 %v1154
  %1170 = vmatpush.msra.mxu0 %v1153
  %1171 = vmatpush.msra.mxu0 %v1152
  %1172 = vmatpush.msra.mxu0 %v1151
  %1173 = vmatpush.msra.mxu0 %v1150
  %1174 = vmatmul.f32.gmra.mxu0 %v465
  %v1175 = vpop.f32.mrf.mxu0
  %v1176 = vadd.f32 0.0, %v1175
  %1177 = vmatmul.f32.gmra.mxu0 %v468
  %v1178 = vpop.f32.mrf.mxu0
  %v1179 = vadd.f32 0.0, %v1178
  %1180 = vdwg.mxu0
  %s1181 = scalar_lea.vmem %s17, 192
  %v1182 = vld [vmem:[%s1181] sm:$0xff]
  %v1183 = vld [vmem:[%s1181 + $0x8] sm:$0xff]
  %v1184 = vld [vmem:[%s1181 + $0x10] sm:$0xff]
  %v1185 = vld [vmem:[%s1181 + $0x18] sm:$0xff]
  %v1186 = vld [vmem:[%s1181 + $0x20] sm:$0xff]
  %v1187 = vld [vmem:[%s1181 + $0x28] sm:$0xff]
  %v1188 = vld [vmem:[%s1181 + $0x30] sm:$0xff]
  %v1189 = vld [vmem:[%s1181 + $0x38] sm:$0xff]
  %1190 = vmatpush.msra.mxu0 0.0
  %1191 = vmatpush.msra.mxu0 0.0
  %1192 = vmatpush.msra.mxu0 0.0
  %1193 = vmatpush.msra.mxu0 0.0
  %1194 = vmatpush.msra.mxu0 0.0
  %1195 = vmatpush.msra.mxu0 0.0
  %1196 = vmatpush.msra.mxu0 0.0
  %1197 = vmatpush.msra.mxu0 0.0
  %1198 = vmatpush.msra.mxu0 %v1189
  %1199 = vmatpush.msra.mxu0 %v1188
  %1200 = vmatpush.msra.mxu0 %v1187
  %1201 = vmatpush.msra.mxu0 %v1186
  %1202 = vmatpush.msra.mxu0 %v1185
  %1203 = vmatpush.msra.mxu0 %v1184
  %1204 = vmatpush.msra.mxu0 %v1183
  %1205 = vmatpush.msra.mxu0 %v1182
  %1206 = vmatmul.f32.gmra.mxu0 %v465
  %v1207 = vpop.f32.mrf.mxu0
  %v1208 = vadd.f32 0.0, %v1207
  %1209 = vmatmul.f32.gmra.mxu0 %v468
  %v1210 = vpop.f32.mrf.mxu0
  %v1211 = vadd.f32 0.0, %v1210
  %1212 = vdwg.mxu0
  %v1214 = vsel %vm555, %v1144, 0
  %v1217 = vsel %vm555, %v1147, 0
  %v1220 = vsel %vm555, %v1176, 0
  %v1223 = vsel %vm555, %v1179, 0
  %1225 = vmatpush.xpose.msra.mxu0 0.0
  %1226 = vmatpush.xpose.msra.mxu0 0.0
  %1227 = vmatpush.xpose.msra.mxu0 0.0
  %1228 = vmatpush.xpose.msra.mxu0 0.0
  %1229 = vmatpush.xpose.msra.mxu0 0.0
  %1230 = vmatpush.xpose.msra.mxu0 0.0
  %1231 = vmatpush.xpose.msra.mxu0 0.0
  %1232 = vmatpush.xpose.msra.mxu0 0.0
  %1233 = vmatpush.xpose.msra.mxu0 0.0
  %1234 = vmatpush.xpose.msra.mxu0 0.0
  %1235 = vmatpush.xpose.msra.mxu0 0.0
  %1236 = vmatpush.xpose.msra.mxu0 0.0
  %1237 = vmatpush.xpose.msra.mxu0 0.0
  %1238 = vmatpush.xpose.msra.mxu0 0.0
  %1239 = vmatpush.xpose.msra.mxu0 %v1223
  %1240 = vmatpush.xpose.msra.mxu0 %v1220
  %1241 = vmatmul.f32.gmra.mxu0 %v1214
  %v1242 = vpop.f32.mrf.mxu0
  %v1243 = vadd.f32 0.0, %v1242
  %1244 = vmatmul.f32.gmra.mxu0 %v1217
  %v1245 = vpop.f32.mrf.mxu0
  %v1246 = vadd.f32 0.0, %v1245
  %1247 = vdwg.mxu0
  %v1248 = vmul.f32 %v1243, 0.25
  %v1249 = vmul.f32 %v1246, 0.25
  %v1250 = vadd.f32 %v1248, %v593
  %v1251 = vadd.f32 %v1249, %v594
  %v1252 = vsel %vm555, %v1250, -inf
  %1253 = vmax.xlane.f32.xlu0 %v1252
  %v1254 = vpop.xlane.xlu0 %1253
  %v1255 = vsel %vm555, %v1251, -inf
  %1256 = vmax.xlane.f32.xlu0 %v1255
  %v1257 = vpop.xlane.xlu0 %1256
  %v1258 = vsub.f32 %v1250, %v1254
  %v1259 = vsub.f32 %v1251, %v1257
  %v1260 = vmul.f32 %v1258, 1.442695
  %v1261 = vpow.pop %v1260
  %v1262 = vmul.f32 %v1259, 1.442695
  %v1263 = vpow.pop %v1262
  %v1264 = vsel %vm555, %v1261, 0.0
  %1265 = vadd.xlane.f32.xlu0 %v1264
  %v1266 = vpop.xlane.xlu0 %1265
  %v1267 = vsel %vm555, %v1263, 0.0
  %1268 = vadd.xlane.f32.xlu0 %v1267
  %v1269 = vpop.xlane.xlu0 %1268
  %v1270 = vrcp.pop %v1266
  %v1271 = vrcp.pop %v1269
  %v1272 = vmul.f32 %v1261, %v1270
  %v1273 = vmul.f32 %v1263, %v1271
  %v1275 = vsel %vm555, %v1272, 0
  %v1278 = vsel %vm555, %v1273, 0
  %1280 = vmatpush.msra.mxu0 0.0
  %1281 = vmatpush.msra.mxu0 0.0
  %1282 = vmatpush.msra.mxu0 0.0
  %1283 = vmatpush.msra.mxu0 0.0
  %1284 = vmatpush.msra.mxu0 0.0
  %1285 = vmatpush.msra.mxu0 0.0
  %1286 = vmatpush.msra.mxu0 0.0
  %1287 = vmatpush.msra.mxu0 0.0
  %1288 = vmatpush.msra.mxu0 0.0
  %1289 = vmatpush.msra.mxu0 0.0
  %1290 = vmatpush.msra.mxu0 0.0
  %1291 = vmatpush.msra.mxu0 0.0
  %1292 = vmatpush.msra.mxu0 0.0
  %1293 = vmatpush.msra.mxu0 0.0
  %1294 = vmatpush.msra.mxu0 %v1211
  %1295 = vmatpush.msra.mxu0 %v1208
  %1296 = vmatmul.f32.gmra.mxu0 %v1275
  %v1297 = vpop.f32.mrf.mxu0
  %v1298 = vadd.f32 0.0, %v1297
  %1299 = vmatmul.f32.gmra.mxu0 %v1278
  %v1300 = vpop.f32.mrf.mxu0
  %v1301 = vadd.f32 0.0, %v1300
  %1302 = vdwg.mxu0
  %s1303 = scalar_lea.vmem %s19, 48
  %v1304 = vld [vmem:[%s1303] sm:$0xff]
  %v1305 = vld [vmem:[%s1303 + $0x8] sm:$0xff]
  %v1307 = vsel %vm555, %v1298, 0
  %v1310 = vsel %vm555, %v1301, 0
  %1312 = vmatpush.msra.mxu0 0.0
  %1313 = vmatpush.msra.mxu0 0.0
  %1314 = vmatpush.msra.mxu0 0.0
  %1315 = vmatpush.msra.mxu0 0.0
  %1316 = vmatpush.msra.mxu0 0.0
  %1317 = vmatpush.msra.mxu0 0.0
  %1318 = vmatpush.msra.mxu0 0.0
  %1319 = vmatpush.msra.mxu0 0.0
  %1320 = vmatpush.msra.mxu0 0.0
  %1321 = vmatpush.msra.mxu0 0.0
  %1322 = vmatpush.msra.mxu0 0.0
  %1323 = vmatpush.msra.mxu0 0.0
  %1324 = vmatpush.msra.mxu0 0.0
  %1325 = vmatpush.msra.mxu0 0.0
  %1326 = vmatpush.msra.mxu0 %v1305
  %1327 = vmatpush.msra.mxu0 %v1304
  %1328 = vmatmul.f32.gmra.mxu0 %v1307
  %v1329 = vpop.f32.mrf.mxu0
  %v1330 = vadd.f32 0.0, %v1329
  %1331 = vmatmul.f32.gmra.mxu0 %v1310
  %v1332 = vpop.f32.mrf.mxu0
  %v1333 = vadd.f32 0.0, %v1332
  %1334 = vdwg.mxu0
  %v1335 = vadd.f32 %v1115, %v1330
  %v1336 = vadd.f32 %v1116, %v1333
  %v1337 = vadd.f32 %v387, %v1335
  %v1338 = vadd.f32 %v390, %v1336
  %v1339 = vld [vmem:[%s21] sm:$0x1]
  %v1341 = vperm.slane %v1339, 0
  %v1343 = vadd.f32 %v1337, %v1341
  %v1344 = vadd.f32 %v1338, %v1341
  %v1345 = vsel %vm392, %v1343, 0.0
  %1346 = vadd.xlane.f32.xlu0 %v1345
  %v1347 = vpop.xlane.xlu0 %1346
  %v1348 = vsel %vm392, %v1344, 0.0
  %1349 = vadd.xlane.f32.xlu0 %v1348
  %v1350 = vpop.xlane.xlu0 %1349
  %v1351 = vmul.f32 %v1347, %v405
  %v1352 = vmul.f32 %v1350, %v405
  %v1353 = vsub.f32 %v1343, %v1351
  %v1354 = vsub.f32 %v1344, %v1352
  %v1355 = vmul.f32 %v1353, %v1353
  %v1356 = vmul.f32 %v1354, %v1354
  %v1357 = vsel %vm392, %v1355, 0.0
  %1358 = vadd.xlane.f32.xlu0 %v1357
  %v1359 = vpop.xlane.xlu0 %1358
  %v1360 = vsel %vm392, %v1356, 0.0
  %1361 = vadd.xlane.f32.xlu0 %v1360
  %v1362 = vpop.xlane.xlu0 %1361
  %v1363 = vmul.f32 %v1359, %v405
  %v1364 = vmul.f32 %v1362, %v405
  %v1365 = vadd.f32 %v1363, 1e-06
  %v1366 = vadd.f32 %v1364, 1e-06
  %v1367 = vrsqrt.pop %v1365
  %v1368 = vmul.f32 %v1367, %v1365
  %v1369 = vmul.f32 %v1368, %v1367
  %v1370 = vmul.f32 0.5, %v1369
  %v1371 = vsub.f32 1.5, %v1370
  %v1372 = vmul.f32 %v1367, %v1371
  %vm1373 = vweird.f32 %v1365
  %vm1374 = vweird.f32 %v1367
  %vm1375 = vmor %vm1373, %vm1374
  %v1376 = vsel %vm1375, %v1367, %v1372
  %v1377 = vrsqrt.pop %v1366
  %v1378 = vmul.f32 %v1377, %v1366
  %v1379 = vmul.f32 %v1378, %v1377
  %v1380 = vmul.f32 0.5, %v1379
  %v1381 = vsub.f32 1.5, %v1380
  %v1382 = vmul.f32 %v1377, %v1381
  %vm1383 = vweird.f32 %v1366
  %vm1384 = vweird.f32 %v1377
  %vm1385 = vmor %vm1383, %vm1384
  %v1386 = vsel %vm1385, %v1377, %v1382
  %v1387 = vmul.f32 %v1353, %v1376
  %v1388 = vmul.f32 %v1354, %v1386
  %v1389 = vld [vmem:[%s23] sm:$0x1]
  %v1391 = vperm.slane %v1389, 0
  %v1393 = vmul.f32 %v1387, %v1391
  %v1394 = vmul.f32 %v1388, %v1391
  %v1395 = vld [vmem:[%s25] sm:$0x1]
  %v1397 = vperm.slane %v1395, 0
  %v1399 = vadd.f32 %v1393, %v1397
  %v1400 = vadd.f32 %v1394, %v1397
  %v1401 = vld [vmem:[%s27] sm:$0xff]
  %v1402 = vld [vmem:[%s27 + $0x8] sm:$0xff]
  %v1403 = vld [vmem:[%s27 + $0x10] sm:$0xff]
  %v1404 = vld [vmem:[%s27 + $0x18] sm:$0xff]
  %v1405 = vld [vmem:[%s27 + $0x20] sm:$0xff]
  %v1406 = vld [vmem:[%s27 + $0x28] sm:$0xff]
  %v1407 = vld [vmem:[%s27 + $0x30] sm:$0xff]
  %v1408 = vld [vmem:[%s27 + $0x38] sm:$0xff]
  %v1409 = vld [vmem:[%s27 + $0x40] sm:$0xff]
  %v1410 = vld [vmem:[%s27 + $0x48] sm:$0xff]
  %v1411 = vld [vmem:[%s27 + $0x50] sm:$0xff]
  %v1412 = vld [vmem:[%s27 + $0x58] sm:$0xff]
  %v1413 = vld [vmem:[%s27 + $0x60] sm:$0xff]
  %v1414 = vld [vmem:[%s27 + $0x68] sm:$0xff]
  %v1415 = vld [vmem:[%s27 + $0x70] sm:$0xff]
  %v1416 = vld [vmem:[%s27 + $0x78] sm:$0xff]
  %v1417 = vld [vmem:[%s29] sm:$0x3]
  %v1419 = vperm.slane %v1417, 0
  %v1420 = vperm.slane %v1417, 1
  %v1424 = vsel %vm392, %v1399, 0
  %v1427 = vsel %vm392, %v1400, 0
  %1429 = vmatpush.msra.mxu0 0.0
  %1430 = vmatpush.msra.mxu0 0.0
  %1431 = vmatpush.msra.mxu0 0.0
  %1432 = vmatpush.msra.mxu0 0.0
  %1433 = vmatpush.msra.mxu0 0.0
  %1434 = vmatpush.msra.mxu0 0.0
  %1435 = vmatpush.msra.mxu0 0.0
  %1436 = vmatpush.msra.mxu0 0.0
  %1437 = vmatpush.msra.mxu0 %v1415
  %1438 = vmatpush.msra.mxu0 %v1413
  %1439 = vmatpush.msra.mxu0 %v1411
  %1440 = vmatpush.msra.mxu0 %v1409
  %1441 = vmatpush.msra.mxu0 %v1407
  %1442 = vmatpush.msra.mxu0 %v1405
  %1443 = vmatpush.msra.mxu0 %v1403
  %1444 = vmatpush.msra.mxu0 %v1401
  %1445 = vmatmul.f32.gmra.mxu0 %v1424
  %v1446 = vpop.f32.mrf.mxu0
  %v1447 = vadd.f32 %v1419, %v1446
  %1448 = vmatmul.f32.gmra.mxu0 %v1427
  %v1449 = vpop.f32.mrf.mxu0
  %v1450 = vadd.f32 %v1419, %v1449
  %1451 = vdwg.mxu0
  %1452 = vmatpush.msra.mxu0 0.0
  %1453 = vmatpush.msra.mxu0 0.0
  %1454 = vmatpush.msra.mxu0 0.0
  %1455 = vmatpush.msra.mxu0 0.0
  %1456 = vmatpush.msra.mxu0 0.0
  %1457 = vmatpush.msra.mxu0 0.0
  %1458 = vmatpush.msra.mxu0 0.0
  %1459 = vmatpush.msra.mxu0 0.0
  %1460 = vmatpush.msra.mxu0 %v1416
  %1461 = vmatpush.msra.mxu0 %v1414
  %1462 = vmatpush.msra.mxu0 %v1412
  %1463 = vmatpush.msra.mxu0 %v1410
  %1464 = vmatpush.msra.mxu0 %v1408
  %1465 = vmatpush.msra.mxu0 %v1406
  %1466 = vmatpush.msra.mxu0 %v1404
  %1467 = vmatpush.msra.mxu0 %v1402
  %1468 = vmatmul.f32.gmra.mxu0 %v1424
  %v1469 = vpop.f32.mrf.mxu0
  %v1470 = vadd.f32 %v1420, %v1469
  %1471 = vmatmul.f32.gmra.mxu0 %v1427
  %v1472 = vpop.f32.mrf.mxu0
  %v1473 = vadd.f32 %v1420, %v1472
  %1474 = vdwg.mxu0
  %v1475 = vmul.f32 %v1447, %v1447
  %v1476 = vmul.f32 %v1470, %v1470
  %v1477 = vmul.f32 %v1450, %v1450
  %v1478 = vmul.f32 %v1473, %v1473
  %v1479 = vmul.f32 %v1447, %v1475
  %v1480 = vmul.f32 %v1470, %v1476
  %v1481 = vmul.f32 %v1450, %v1477
  %v1482 = vmul.f32 %v1473, %v1478
  %v1483 = vmul.f32 %v1479, 0.044715
  %v1484 = vmul.f32 %v1480, 0.044715
  %v1485 = vmul.f32 %v1481, 0.044715
  %v1486 = vmul.f32 %v1482, 0.044715
  %v1487 = vadd.f32 %v1447, %v1483
  %v1488 = vadd.f32 %v1470, %v1484
  %v1489 = vadd.f32 %v1450, %v1485
  %v1490 = vadd.f32 %v1473, %v1486
  %v1491 = vmul.f32 %v1487, 0.7978846
  %v1492 = vmul.f32 %v1488, 0.7978846
  %v1493 = vmul.f32 %v1489, 0.7978846
  %v1494 = vmul.f32 %v1490, 0.7978846
  %v1495 = vtanh.pop %v1491
  %v1496 = vtanh.pop %v1492
  %v1497 = vtanh.pop %v1493
  %v1498 = vtanh.pop %v1494
  %v1499 = vadd.f32 %v1495, 1.0
  %v1500 = vadd.f32 %v1496, 1.0
  %v1501 = vadd.f32 %v1497, 1.0
  %v1502 = vadd.f32 %v1498, 1.0
  %v1503 = vmul.f32 %v1499, 0.5
  %v1504 = vmul.f32 %v1500, 0.5
  %v1505 = vmul.f32 %v1501, 0.5
  %v1506 = vmul.f32 %v1502, 0.5
  %v1507 = vmul.f32 %v1447, %v1503
  %v1508 = vmul.f32 %v1470, %v1504
  %v1509 = vmul.f32 %v1450, %v1505
  %v1510 = vmul.f32 %v1473, %v1506
  %v1511 = vld [vmem:[%s31] sm:$0xff]
  %v1512 = vld [vmem:[%s31 + $0x8] sm:$0xff]
  %v1513 = vld [vmem:[%s31 + $0x10] sm:$0xff]
  %v1514 = vld [vmem:[%s31 + $0x18] sm:$0xff]
  %v1515 = vld [vmem:[%s31 + $0x20] sm:$0xff]
  %v1516 = vld [vmem:[%s31 + $0x28] sm:$0xff]
  %v1517 = vld [vmem:[%s31 + $0x30] sm:$0xff]
  %v1518 = vld [vmem:[%s31 + $0x38] sm:$0xff]
  %v1519 = vld [vmem:[%s31 + $0x40] sm:$0xff]
  %v1520 = vld [vmem:[%s31 + $0x48] sm:$0xff]
  %v1521 = vld [vmem:[%s31 + $0x50] sm:$0xff]
  %v1522 = vld [vmem:[%s31 + $0x58] sm:$0xff]
  %v1523 = vld [vmem:[%s31 + $0x60] sm:$0xff]
  %v1524 = vld [vmem:[%s31 + $0x68] sm:$0xff]
  %v1525 = vld [vmem:[%s31 + $0x70] sm:$0xff]
  %v1526 = vld [vmem:[%s31 + $0x78] sm:$0xff]
  %v1527 = vld [vmem:[%s31 + $0x80] sm:$0xff]
  %v1528 = vld [vmem:[%s31 + $0x88] sm:$0xff]
  %v1529 = vld [vmem:[%s31 + $0x90] sm:$0xff]
  %v1530 = vld [vmem:[%s31 + $0x98] sm:$0xff]
  %v1531 = vld [vmem:[%s31 + $0xa0] sm:$0xff]
  %v1532 = vld [vmem:[%s31 + $0xa8] sm:$0xff]
  %v1533 = vld [vmem:[%s31 + $0xb0] sm:$0xff]
  %v1534 = vld [vmem:[%s31 + $0xb8] sm:$0xff]
  %v1535 = vld [vmem:[%s31 + $0xc0] sm:$0xff]
  %v1536 = vld [vmem:[%s31 + $0xc8] sm:$0xff]
  %v1537 = vld [vmem:[%s31 + $0xd0] sm:$0xff]
  %v1538 = vld [vmem:[%s31 + $0xd8] sm:$0xff]
  %v1539 = vld [vmem:[%s31 + $0xe0] sm:$0xff]
  %v1540 = vld [vmem:[%s31 + $0xe8] sm:$0xff]
  %v1541 = vld [vmem:[%s31 + $0xf0] sm:$0xff]
  %v1542 = vld [vmem:[%s31 + $0xf8] sm:$0xff]
  %1543 = vmatpush.msra.mxu0 %v1526
  %1544 = vmatpush.msra.mxu0 %v1525
  %1545 = vmatpush.msra.mxu0 %v1524
  %1546 = vmatpush.msra.mxu0 %v1523
  %1547 = vmatpush.msra.mxu0 %v1522
  %1548 = vmatpush.msra.mxu0 %v1521
  %1549 = vmatpush.msra.mxu0 %v1520
  %1550 = vmatpush.msra.mxu0 %v1519
  %1551 = vmatpush.msra.mxu0 %v1518
  %1552 = vmatpush.msra.mxu0 %v1517
  %1553 = vmatpush.msra.mxu0 %v1516
  %1554 = vmatpush.msra.mxu0 %v1515
  %1555 = vmatpush.msra.mxu0 %v1514
  %1556 = vmatpush.msra.mxu0 %v1513
  %1557 = vmatpush.msra.mxu0 %v1512
  %1558 = vmatpush.msra.mxu0 %v1511
  %1559 = vmatmul.f32.gmra.mxu0 %v1507
  %v1560 = vpop.f32.mrf.mxu0
  %v1561 = vadd.f32 0.0, %v1560
  %1562 = vmatmul.f32.gmra.mxu0 %v1509
  %v1563 = vpop.f32.mrf.mxu0
  %v1564 = vadd.f32 0.0, %v1563
  %1565 = vdwg.mxu0
  %1566 = vmatpush.msra.mxu0 %v1542
  %1567 = vmatpush.msra.mxu0 %v1541
  %1568 = vmatpush.msra.mxu0 %v1540
  %1569 = vmatpush.msra.mxu0 %v1539
  %1570 = vmatpush.msra.mxu0 %v1538
  %1571 = vmatpush.msra.mxu0 %v1537
  %1572 = vmatpush.msra.mxu0 %v1536
  %1573 = vmatpush.msra.mxu0 %v1535
  %1574 = vmatpush.msra.mxu0 %v1534
  %1575 = vmatpush.msra.mxu0 %v1533
  %1576 = vmatpush.msra.mxu0 %v1532
  %1577 = vmatpush.msra.mxu0 %v1531
  %1578 = vmatpush.msra.mxu0 %v1530
  %1579 = vmatpush.msra.mxu0 %v1529
  %1580 = vmatpush.msra.mxu0 %v1528
  %1581 = vmatpush.msra.mxu0 %v1527
  %1582 = vmatmul.f32.gmra.mxu0 %v1508
  %v1583 = vpop.f32.mrf.mxu0
  %v1584 = vadd.f32 %v1561, %v1583
  %1585 = vmatmul.f32.gmra.mxu0 %v1510
  %v1586 = vpop.f32.mrf.mxu0
  %v1587 = vadd.f32 %v1564, %v1586
  %1588 = vdwg.mxu0
  %v1589 = vadd.f32 %v1343, %v1584
  %v1590 = vadd.f32 %v1344, %v1587
  %v1591 = vld [vmem:[%s33] sm:$0x1]
  %v1593 = vperm.slane %v1591, 0
  %v1595 = vadd.f32 %v1589, %v1593
  %v1596 = vadd.f32 %v1590, %v1593
  %v1597 = vsel %vm392, %v1595, 0.0
  %1598 = vadd.xlane.f32.xlu0 %v1597
  %v1599 = vpop.xlane.xlu0 %1598
  %v1600 = vsel %vm392, %v1596, 0.0
  %1601 = vadd.xlane.f32.xlu0 %v1600
  %v1602 = vpop.xlane.xlu0 %1601
  %v1603 = vmul.f32 %v1599, %v405
  %v1604 = vmul.f32 %v1602, %v405
  %v1605 = vsub.f32 %v1595, %v1603
  %v1606 = vsub.f32 %v1596, %v1604
  %v1607 = vmul.f32 %v1605, %v1605
  %v1608 = vmul.f32 %v1606, %v1606
  %v1609 = vsel %vm392, %v1607, 0.0
  %1610 = vadd.xlane.f32.xlu0 %v1609
  %v1611 = vpop.xlane.xlu0 %1610
  %v1612 = vsel %vm392, %v1608, 0.0
  %1613 = vadd.xlane.f32.xlu0 %v1612
  %v1614 = vpop.xlane.xlu0 %1613
  %v1615 = vmul.f32 %v1611, %v405
  %v1616 = vmul.f32 %v1614, %v405
  %v1617 = vadd.f32 %v1615, 1e-06
  %v1618 = vadd.f32 %v1616, 1e-06
  %v1619 = vrsqrt.pop %v1617
  %v1620 = vmul.f32 %v1619, %v1617
  %v1621 = vmul.f32 %v1620, %v1619
  %v1622 = vmul.f32 0.5, %v1621
  %v1623 = vsub.f32 1.5, %v1622
  %v1624 = vmul.f32 %v1619, %v1623
  %vm1625 = vweird.f32 %v1617
  %vm1626 = vweird.f32 %v1619
  %vm1627 = vmor %vm1625, %vm1626
  %v1628 = vsel %vm1627, %v1619, %v1624
  %v1629 = vrsqrt.pop %v1618
  %v1630 = vmul.f32 %v1629, %v1618
  %v1631 = vmul.f32 %v1630, %v1629
  %v1632 = vmul.f32 0.5, %v1631
  %v1633 = vsub.f32 1.5, %v1632
  %v1634 = vmul.f32 %v1629, %v1633
  %vm1635 = vweird.f32 %v1618
  %vm1636 = vweird.f32 %v1629
  %vm1637 = vmor %vm1635, %vm1636
  %v1638 = vsel %vm1637, %v1629, %v1634
  %v1639 = vmul.f32 %v1605, %v1628
  %v1640 = vmul.f32 %v1606, %v1638
  %v1641 = vld [vmem:[%s35] sm:$0x1]
  %v1643 = vperm.slane %v1641, 0
  %v1645 = vmul.f32 %v1639, %v1643
  %v1646 = vmul.f32 %v1640, %v1643
  %v1647 = vld [vmem:[%s37] sm:$0x1]
  %v1649 = vperm.slane %v1647, 0
  %v1651 = vadd.f32 %v1645, %v1649
  %v1652 = vadd.f32 %v1646, %v1649
  %v1653 = vld [vmem:[%s39] sm:$0xff]
  %v1654 = vld [vmem:[%s39 + $0x8] sm:$0xff]
  %v1655 = vld [vmem:[%s39 + $0x10] sm:$0xff]
  %v1656 = vld [vmem:[%s39 + $0x18] sm:$0xff]
  %v1657 = vld [vmem:[%s39 + $0x20] sm:$0xff]
  %v1658 = vld [vmem:[%s39 + $0x28] sm:$0xff]
  %v1659 = vld [vmem:[%s39 + $0x30] sm:$0xff]
  %v1660 = vld [vmem:[%s39 + $0x38] sm:$0xff]
  %v1662 = vsel %vm392, %v1651, 0
  %v1665 = vsel %vm392, %v1652, 0
  %1667 = vmatpush.msra.mxu0 0.0
  %1668 = vmatpush.msra.mxu0 0.0
  %1669 = vmatpush.msra.mxu0 0.0
  %1670 = vmatpush.msra.mxu0 0.0
  %1671 = vmatpush.msra.mxu0 0.0
  %1672 = vmatpush.msra.mxu0 0.0
  %1673 = vmatpush.msra.mxu0 0.0
  %1674 = vmatpush.msra.mxu0 0.0
  %1675 = vmatpush.msra.mxu0 %v1660
  %1676 = vmatpush.msra.mxu0 %v1659
  %1677 = vmatpush.msra.mxu0 %v1658
  %1678 = vmatpush.msra.mxu0 %v1657
  %1679 = vmatpush.msra.mxu0 %v1656
  %1680 = vmatpush.msra.mxu0 %v1655
  %1681 = vmatpush.msra.mxu0 %v1654
  %1682 = vmatpush.msra.mxu0 %v1653
  %1683 = vmatmul.f32.gmra.mxu0 %v1662
  %v1684 = vpop.f32.mrf.mxu0
  %v1685 = vadd.f32 0.0, %v1684
  %1686 = vmatmul.f32.gmra.mxu0 %v1665
  %v1687 = vpop.f32.mrf.mxu0
  %v1688 = vadd.f32 0.0, %v1687
  %1689 = vdwg.mxu0
  %v1690 = vld [vmem:[%s41] sm:$0xff]
  %v1691 = vld [vmem:[%s41 + $0x8] sm:$0xff]
  %v1692 = vld [vmem:[%s41 + $0x10] sm:$0xff]
  %v1693 = vld [vmem:[%s41 + $0x18] sm:$0xff]
  %v1694 = vld [vmem:[%s41 + $0x20] sm:$0xff]
  %v1695 = vld [vmem:[%s41 + $0x28] sm:$0xff]
  %v1696 = vld [vmem:[%s41 + $0x30] sm:$0xff]
  %v1697 = vld [vmem:[%s41 + $0x38] sm:$0xff]
  %1698 = vmatpush.msra.mxu0 0.0
  %1699 = vmatpush.msra.mxu0 0.0
  %1700 = vmatpush.msra.mxu0 0.0
  %1701 = vmatpush.msra.mxu0 0.0
  %1702 = vmatpush.msra.mxu0 0.0
  %1703 = vmatpush.msra.mxu0 0.0
  %1704 = vmatpush.msra.mxu0 0.0
  %1705 = vmatpush.msra.mxu0 0.0
  %1706 = vmatpush.msra.mxu0 %v1697
  %1707 = vmatpush.msra.mxu0 %v1696
  %1708 = vmatpush.msra.mxu0 %v1695
  %1709 = vmatpush.msra.mxu0 %v1694
  %1710 = vmatpush.msra.mxu0 %v1693
  %1711 = vmatpush.msra.mxu0 %v1692
  %1712 = vmatpush.msra.mxu0 %v1691
  %1713 = vmatpush.msra.mxu0 %v1690
  %1714 = vmatmul.f32.gmra.mxu0 %v1662
  %v1715 = vpop.f32.mrf.mxu0
  %v1716 = vadd.f32 0.0, %v1715
  %1717 = vmatmul.f32.gmra.mxu0 %v1665
  %v1718 = vpop.f32.mrf.mxu0
  %v1719 = vadd.f32 0.0, %v1718
  %1720 = vdwg.mxu0
  %v1721 = vld [vmem:[%s43] sm:$0xff]
  %v1722 = vld [vmem:[%s43 + $0x8] sm:$0xff]
  %v1723 = vld [vmem:[%s43 + $0x10] sm:$0xff]
  %v1724 = vld [vmem:[%s43 + $0x18] sm:$0xff]
  %v1725 = vld [vmem:[%s43 + $0x20] sm:$0xff]
  %v1726 = vld [vmem:[%s43 + $0x28] sm:$0xff]
  %v1727 = vld [vmem:[%s43 + $0x30] sm:$0xff]
  %v1728 = vld [vmem:[%s43 + $0x38] sm:$0xff]
  %1729 = vmatpush.msra.mxu0 0.0
  %1730 = vmatpush.msra.mxu0 0.0
  %1731 = vmatpush.msra.mxu0 0.0
  %1732 = vmatpush.msra.mxu0 0.0
  %1733 = vmatpush.msra.mxu0 0.0
  %1734 = vmatpush.msra.mxu0 0.0
  %1735 = vmatpush.msra.mxu0 0.0
  %1736 = vmatpush.msra.mxu0 0.0
  %1737 = vmatpush.msra.mxu0 %v1728
  %1738 = vmatpush.msra.mxu0 %v1727
  %1739 = vmatpush.msra.mxu0 %v1726
  %1740 = vmatpush.msra.mxu0 %v1725
  %1741 = vmatpush.msra.mxu0 %v1724
  %1742 = vmatpush.msra.mxu0 %v1723
  %1743 = vmatpush.msra.mxu0 %v1722
  %1744 = vmatpush.msra.mxu0 %v1721
  %1745 = vmatmul.f32.gmra.mxu0 %v1662
  %v1746 = vpop.f32.mrf.mxu0
  %v1747 = vadd.f32 0.0, %v1746
  %1748 = vmatmul.f32.gmra.mxu0 %v1665
  %v1749 = vpop.f32.mrf.mxu0
  %v1750 = vadd.f32 0.0, %v1749
  %1751 = vdwg.mxu0
  %v1753 = vsel %vm555, %v1685, 0
  %v1756 = vsel %vm555, %v1688, 0
  %v1759 = vsel %vm555, %v1716, 0
  %v1762 = vsel %vm555, %v1719, 0
  %1764 = vmatpush.xpose.msra.mxu0 0.0
  %1765 = vmatpush.xpose.msra.mxu0 0.0
  %1766 = vmatpush.xpose.msra.mxu0 0.0
  %1767 = vmatpush.xpose.msra.mxu0 0.0
  %1768 = vmatpush.xpose.msra.mxu0 0.0
  %1769 = vmatpush.xpose.msra.mxu0 0.0
  %1770 = vmatpush.xpose.msra.mxu0 0.0
  %1771 = vmatpush.xpose.msra.mxu0 0.0
  %1772 = vmatpush.xpose.msra.mxu0 0.0
  %1773 = vmatpush.xpose.msra.mxu0 0.0
  %1774 = vmatpush.xpose.msra.mxu0 0.0
  %1775 = vmatpush.xpose.msra.mxu0 0.0
  %1776 = vmatpush.xpose.msra.mxu0 0.0
  %1777 = vmatpush.xpose.msra.mxu0 0.0
  %1778 = vmatpush.xpose.msra.mxu0 %v1762
  %1779 = vmatpush.xpose.msra.mxu0 %v1759
  %1780 = vmatmul.f32.gmra.mxu0 %v1753
  %v1781 = vpop.f32.mrf.mxu0
  %v1782 = vadd.f32 0.0, %v1781
  %1783 = vmatmul.f32.gmra.mxu0 %v1756
  %v1784 = vpop.f32.mrf.mxu0
  %v1785 = vadd.f32 0.0, %v1784
  %1786 = vdwg.mxu0
  %v1787 = vmul.f32 %v1782, 0.25
  %v1788 = vmul.f32 %v1785, 0.25
  %v1789 = vadd.f32 %v1787, %v593
  %v1790 = vadd.f32 %v1788, %v594
  %v1791 = vsel %vm555, %v1789, -inf
  %1792 = vmax.xlane.f32.xlu0 %v1791
  %v1793 = vpop.xlane.xlu0 %1792
  %v1794 = vsel %vm555, %v1790, -inf
  %1795 = vmax.xlane.f32.xlu0 %v1794
  %v1796 = vpop.xlane.xlu0 %1795
  %v1797 = vsub.f32 %v1789, %v1793
  %v1798 = vsub.f32 %v1790, %v1796
  %v1799 = vmul.f32 %v1797, 1.442695
  %v1800 = vpow.pop %v1799
  %v1801 = vmul.f32 %v1798, 1.442695
  %v1802 = vpow.pop %v1801
  %v1803 = vsel %vm555, %v1800, 0.0
  %1804 = vadd.xlane.f32.xlu0 %v1803
  %v1805 = vpop.xlane.xlu0 %1804
  %v1806 = vsel %vm555, %v1802, 0.0
  %1807 = vadd.xlane.f32.xlu0 %v1806
  %v1808 = vpop.xlane.xlu0 %1807
  %v1809 = vrcp.pop %v1805
  %v1810 = vrcp.pop %v1808
  %v1811 = vmul.f32 %v1800, %v1809
  %v1812 = vmul.f32 %v1802, %v1810
  %v1814 = vsel %vm555, %v1811, 0
  %v1817 = vsel %vm555, %v1812, 0
  %1819 = vmatpush.msra.mxu0 0.0
  %1820 = vmatpush.msra.mxu0 0.0
  %1821 = vmatpush.msra.mxu0 0.0
  %1822 = vmatpush.msra.mxu0 0.0
  %1823 = vmatpush.msra.mxu0 0.0
  %1824 = vmatpush.msra.mxu0 0.0
  %1825 = vmatpush.msra.mxu0 0.0
  %1826 = vmatpush.msra.mxu0 0.0
  %1827 = vmatpush.msra.mxu0 0.0
  %1828 = vmatpush.msra.mxu0 0.0
  %1829 = vmatpush.msra.mxu0 0.0
  %1830 = vmatpush.msra.mxu0 0.0
  %1831 = vmatpush.msra.mxu0 0.0
  %1832 = vmatpush.msra.mxu0 0.0
  %1833 = vmatpush.msra.mxu0 %v1750
  %1834 = vmatpush.msra.mxu0 %v1747
  %1835 = vmatmul.f32.gmra.mxu0 %v1814
  %v1836 = vpop.f32.mrf.mxu0
  %v1837 = vadd.f32 0.0, %v1836
  %1838 = vmatmul.f32.gmra.mxu0 %v1817
  %v1839 = vpop.f32.mrf.mxu0
  %v1840 = vadd.f32 0.0, %v1839
  %1841 = vdwg.mxu0
  %v1842 = vld [vmem:[%s45] sm:$0xff]
  %v1843 = vld [vmem:[%s45 + $0x8] sm:$0xff]
  %s1844 = scalar_lea.vmem %s39, 64
  %v1845 = vld [vmem:[%s1844] sm:$0xff]
  %v1846 = vld [vmem:[%s1844 + $0x8] sm:$0xff]
  %v1847 = vld [vmem:[%s1844 + $0x10] sm:$0xff]
  %v1848 = vld [vmem:[%s1844 + $0x18] sm:$0xff]
  %v1849 = vld [vmem:[%s1844 + $0x20] sm:$0xff]
  %v1850 = vld [vmem:[%s1844 + $0x28] sm:$0xff]
  %v1851 = vld [vmem:[%s1844 + $0x30] sm:$0xff]
  %v1852 = vld [vmem:[%s1844 + $0x38] sm:$0xff]
  %1853 = vmatpush.msra.mxu0 0.0
  %1854 = vmatpush.msra.mxu0 0.0
  %1855 = vmatpush.msra.mxu0 0.0
  %1856 = vmatpush.msra.mxu0 0.0
  %1857 = vmatpush.msra.mxu0 0.0
  %1858 = vmatpush.msra.mxu0 0.0
  %1859 = vmatpush.msra.mxu0 0.0
  %1860 = vmatpush.msra.mxu0 0.0
  %1861 = vmatpush.msra.mxu0 %v1852
  %1862 = vmatpush.msra.mxu0 %v1851
  %1863 = vmatpush.msra.mxu0 %v1850
  %1864 = vmatpush.msra.mxu0 %v1849
  %1865 = vmatpush.msra.mxu0 %v1848
  %1866 = vmatpush.msra.mxu0 %v1847
  %1867 = vmatpush.msra.mxu0 %v1846
  %1868 = vmatpush.msra.mxu0 %v1845
  %1869 = vmatmul.f32.gmra.mxu0 %v1662
  %v1870 = vpop.f32.mrf.mxu0
  %v1871 = vadd.f32 0.0, %v1870
  %1872 = vmatmul.f32.gmra.mxu0 %v1665
  %v1873 = vpop.f32.mrf.mxu0
  %v1874 = vadd.f32 0.0, %v1873
  %1875 = vdwg.mxu0
  %s1876 = scalar_lea.vmem %s41, 64
  %v1877 = vld [vmem:[%s1876] sm:$0xff]
  %v1878 = vld [vmem:[%s1876 + $0x8] sm:$0xff]
  %v1879 = vld [vmem:[%s1876 + $0x10] sm:$0xff]
  %v1880 = vld [vmem:[%s1876 + $0x18] sm:$0xff]
  %v1881 = vld [vmem:[%s1876 + $0x20] sm:$0xff]
  %v1882 = vld [vmem:[%s1876 + $0x28] sm:$0xff]
  %v1883 = vld [vmem:[%s1876 + $0x30] sm:$0xff]
  %v1884 = vld [vmem:[%s1876 + $0x38] sm:$0xff]
  %1885 = vmatpush.msra.mxu0 0.0
  %1886 = vmatpush.msra.mxu0 0.0
  %1887 = vmatpush.msra.mxu0 0.0
  %1888 = vmatpush.msra.mxu0 0.0
  %1889 = vmatpush.msra.mxu0 0.0
  %1890 = vmatpush.msra.mxu0 0.0
  %1891 = vmatpush.msra.mxu0 0.0
  %1892 = vmatpush.msra.mxu0 0.0
  %1893 = vmatpush.msra.mxu0 %v1884
  %1894 = vmatpush.msra.mxu0 %v1883
  %1895 = vmatpush.msra.mxu0 %v1882
  %1896 = vmatpush.msra.mxu0 %v1881
  %1897 = vmatpush.msra.mxu0 %v1880
  %1898 = vmatpush.msra.mxu0 %v1879
  %1899 = vmatpush.msra.mxu0 %v1878
  %1900 = vmatpush.msra.mxu0 %v1877
  %1901 = vmatmul.f32.gmra.mxu0 %v1662
  %v1902 = vpop.f32.mrf.mxu0
  %v1903 = vadd.f32 0.0, %v1902
  %1904 = vmatmul.f32.gmra.mxu0 %v1665
  %v1905 = vpop.f32.mrf.mxu0
  %v1906 = vadd.f32 0.0, %v1905
  %1907 = vdwg.mxu0
  %s1908 = scalar_lea.vmem %s43, 64
  %v1909 = vld [vmem:[%s1908] sm:$0xff]
  %v1910 = vld [vmem:[%s1908 + $0x8] sm:$0xff]
  %v1911 = vld [vmem:[%s1908 + $0x10] sm:$0xff]
  %v1912 = vld [vmem:[%s1908 + $0x18] sm:$0xff]
  %v1913 = vld [vmem:[%s1908 + $0x20] sm:$0xff]
  %v1914 = vld [vmem:[%s1908 + $0x28] sm:$0xff]
  %v1915 = vld [vmem:[%s1908 + $0x30] sm:$0xff]
  %v1916 = vld [vmem:[%s1908 + $0x38] sm:$0xff]
  %1917 = vmatpush.msra.mxu0 0.0
  %1918 = vmatpush.msra.mxu0 0.0
  %1919 = vmatpush.msra.mxu0 0.0
  %1920 = vmatpush.msra.mxu0 0.0
  %1921 = vmatpush.msra.mxu0 0.0
  %1922 = vmatpush.msra.mxu0 0.0
  %1923 = vmatpush.msra.mxu0 0.0
  %1924 = vmatpush.msra.mxu0 0.0
  %1925 = vmatpush.msra.mxu0 %v1916
  %1926 = vmatpush.msra.mxu0 %v1915
  %1927 = vmatpush.msra.mxu0 %v1914
  %1928 = vmatpush.msra.mxu0 %v1913
  %1929 = vmatpush.msra.mxu0 %v1912
  %1930 = vmatpush.msra.mxu0 %v1911
  %1931 = vmatpush.msra.mxu0 %v1910
  %1932 = vmatpush.msra.mxu0 %v1909
  %1933 = vmatmul.f32.gmra.mxu0 %v1662
  %v1934 = vpop.f32.mrf.mxu0
  %v1935 = vadd.f32 0.0, %v1934
  %1936 = vmatmul.f32.gmra.mxu0 %v1665
  %v1937 = vpop.f32.mrf.mxu0
  %v1938 = vadd.f32 0.0, %v1937
  %1939 = vdwg.mxu0
  %v1941 = vsel %vm555, %v1871, 0
  %v1944 = vsel %vm555, %v1874, 0
  %v1947 = vsel %vm555, %v1903, 0
  %v1950 = vsel %vm555, %v1906, 0
  %1952 = vmatpush.xpose.msra.mxu0 0.0
  %1953 = vmatpush.xpose.msra.mxu0 0.0
  %1954 = vmatpush.xpose.msra.mxu0 0.0
  %1955 = vmatpush.xpose.msra.mxu0 0.0
  %1956 = vmatpush.xpose.msra.mxu0 0.0
  %1957 = vmatpush.xpose.msra.mxu0 0.0
  %1958 = vmatpush.xpose.msra.mxu0 0.0
  %1959 = vmatpush.xpose.msra.mxu0 0.0
  %1960 = vmatpush.xpose.msra.mxu0 0.0
  %1961 = vmatpush.xpose.msra.mxu0 0.0
  %1962 = vmatpush.xpose.msra.mxu0 0.0
  %1963 = vmatpush.xpose.msra.mxu0 0.0
  %1964 = vmatpush.xpose.msra.mxu0 0.0
  %1965 = vmatpush.xpose.msra.mxu0 0.0
  %1966 = vmatpush.xpose.msra.mxu0 %v1950
  %1967 = vmatpush.xpose.msra.mxu0 %v1947
  %1968 = vmatmul.f32.gmra.mxu0 %v1941
  %v1969 = vpop.f32.mrf.mxu0
  %v1970 = vadd.f32 0.0, %v1969
  %1971 = vmatmul.f32.gmra.mxu0 %v1944
  %v1972 = vpop.f32.mrf.mxu0
  %v1973 = vadd.f32 0.0, %v1972
  %1974 = vdwg.mxu0
  %v1975 = vmul.f32 %v1970, 0.25
  %v1976 = vmul.f32 %v1973, 0.25
  %v1977 = vadd.f32 %v1975, %v593
  %v1978 = vadd.f32 %v1976, %v594
  %v1979 = vsel %vm555, %v1977, -inf
  %1980 = vmax.xlane.f32.xlu0 %v1979
  %v1981 = vpop.xlane.xlu0 %1980
  %v1982 = vsel %vm555, %v1978, -inf
  %1983 = vmax.xlane.f32.xlu0 %v1982
  %v1984 = vpop.xlane.xlu0 %1983
  %v1985 = vsub.f32 %v1977, %v1981
  %v1986 = vsub.f32 %v1978, %v1984
  %v1987 = vmul.f32 %v1985, 1.442695
  %v1988 = vpow.pop %v1987
  %v1989 = vmul.f32 %v1986, 1.442695
  %v1990 = vpow.pop %v1989
  %v1991 = vsel %vm555, %v1988, 0.0
  %1992 = vadd.xlane.f32.xlu0 %v1991
  %v1993 = vpop.xlane.xlu0 %1992
  %v1994 = vsel %vm555, %v1990, 0.0
  %1995 = vadd.xlane.f32.xlu0 %v1994
  %v1996 = vpop.xlane.xlu0 %1995
  %v1997 = vrcp.pop %v1993
  %v1998 = vrcp.pop %v1996
  %v1999 = vmul.f32 %v1988, %v1997
  %v2000 = vmul.f32 %v1990, %v1998
  %v2002 = vsel %vm555, %v1999, 0
  %v2005 = vsel %vm555, %v2000, 0
  %2007 = vmatpush.msra.mxu0 0.0
  %2008 = vmatpush.msra.mxu0 0.0
  %2009 = vmatpush.msra.mxu0 0.0
  %2010 = vmatpush.msra.mxu0 0.0
  %2011 = vmatpush.msra.mxu0 0.0
  %2012 = vmatpush.msra.mxu0 0.0
  %2013 = vmatpush.msra.mxu0 0.0
  %2014 = vmatpush.msra.mxu0 0.0
  %2015 = vmatpush.msra.mxu0 0.0
  %2016 = vmatpush.msra.mxu0 0.0
  %2017 = vmatpush.msra.mxu0 0.0
  %2018 = vmatpush.msra.mxu0 0.0
  %2019 = vmatpush.msra.mxu0 0.0
  %2020 = vmatpush.msra.mxu0 0.0
  %2021 = vmatpush.msra.mxu0 %v1938
  %2022 = vmatpush.msra.mxu0 %v1935
  %2023 = vmatmul.f32.gmra.mxu0 %v2002
  %v2024 = vpop.f32.mrf.mxu0
  %v2025 = vadd.f32 0.0, %v2024
  %2026 = vmatmul.f32.gmra.mxu0 %v2005
  %v2027 = vpop.f32.mrf.mxu0
  %v2028 = vadd.f32 0.0, %v2027
  %2029 = vdwg.mxu0
  %s2030 = scalar_lea.vmem %s45, 16
  %v2031 = vld [vmem:[%s2030] sm:$0xff]
  %v2032 = vld [vmem:[%s2030 + $0x8] sm:$0xff]
  %v2034 = vsel %vm555, %v2025, 0
  %v2037 = vsel %vm555, %v2028, 0
  %2039 = vmatpush.msra.mxu0 0.0
  %2040 = vmatpush.msra.mxu0 0.0
  %2041 = vmatpush.msra.mxu0 0.0
  %2042 = vmatpush.msra.mxu0 0.0
  %2043 = vmatpush.msra.mxu0 0.0
  %2044 = vmatpush.msra.mxu0 0.0
  %2045 = vmatpush.msra.mxu0 0.0
  %2046 = vmatpush.msra.mxu0 0.0
  %2047 = vmatpush.msra.mxu0 0.0
  %2048 = vmatpush.msra.mxu0 0.0
  %2049 = vmatpush.msra.mxu0 0.0
  %2050 = vmatpush.msra.mxu0 0.0
  %2051 = vmatpush.msra.mxu0 0.0
  %2052 = vmatpush.msra.mxu0 0.0
  %2053 = vmatpush.msra.mxu0 %v2032
  %2054 = vmatpush.msra.mxu0 %v2031
  %2055 = vmatmul.f32.gmra.mxu0 %v2034
  %v2056 = vpop.f32.mrf.mxu0
  %v2057 = vadd.f32 0.0, %v2056
  %2058 = vmatmul.f32.gmra.mxu0 %v2037
  %v2059 = vpop.f32.mrf.mxu0
  %v2060 = vadd.f32 0.0, %v2059
  %2061 = vdwg.mxu0
  %v2063 = vsel %vm555, %v1837, 0
  %v2066 = vsel %vm555, %v1840, 0
  %2068 = vmatpush.msra.mxu0 0.0
  %2069 = vmatpush.msra.mxu0 0.0
  %2070 = vmatpush.msra.mxu0 0.0
  %2071 = vmatpush.msra.mxu0 0.0
  %2072 = vmatpush.msra.mxu0 0.0
  %2073 = vmatpush.msra.mxu0 0.0
  %2074 = vmatpush.msra.mxu0 0.0
  %2075 = vmatpush.msra.mxu0 0.0
  %2076 = vmatpush.msra.mxu0 0.0
  %2077 = vmatpush.msra.mxu0 0.0
  %2078 = vmatpush.msra.mxu0 0.0
  %2079 = vmatpush.msra.mxu0 0.0
  %2080 = vmatpush.msra.mxu0 0.0
  %2081 = vmatpush.msra.mxu0 0.0
  %2082 = vmatpush.msra.mxu0 %v1843
  %2083 = vmatpush.msra.mxu0 %v1842
  %2084 = vmatmul.f32.gmra.mxu0 %v2063
  %v2085 = vpop.f32.mrf.mxu0
  %v2086 = vadd.f32 %v2057, %v2085
  %2087 = vmatmul.f32.gmra.mxu0 %v2066
  %v2088 = vpop.f32.mrf.mxu0
  %v2089 = vadd.f32 %v2060, %v2088
  %2090 = vdwg.mxu0
  %s2091 = scalar_lea.vmem %s39, 128
  %v2092 = vld [vmem:[%s2091] sm:$0xff]
  %v2093 = vld [vmem:[%s2091 + $0x8] sm:$0xff]
  %v2094 = vld [vmem:[%s2091 + $0x10] sm:$0xff]
  %v2095 = vld [vmem:[%s2091 + $0x18] sm:$0xff]
  %v2096 = vld [vmem:[%s2091 + $0x20] sm:$0xff]
  %v2097 = vld [vmem:[%s2091 + $0x28] sm:$0xff]
  %v2098 = vld [vmem:[%s2091 + $0x30] sm:$0xff]
  %v2099 = vld [vmem:[%s2091 + $0x38] sm:$0xff]
  %2100 = vmatpush.msra.mxu0 0.0
  %2101 = vmatpush.msra.mxu0 0.0
  %2102 = vmatpush.msra.mxu0 0.0
  %2103 = vmatpush.msra.mxu0 0.0
  %2104 = vmatpush.msra.mxu0 0.0
  %2105 = vmatpush.msra.mxu0 0.0
  %2106 = vmatpush.msra.mxu0 0.0
  %2107 = vmatpush.msra.mxu0 0.0
  %2108 = vmatpush.msra.mxu0 %v2099
  %2109 = vmatpush.msra.mxu0 %v2098
  %2110 = vmatpush.msra.mxu0 %v2097
  %2111 = vmatpush.msra.mxu0 %v2096
  %2112 = vmatpush.msra.mxu0 %v2095
  %2113 = vmatpush.msra.mxu0 %v2094
  %2114 = vmatpush.msra.mxu0 %v2093
  %2115 = vmatpush.msra.mxu0 %v2092
  %2116 = vmatmul.f32.gmra.mxu0 %v1662
  %v2117 = vpop.f32.mrf.mxu0
  %v2118 = vadd.f32 0.0, %v2117
  %2119 = vmatmul.f32.gmra.mxu0 %v1665
  %v2120 = vpop.f32.mrf.mxu0
  %v2121 = vadd.f32 0.0, %v2120
  %2122 = vdwg.mxu0
  %s2123 = scalar_lea.vmem %s41, 128
  %v2124 = vld [vmem:[%s2123] sm:$0xff]
  %v2125 = vld [vmem:[%s2123 + $0x8] sm:$0xff]
  %v2126 = vld [vmem:[%s2123 + $0x10] sm:$0xff]
  %v2127 = vld [vmem:[%s2123 + $0x18] sm:$0xff]
  %v2128 = vld [vmem:[%s2123 + $0x20] sm:$0xff]
  %v2129 = vld [vmem:[%s2123 + $0x28] sm:$0xff]
  %v2130 = vld [vmem:[%s2123 + $0x30] sm:$0xff]
  %v2131 = vld [vmem:[%s2123 + $0x38] sm:$0xff]
  %2132 = vmatpush.msra.mxu0 0.0
  %2133 = vmatpush.msra.mxu0 0.0
  %2134 = vmatpush.msra.mxu0 0.0
  %2135 = vmatpush.msra.mxu0 0.0
  %2136 = vmatpush.msra.mxu0 0.0
  %2137 = vmatpush.msra.mxu0 0.0
  %2138 = vmatpush.msra.mxu0 0.0
  %2139 = vmatpush.msra.mxu0 0.0
  %2140 = vmatpush.msra.mxu0 %v2131
  %2141 = vmatpush.msra.mxu0 %v2130
  %2142 = vmatpush.msra.mxu0 %v2129
  %2143 = vmatpush.msra.mxu0 %v2128
  %2144 = vmatpush.msra.mxu0 %v2127
  %2145 = vmatpush.msra.mxu0 %v2126
  %2146 = vmatpush.msra.mxu0 %v2125
  %2147 = vmatpush.msra.mxu0 %v2124
  %2148 = vmatmul.f32.gmra.mxu0 %v1662
  %v2149 = vpop.f32.mrf.mxu0
  %v2150 = vadd.f32 0.0, %v2149
  %2151 = vmatmul.f32.gmra.mxu0 %v1665
  %v2152 = vpop.f32.mrf.mxu0
  %v2153 = vadd.f32 0.0, %v2152
  %2154 = vdwg.mxu0
  %s2155 = scalar_lea.vmem %s43, 128
  %v2156 = vld [vmem:[%s2155] sm:$0xff]
  %v2157 = vld [vmem:[%s2155 + $0x8] sm:$0xff]
  %v2158 = vld [vmem:[%s2155 + $0x10] sm:$0xff]
  %v2159 = vld [vmem:[%s2155 + $0x18] sm:$0xff]
  %v2160 = vld [vmem:[%s2155 + $0x20] sm:$0xff]
  %v2161 = vld [vmem:[%s2155 + $0x28] sm:$0xff]
  %v2162 = vld [vmem:[%s2155 + $0x30] sm:$0xff]
  %v2163 = vld [vmem:[%s2155 + $0x38] sm:$0xff]
  %2164 = vmatpush.msra.mxu0 0.0
  %2165 = vmatpush.msra.mxu0 0.0
  %2166 = vmatpush.msra.mxu0 0.0
  %2167 = vmatpush.msra.mxu0 0.0
  %2168 = vmatpush.msra.mxu0 0.0
  %2169 = vmatpush.msra.mxu0 0.0
  %2170 = vmatpush.msra.mxu0 0.0
  %2171 = vmatpush.msra.mxu0 0.0
  %2172 = vmatpush.msra.mxu0 %v2163
  %2173 = vmatpush.msra.mxu0 %v2162
  %2174 = vmatpush.msra.mxu0 %v2161
  %2175 = vmatpush.msra.mxu0 %v2160
  %2176 = vmatpush.msra.mxu0 %v2159
  %2177 = vmatpush.msra.mxu0 %v2158
  %2178 = vmatpush.msra.mxu0 %v2157
  %2179 = vmatpush.msra.mxu0 %v2156
  %2180 = vmatmul.f32.gmra.mxu0 %v1662
  %v2181 = vpop.f32.mrf.mxu0
  %v2182 = vadd.f32 0.0, %v2181
  %2183 = vmatmul.f32.gmra.mxu0 %v1665
  %v2184 = vpop.f32.mrf.mxu0
  %v2185 = vadd.f32 0.0, %v2184
  %2186 = vdwg.mxu0
  %v2188 = vsel %vm555, %v2118, 0
  %v2191 = vsel %vm555, %v2121, 0
  %v2194 = vsel %vm555, %v2150, 0
  %v2197 = vsel %vm555, %v2153, 0
  %2199 = vmatpush.xpose.msra.mxu0 0.0
  %2200 = vmatpush.xpose.msra.mxu0 0.0
  %2201 = vmatpush.xpose.msra.mxu0 0.0
  %2202 = vmatpush.xpose.msra.mxu0 0.0
  %2203 = vmatpush.xpose.msra.mxu0 0.0
  %2204 = vmatpush.xpose.msra.mxu0 0.0
  %2205 = vmatpush.xpose.msra.mxu0 0.0
  %2206 = vmatpush.xpose.msra.mxu0 0.0
  %2207 = vmatpush.xpose.msra.mxu0 0.0
  %2208 = vmatpush.xpose.msra.mxu0 0.0
  %2209 = vmatpush.xpose.msra.mxu0 0.0
  %2210 = vmatpush.xpose.msra.mxu0 0.0
  %2211 = vmatpush.xpose.msra.mxu0 0.0
  %2212 = vmatpush.xpose.msra.mxu0 0.0
  %2213 = vmatpush.xpose.msra.mxu0 %v2197
  %2214 = vmatpush.xpose.msra.mxu0 %v2194
  %2215 = vmatmul.f32.gmra.mxu0 %v2188
  %v2216 = vpop.f32.mrf.mxu0
  %v2217 = vadd.f32 0.0, %v2216
  %2218 = vmatmul.f32.gmra.mxu0 %v2191
  %v2219 = vpop.f32.mrf.mxu0
  %v2220 = vadd.f32 0.0, %v2219
  %2221 = vdwg.mxu0
  %v2222 = vmul.f32 %v2217, 0.25
  %v2223 = vmul.f32 %v2220, 0.25
  %v2224 = vadd.f32 %v2222, %v593
  %v2225 = vadd.f32 %v2223, %v594
  %v2226 = vsel %vm555, %v2224, -inf
  %2227 = vmax.xlane.f32.xlu0 %v2226
  %v2228 = vpop.xlane.xlu0 %2227
  %v2229 = vsel %vm555, %v2225, -inf
  %2230 = vmax.xlane.f32.xlu0 %v2229
  %v2231 = vpop.xlane.xlu0 %2230
  %v2232 = vsub.f32 %v2224, %v2228
  %v2233 = vsub.f32 %v2225, %v2231
  %v2234 = vmul.f32 %v2232, 1.442695
  %v2235 = vpow.pop %v2234
  %v2236 = vmul.f32 %v2233, 1.442695
  %v2237 = vpow.pop %v2236
  %v2238 = vsel %vm555, %v2235, 0.0
  %2239 = vadd.xlane.f32.xlu0 %v2238
  %v2240 = vpop.xlane.xlu0 %2239
  %v2241 = vsel %vm555, %v2237, 0.0
  %2242 = vadd.xlane.f32.xlu0 %v2241
  %v2243 = vpop.xlane.xlu0 %2242
  %v2244 = vrcp.pop %v2240
  %v2245 = vrcp.pop %v2243
  %v2246 = vmul.f32 %v2235, %v2244
  %v2247 = vmul.f32 %v2237, %v2245
  %v2249 = vsel %vm555, %v2246, 0
  %v2252 = vsel %vm555, %v2247, 0
  %2254 = vmatpush.msra.mxu0 0.0
  %2255 = vmatpush.msra.mxu0 0.0
  %2256 = vmatpush.msra.mxu0 0.0
  %2257 = vmatpush.msra.mxu0 0.0
  %2258 = vmatpush.msra.mxu0 0.0
  %2259 = vmatpush.msra.mxu0 0.0
  %2260 = vmatpush.msra.mxu0 0.0
  %2261 = vmatpush.msra.mxu0 0.0
  %2262 = vmatpush.msra.mxu0 0.0
  %2263 = vmatpush.msra.mxu0 0.0
  %2264 = vmatpush.msra.mxu0 0.0
  %2265 = vmatpush.msra.mxu0 0.0
  %2266 = vmatpush.msra.mxu0 0.0
  %2267 = vmatpush.msra.mxu0 0.0
  %2268 = vmatpush.msra.mxu0 %v2185
  %2269 = vmatpush.msra.mxu0 %v2182
  %2270 = vmatmul.f32.gmra.mxu0 %v2249
  %v2271 = vpop.f32.mrf.mxu0
  %v2272 = vadd.f32 0.0, %v2271
  %2273 = vmatmul.f32.gmra.mxu0 %v2252
  %v2274 = vpop.f32.mrf.mxu0
  %v2275 = vadd.f32 0.0, %v2274
  %2276 = vdwg.mxu0
  %s2277 = scalar_lea.vmem %s45, 32
  %v2278 = vld [vmem:[%s2277] sm:$0xff]
  %v2279 = vld [vmem:[%s2277 + $0x8] sm:$0xff]
  %v2281 = vsel %vm555, %v2272, 0
  %v2284 = vsel %vm555, %v2275, 0
  %2286 = vmatpush.msra.mxu0 0.0
  %2287 = vmatpush.msra.mxu0 0.0
  %2288 = vmatpush.msra.mxu0 0.0
  %2289 = vmatpush.msra.mxu0 0.0
  %2290 = vmatpush.msra.mxu0 0.0
  %2291 = vmatpush.msra.mxu0 0.0
  %2292 = vmatpush.msra.mxu0 0.0
  %2293 = vmatpush.msra.mxu0 0.0
  %2294 = vmatpush.msra.mxu0 0.0
  %2295 = vmatpush.msra.mxu0 0.0
  %2296 = vmatpush.msra.mxu0 0.0
  %2297 = vmatpush.msra.mxu0 0.0
  %2298 = vmatpush.msra.mxu0 0.0
  %2299 = vmatpush.msra.mxu0 0.0
  %2300 = vmatpush.msra.mxu0 %v2279
  %2301 = vmatpush.msra.mxu0 %v2278
  %2302 = vmatmul.f32.gmra.mxu0 %v2281
  %v2303 = vpop.f32.mrf.mxu0
  %v2304 = vadd.f32 0.0, %v2303
  %2305 = vmatmul.f32.gmra.mxu0 %v2284
  %v2306 = vpop.f32.mrf.mxu0
  %v2307 = vadd.f32 0.0, %v2306
  %2308 = vdwg.mxu0
  %v2309 = vadd.f32 %v2086, %v2304
  %v2310 = vadd.f32 %v2089, %v2307
  %s2311 = scalar_lea.vmem %s39, 192
  %v2312 = vld [vmem:[%s2311] sm:$0xff]
  %v2313 = vld [vmem:[%s2311 + $0x8] sm:$0xff]
  %v2314 = vld [vmem:[%s2311 + $0x10] sm:$0xff]
  %v2315 = vld [vmem:[%s2311 + $0x18] sm:$0xff]
  %v2316 = vld [vmem:[%s2311 + $0x20] sm:$0xff]
  %v2317 = vld [vmem:[%s2311 + $0x28] sm:$0xff]
  %v2318 = vld [vmem:[%s2311 + $0x30] sm:$0xff]
  %v2319 = vld [vmem:[%s2311 + $0x38] sm:$0xff]
  %2320 = vmatpush.msra.mxu0 0.0
  %2321 = vmatpush.msra.mxu0 0.0
  %2322 = vmatpush.msra.mxu0 0.0
  %2323 = vmatpush.msra.mxu0 0.0
  %2324 = vmatpush.msra.mxu0 0.0
  %2325 = vmatpush.msra.mxu0 0.0
  %2326 = vmatpush.msra.mxu0 0.0
  %2327 = vmatpush.msra.mxu0 0.0
  %2328 = vmatpush.msra.mxu0 %v2319
  %2329 = vmatpush.msra.mxu0 %v2318
  %2330 = vmatpush.msra.mxu0 %v2317
  %2331 = vmatpush.msra.mxu0 %v2316
  %2332 = vmatpush.msra.mxu0 %v2315
  %2333 = vmatpush.msra.mxu0 %v2314
  %2334 = vmatpush.msra.mxu0 %v2313
  %2335 = vmatpush.msra.mxu0 %v2312
  %2336 = vmatmul.f32.gmra.mxu0 %v1662
  %v2337 = vpop.f32.mrf.mxu0
  %v2338 = vadd.f32 0.0, %v2337
  %2339 = vmatmul.f32.gmra.mxu0 %v1665
  %v2340 = vpop.f32.mrf.mxu0
  %v2341 = vadd.f32 0.0, %v2340
  %2342 = vdwg.mxu0
  %s2343 = scalar_lea.vmem %s41, 192
  %v2344 = vld [vmem:[%s2343] sm:$0xff]
  %v2345 = vld [vmem:[%s2343 + $0x8] sm:$0xff]
  %v2346 = vld [vmem:[%s2343 + $0x10] sm:$0xff]
  %v2347 = vld [vmem:[%s2343 + $0x18] sm:$0xff]
  %v2348 = vld [vmem:[%s2343 + $0x20] sm:$0xff]
  %v2349 = vld [vmem:[%s2343 + $0x28] sm:$0xff]
  %v2350 = vld [vmem:[%s2343 + $0x30] sm:$0xff]
  %v2351 = vld [vmem:[%s2343 + $0x38] sm:$0xff]
  %2352 = vmatpush.msra.mxu0 0.0
  %2353 = vmatpush.msra.mxu0 0.0
  %2354 = vmatpush.msra.mxu0 0.0
  %2355 = vmatpush.msra.mxu0 0.0
  %2356 = vmatpush.msra.mxu0 0.0
  %2357 = vmatpush.msra.mxu0 0.0
  %2358 = vmatpush.msra.mxu0 0.0
  %2359 = vmatpush.msra.mxu0 0.0
  %2360 = vmatpush.msra.mxu0 %v2351
  %2361 = vmatpush.msra.mxu0 %v2350
  %2362 = vmatpush.msra.mxu0 %v2349
  %2363 = vmatpush.msra.mxu0 %v2348
  %2364 = vmatpush.msra.mxu0 %v2347
  %2365 = vmatpush.msra.mxu0 %v2346
  %2366 = vmatpush.msra.mxu0 %v2345
  %2367 = vmatpush.msra.mxu0 %v2344
  %2368 = vmatmul.f32.gmra.mxu0 %v1662
  %v2369 = vpop.f32.mrf.mxu0
  %v2370 = vadd.f32 0.0, %v2369
  %2371 = vmatmul.f32.gmra.mxu0 %v1665
  %v2372 = vpop.f32.mrf.mxu0
  %v2373 = vadd.f32 0.0, %v2372
  %2374 = vdwg.mxu0
  %s2375 = scalar_lea.vmem %s43, 192
  %v2376 = vld [vmem:[%s2375] sm:$0xff]
  %v2377 = vld [vmem:[%s2375 + $0x8] sm:$0xff]
  %v2378 = vld [vmem:[%s2375 + $0x10] sm:$0xff]
  %v2379 = vld [vmem:[%s2375 + $0x18] sm:$0xff]
  %v2380 = vld [vmem:[%s2375 + $0x20] sm:$0xff]
  %v2381 = vld [vmem:[%s2375 + $0x28] sm:$0xff]
  %v2382 = vld [vmem:[%s2375 + $0x30] sm:$0xff]
  %v2383 = vld [vmem:[%s2375 + $0x38] sm:$0xff]
  %2384 = vmatpush.msra.mxu0 0.0
  %2385 = vmatpush.msra.mxu0 0.0
  %2386 = vmatpush.msra.mxu0 0.0
  %2387 = vmatpush.msra.mxu0 0.0
  %2388 = vmatpush.msra.mxu0 0.0
  %2389 = vmatpush.msra.mxu0 0.0
  %2390 = vmatpush.msra.mxu0 0.0
  %2391 = vmatpush.msra.mxu0 0.0
  %2392 = vmatpush.msra.mxu0 %v2383
  %2393 = vmatpush.msra.mxu0 %v2382
  %2394 = vmatpush.msra.mxu0 %v2381
  %2395 = vmatpush.msra.mxu0 %v2380
  %2396 = vmatpush.msra.mxu0 %v2379
  %2397 = vmatpush.msra.mxu0 %v2378
  %2398 = vmatpush.msra.mxu0 %v2377
  %2399 = vmatpush.msra.mxu0 %v2376
  %2400 = vmatmul.f32.gmra.mxu0 %v1662
  %v2401 = vpop.f32.mrf.mxu0
  %v2402 = vadd.f32 0.0, %v2401
  %2403 = vmatmul.f32.gmra.mxu0 %v1665
  %v2404 = vpop.f32.mrf.mxu0
  %v2405 = vadd.f32 0.0, %v2404
  %2406 = vdwg.mxu0
  %v2408 = vsel %vm555, %v2338, 0
  %v2411 = vsel %vm555, %v2341, 0
  %v2414 = vsel %vm555, %v2370, 0
  %v2417 = vsel %vm555, %v2373, 0
  %2419 = vmatpush.xpose.msra.mxu0 0.0
  %2420 = vmatpush.xpose.msra.mxu0 0.0
  %2421 = vmatpush.xpose.msra.mxu0 0.0
  %2422 = vmatpush.xpose.msra.mxu0 0.0
  %2423 = vmatpush.xpose.msra.mxu0 0.0
  %2424 = vmatpush.xpose.msra.mxu0 0.0
  %2425 = vmatpush.xpose.msra.mxu0 0.0
  %2426 = vmatpush.xpose.msra.mxu0 0.0
  %2427 = vmatpush.xpose.msra.mxu0 0.0
  %2428 = vmatpush.xpose.msra.mxu0 0.0
  %2429 = vmatpush.xpose.msra.mxu0 0.0
  %2430 = vmatpush.xpose.msra.mxu0 0.0
  %2431 = vmatpush.xpose.msra.mxu0 0.0
  %2432 = vmatpush.xpose.msra.mxu0 0.0
  %2433 = vmatpush.xpose.msra.mxu0 %v2417
  %2434 = vmatpush.xpose.msra.mxu0 %v2414
  %2435 = vmatmul.f32.gmra.mxu0 %v2408
  %v2436 = vpop.f32.mrf.mxu0
  %v2437 = vadd.f32 0.0, %v2436
  %2438 = vmatmul.f32.gmra.mxu0 %v2411
  %v2439 = vpop.f32.mrf.mxu0
  %v2440 = vadd.f32 0.0, %v2439
  %2441 = vdwg.mxu0
  %v2442 = vmul.f32 %v2437, 0.25
  %v2443 = vmul.f32 %v2440, 0.25
  %v2444 = vadd.f32 %v2442, %v593
  %v2445 = vadd.f32 %v2443, %v594
  %v2446 = vsel %vm555, %v2444, -inf
  %2447 = vmax.xlane.f32.xlu0 %v2446
  %v2448 = vpop.xlane.xlu0 %2447
  %v2449 = vsel %vm555, %v2445, -inf
  %2450 = vmax.xlane.f32.xlu0 %v2449
  %v2451 = vpop.xlane.xlu0 %2450
  %v2452 = vsub.f32 %v2444, %v2448
  %v2453 = vsub.f32 %v2445, %v2451
  %v2454 = vmul.f32 %v2452, 1.442695
  %v2455 = vpow.pop %v2454
  %v2456 = vmul.f32 %v2453, 1.442695
  %v2457 = vpow.pop %v2456
  %v2458 = vsel %vm555, %v2455, 0.0
  %2459 = vadd.xlane.f32.xlu0 %v2458
  %v2460 = vpop.xlane.xlu0 %2459
  %v2461 = vsel %vm555, %v2457, 0.0
  %2462 = vadd.xlane.f32.xlu0 %v2461
  %v2463 = vpop.xlane.xlu0 %2462
  %v2464 = vrcp.pop %v2460
  %v2465 = vrcp.pop %v2463
  %v2466 = vmul.f32 %v2455, %v2464
  %v2467 = vmul.f32 %v2457, %v2465
  %v2469 = vsel %vm555, %v2466, 0
  %v2472 = vsel %vm555, %v2467, 0
  %2474 = vmatpush.msra.mxu0 0.0
  %2475 = vmatpush.msra.mxu0 0.0
  %2476 = vmatpush.msra.mxu0 0.0
  %2477 = vmatpush.msra.mxu0 0.0
  %2478 = vmatpush.msra.mxu0 0.0
  %2479 = vmatpush.msra.mxu0 0.0
  %2480 = vmatpush.msra.mxu0 0.0
  %2481 = vmatpush.msra.mxu0 0.0
  %2482 = vmatpush.msra.mxu0 0.0
  %2483 = vmatpush.msra.mxu0 0.0
  %2484 = vmatpush.msra.mxu0 0.0
  %2485 = vmatpush.msra.mxu0 0.0
  %2486 = vmatpush.msra.mxu0 0.0
  %2487 = vmatpush.msra.mxu0 0.0
  %2488 = vmatpush.msra.mxu0 %v2405
  %2489 = vmatpush.msra.mxu0 %v2402
  %2490 = vmatmul.f32.gmra.mxu0 %v2469
  %v2491 = vpop.f32.mrf.mxu0
  %v2492 = vadd.f32 0.0, %v2491
  %2493 = vmatmul.f32.gmra.mxu0 %v2472
  %v2494 = vpop.f32.mrf.mxu0
  %v2495 = vadd.f32 0.0, %v2494
  %2496 = vdwg.mxu0
  %s2497 = scalar_lea.vmem %s45, 48
  %v2498 = vld [vmem:[%s2497] sm:$0xff]
  %v2499 = vld [vmem:[%s2497 + $0x8] sm:$0xff]
  %v2501 = vsel %vm555, %v2492, 0
  %v2504 = vsel %vm555, %v2495, 0
  %2506 = vmatpush.msra.mxu0 0.0
  %2507 = vmatpush.msra.mxu0 0.0
  %2508 = vmatpush.msra.mxu0 0.0
  %2509 = vmatpush.msra.mxu0 0.0
  %2510 = vmatpush.msra.mxu0 0.0
  %2511 = vmatpush.msra.mxu0 0.0
  %2512 = vmatpush.msra.mxu0 0.0
  %2513 = vmatpush.msra.mxu0 0.0
  %2514 = vmatpush.msra.mxu0 0.0
  %2515 = vmatpush.msra.mxu0 0.0
  %2516 = vmatpush.msra.mxu0 0.0
  %2517 = vmatpush.msra.mxu0 0.0
  %2518 = vmatpush.msra.mxu0 0.0
  %2519 = vmatpush.msra.mxu0 0.0
  %2520 = vmatpush.msra.mxu0 %v2499
  %2521 = vmatpush.msra.mxu0 %v2498
  %2522 = vmatmul.f32.gmra.mxu0 %v2501
  %v2523 = vpop.f32.mrf.mxu0
  %v2524 = vadd.f32 0.0, %v2523
  %2525 = vmatmul.f32.gmra.mxu0 %v2504
  %v2526 = vpop.f32.mrf.mxu0
  %v2527 = vadd.f32 0.0, %v2526
  %2528 = vdwg.mxu0
  %v2529 = vadd.f32 %v2309, %v2524
  %v2530 = vadd.f32 %v2310, %v2527
  %v2531 = vadd.f32 %v1595, %v2529
  %v2532 = vadd.f32 %v1596, %v2530
  %v2533 = vld [vmem:[%s47] sm:$0x1]
  %v2535 = vperm.slane %v2533, 0
  %v2537 = vadd.f32 %v2531, %v2535
  %v2538 = vadd.f32 %v2532, %v2535
  %v2539 = vsel %vm392, %v2537, 0.0
  %2540 = vadd.xlane.f32.xlu0 %v2539
  %v2541 = vpop.xlane.xlu0 %2540
  %v2542 = vsel %vm392, %v2538, 0.0
  %2543 = vadd.xlane.f32.xlu0 %v2542
  %v2544 = vpop.xlane.xlu0 %2543
  %v2545 = vmul.f32 %v2541, %v405
  %v2546 = vmul.f32 %v2544, %v405
  %v2547 = vsub.f32 %v2537, %v2545
  %v2548 = vsub.f32 %v2538, %v2546
  %v2549 = vmul.f32 %v2547, %v2547
  %v2550 = vmul.f32 %v2548, %v2548
  %v2551 = vsel %vm392, %v2549, 0.0
  %2552 = vadd.xlane.f32.xlu0 %v2551
  %v2553 = vpop.xlane.xlu0 %2552
  %v2554 = vsel %vm392, %v2550, 0.0
  %2555 = vadd.xlane.f32.xlu0 %v2554
  %v2556 = vpop.xlane.xlu0 %2555
  %v2557 = vmul.f32 %v2553, %v405
  %v2558 = vmul.f32 %v2556, %v405
  %v2559 = vadd.f32 %v2557, 1e-06
  %v2560 = vadd.f32 %v2558, 1e-06
  %v2561 = vrsqrt.pop %v2559
  %v2562 = vmul.f32 %v2561, %v2559
  %v2563 = vmul.f32 %v2562, %v2561
  %v2564 = vmul.f32 0.5, %v2563
  %v2565 = vsub.f32 1.5, %v2564
  %v2566 = vmul.f32 %v2561, %v2565
  %vm2567 = vweird.f32 %v2559
  %vm2568 = vweird.f32 %v2561
  %vm2569 = vmor %vm2567, %vm2568
  %v2570 = vsel %vm2569, %v2561, %v2566
  %v2571 = vrsqrt.pop %v2560
  %v2572 = vmul.f32 %v2571, %v2560
  %v2573 = vmul.f32 %v2572, %v2571
  %v2574 = vmul.f32 0.5, %v2573
  %v2575 = vsub.f32 1.5, %v2574
  %v2576 = vmul.f32 %v2571, %v2575
  %vm2577 = vweird.f32 %v2560
  %vm2578 = vweird.f32 %v2571
  %vm2579 = vmor %vm2577, %vm2578
  %v2580 = vsel %vm2579, %v2571, %v2576
  %v2581 = vmul.f32 %v2547, %v2570
  %v2582 = vmul.f32 %v2548, %v2580
  %v2583 = vld [vmem:[%s49] sm:$0x1]
  %v2585 = vperm.slane %v2583, 0
  %v2587 = vmul.f32 %v2581, %v2585
  %v2588 = vmul.f32 %v2582, %v2585
  %v2589 = vld [vmem:[%s51] sm:$0x1]
  %v2591 = vperm.slane %v2589, 0
  %v2593 = vadd.f32 %v2587, %v2591
  %v2594 = vadd.f32 %v2588, %v2591
  %v2595 = vld [vmem:[%s53] sm:$0xff]
  %v2596 = vld [vmem:[%s53 + $0x8] sm:$0xff]
  %v2597 = vld [vmem:[%s53 + $0x10] sm:$0xff]
  %v2598 = vld [vmem:[%s53 + $0x18] sm:$0xff]
  %v2599 = vld [vmem:[%s53 + $0x20] sm:$0xff]
  %v2600 = vld [vmem:[%s53 + $0x28] sm:$0xff]
  %v2601 = vld [vmem:[%s53 + $0x30] sm:$0xff]
  %v2602 = vld [vmem:[%s53 + $0x38] sm:$0xff]
  %v2603 = vld [vmem:[%s53 + $0x40] sm:$0xff]
  %v2604 = vld [vmem:[%s53 + $0x48] sm:$0xff]
  %v2605 = vld [vmem:[%s53 + $0x50] sm:$0xff]
  %v2606 = vld [vmem:[%s53 + $0x58] sm:$0xff]
  %v2607 = vld [vmem:[%s53 + $0x60] sm:$0xff]
  %v2608 = vld [vmem:[%s53 + $0x68] sm:$0xff]
  %v2609 = vld [vmem:[%s53 + $0x70] sm:$0xff]
  %v2610 = vld [vmem:[%s53 + $0x78] sm:$0xff]
  %v2611 = vld [vmem:[%s55] sm:$0x3]
  %v2613 = vperm.slane %v2611, 0
  %v2614 = vperm.slane %v2611, 1
  %v2618 = vsel %vm392, %v2593, 0
  %v2621 = vsel %vm392, %v2594, 0
  %2623 = vmatpush.msra.mxu0 0.0
  %2624 = vmatpush.msra.mxu0 0.0
  %2625 = vmatpush.msra.mxu0 0.0
  %2626 = vmatpush.msra.mxu0 0.0
  %2627 = vmatpush.msra.mxu0 0.0
  %2628 = vmatpush.msra.mxu0 0.0
  %2629 = vmatpush.msra.mxu0 0.0
  %2630 = vmatpush.msra.mxu0 0.0
  %2631 = vmatpush.msra.mxu0 %v2609
  %2632 = vmatpush.msra.mxu0 %v2607
  %2633 = vmatpush.msra.mxu0 %v2605
  %2634 = vmatpush.msra.mxu0 %v2603
  %2635 = vmatpush.msra.mxu0 %v2601
  %2636 = vmatpush.msra.mxu0 %v2599
  %2637 = vmatpush.msra.mxu0 %v2597
  %2638 = vmatpush.msra.mxu0 %v2595
  %2639 = vmatmul.f32.gmra.mxu0 %v2618
  %v2640 = vpop.f32.mrf.mxu0
  %v2641 = vadd.f32 %v2613, %v2640
  %2642 = vmatmul.f32.gmra.mxu0 %v2621
  %v2643 = vpop.f32.mrf.mxu0
  %v2644 = vadd.f32 %v2613, %v2643
  %2645 = vdwg.mxu0
  %2646 = vmatpush.msra.mxu0 0.0
  %2647 = vmatpush.msra.mxu0 0.0
  %2648 = vmatpush.msra.mxu0 0.0
  %2649 = vmatpush.msra.mxu0 0.0
  %2650 = vmatpush.msra.mxu0 0.0
  %2651 = vmatpush.msra.mxu0 0.0
  %2652 = vmatpush.msra.mxu0 0.0
  %2653 = vmatpush.msra.mxu0 0.0
  %2654 = vmatpush.msra.mxu0 %v2610
  %2655 = vmatpush.msra.mxu0 %v2608
  %2656 = vmatpush.msra.mxu0 %v2606
  %2657 = vmatpush.msra.mxu0 %v2604
  %2658 = vmatpush.msra.mxu0 %v2602
  %2659 = vmatpush.msra.mxu0 %v2600
  %2660 = vmatpush.msra.mxu0 %v2598
  %2661 = vmatpush.msra.mxu0 %v2596
  %2662 = vmatmul.f32.gmra.mxu0 %v2618
  %v2663 = vpop.f32.mrf.mxu0
  %v2664 = vadd.f32 %v2614, %v2663
  %2665 = vmatmul.f32.gmra.mxu0 %v2621
  %v2666 = vpop.f32.mrf.mxu0
  %v2667 = vadd.f32 %v2614, %v2666
  %2668 = vdwg.mxu0
  %v2669 = vmul.f32 %v2641, %v2641
  %v2670 = vmul.f32 %v2664, %v2664
  %v2671 = vmul.f32 %v2644, %v2644
  %v2672 = vmul.f32 %v2667, %v2667
  %v2673 = vmul.f32 %v2641, %v2669
  %v2674 = vmul.f32 %v2664, %v2670
  %v2675 = vmul.f32 %v2644, %v2671
  %v2676 = vmul.f32 %v2667, %v2672
  %v2677 = vmul.f32 %v2673, 0.044715
  %v2678 = vmul.f32 %v2674, 0.044715
  %v2679 = vmul.f32 %v2675, 0.044715
  %v2680 = vmul.f32 %v2676, 0.044715
  %v2681 = vadd.f32 %v2641, %v2677
  %v2682 = vadd.f32 %v2664, %v2678
  %v2683 = vadd.f32 %v2644, %v2679
  %v2684 = vadd.f32 %v2667, %v2680
  %v2685 = vmul.f32 %v2681, 0.7978846
  %v2686 = vmul.f32 %v2682, 0.7978846
  %v2687 = vmul.f32 %v2683, 0.7978846
  %v2688 = vmul.f32 %v2684, 0.7978846
  %v2689 = vtanh.pop %v2685
  %v2690 = vtanh.pop %v2686
  %v2691 = vtanh.pop %v2687
  %v2692 = vtanh.pop %v2688
  %v2693 = vadd.f32 %v2689, 1.0
  %v2694 = vadd.f32 %v2690, 1.0
  %v2695 = vadd.f32 %v2691, 1.0
  %v2696 = vadd.f32 %v2692, 1.0
  %v2697 = vmul.f32 %v2693, 0.5
  %v2698 = vmul.f32 %v2694, 0.5
  %v2699 = vmul.f32 %v2695, 0.5
  %v2700 = vmul.f32 %v2696, 0.5
  %v2701 = vmul.f32 %v2641, %v2697
  %v2702 = vmul.f32 %v2664, %v2698
  %v2703 = vmul.f32 %v2644, %v2699
  %v2704 = vmul.f32 %v2667, %v2700
  %v2705 = vld [vmem:[%s57] sm:$0xff]
  %v2706 = vld [vmem:[%s57 + $0x8] sm:$0xff]
  %v2707 = vld [vmem:[%s57 + $0x10] sm:$0xff]
  %v2708 = vld [vmem:[%s57 + $0x18] sm:$0xff]
  %v2709 = vld [vmem:[%s57 + $0x20] sm:$0xff]
  %v2710 = vld [vmem:[%s57 + $0x28] sm:$0xff]
  %v2711 = vld [vmem:[%s57 + $0x30] sm:$0xff]
  %v2712 = vld [vmem:[%s57 + $0x38] sm:$0xff]
  %v2713 = vld [vmem:[%s57 + $0x40] sm:$0xff]
  %v2714 = vld [vmem:[%s57 + $0x48] sm:$0xff]
  %v2715 = vld [vmem:[%s57 + $0x50] sm:$0xff]
  %v2716 = vld [vmem:[%s57 + $0x58] sm:$0xff]
  %v2717 = vld [vmem:[%s57 + $0x60] sm:$0xff]
  %v2718 = vld [vmem:[%s57 + $0x68] sm:$0xff]
  %v2719 = vld [vmem:[%s57 + $0x70] sm:$0xff]
  %v2720 = vld [vmem:[%s57 + $0x78] sm:$0xff]
  %v2721 = vld [vmem:[%s57 + $0x80] sm:$0xff]
  %v2722 = vld [vmem:[%s57 + $0x88] sm:$0xff]
  %v2723 = vld [vmem:[%s57 + $0x90] sm:$0xff]
  %v2724 = vld [vmem:[%s57 + $0x98] sm:$0xff]
  %v2725 = vld [vmem:[%s57 + $0xa0] sm:$0xff]
  %v2726 = vld [vmem:[%s57 + $0xa8] sm:$0xff]
  %v2727 = vld [vmem:[%s57 + $0xb0] sm:$0xff]
  %v2728 = vld [vmem:[%s57 + $0xb8] sm:$0xff]
  %v2729 = vld [vmem:[%s57 + $0xc0] sm:$0xff]
  %v2730 = vld [vmem:[%s57 + $0xc8] sm:$0xff]
  %v2731 = vld [vmem:[%s57 + $0xd0] sm:$0xff]
  %v2732 = vld [vmem:[%s57 + $0xd8] sm:$0xff]
  %v2733 = vld [vmem:[%s57 + $0xe0] sm:$0xff]
  %v2734 = vld [vmem:[%s57 + $0xe8] sm:$0xff]
  %v2735 = vld [vmem:[%s57 + $0xf0] sm:$0xff]
  %v2736 = vld [vmem:[%s57 + $0xf8] sm:$0xff]
  %2737 = vmatpush.msra.mxu0 %v2720
  %2738 = vmatpush.msra.mxu0 %v2719
  %2739 = vmatpush.msra.mxu0 %v2718
  %2740 = vmatpush.msra.mxu0 %v2717
  %2741 = vmatpush.msra.mxu0 %v2716
  %2742 = vmatpush.msra.mxu0 %v2715
  %2743 = vmatpush.msra.mxu0 %v2714
  %2744 = vmatpush.msra.mxu0 %v2713
  %2745 = vmatpush.msra.mxu0 %v2712
  %2746 = vmatpush.msra.mxu0 %v2711
  %2747 = vmatpush.msra.mxu0 %v2710
  %2748 = vmatpush.msra.mxu0 %v2709
  %2749 = vmatpush.msra.mxu0 %v2708
  %2750 = vmatpush.msra.mxu0 %v2707
  %2751 = vmatpush.msra.mxu0 %v2706
  %2752 = vmatpush.msra.mxu0 %v2705
  %2753 = vmatmul.f32.gmra.mxu0 %v2701
  %v2754 = vpop.f32.mrf.mxu0
  %v2755 = vadd.f32 0.0, %v2754
  %2756 = vmatmul.f32.gmra.mxu0 %v2703
  %v2757 = vpop.f32.mrf.mxu0
  %v2758 = vadd.f32 0.0, %v2757
  %2759 = vdwg.mxu0
  %2760 = vmatpush.msra.mxu0 %v2736
  %2761 = vmatpush.msra.mxu0 %v2735
  %2762 = vmatpush.msra.mxu0 %v2734
  %2763 = vmatpush.msra.mxu0 %v2733
  %2764 = vmatpush.msra.mxu0 %v2732
  %2765 = vmatpush.msra.mxu0 %v2731
  %2766 = vmatpush.msra.mxu0 %v2730
  %2767 = vmatpush.msra.mxu0 %v2729
  %2768 = vmatpush.msra.mxu0 %v2728
  %2769 = vmatpush.msra.mxu0 %v2727
  %2770 = vmatpush.msra.mxu0 %v2726
  %2771 = vmatpush.msra.mxu0 %v2725
  %2772 = vmatpush.msra.mxu0 %v2724
  %2773 = vmatpush.msra.mxu0 %v2723
  %2774 = vmatpush.msra.mxu0 %v2722
  %2775 = vmatpush.msra.mxu0 %v2721
  %2776 = vmatmul.f32.gmra.mxu0 %v2702
  %v2777 = vpop.f32.mrf.mxu0
  %v2778 = vadd.f32 %v2755, %v2777
  %2779 = vmatmul.f32.gmra.mxu0 %v2704
  %v2780 = vpop.f32.mrf.mxu0
  %v2781 = vadd.f32 %v2758, %v2780
  %2782 = vdwg.mxu0
  %v2783 = vadd.f32 %v2537, %v2778
  %v2784 = vadd.f32 %v2538, %v2781
  %v2785 = vld [vmem:[%s59] sm:$0x1]
  %v2787 = vperm.slane %v2785, 0
  %v2789 = vadd.f32 %v2783, %v2787
  %v2790 = vadd.f32 %v2784, %v2787
  %v2792 = vrot.slane %v2790, 7
  %vm2794 = vcmask 1040384
  %v2795 = vsel %vm2794, %v2789, %v2792
  %vm2796 = vcmask 517120
  %v2797 = vsel %vm2796, %v2795, 0.0
  %2798 = vadd.xlane.f32.xlu0 %v2797
  %v2799 = vpop.xlane.xlu0 %2798
  %v2800 = vmul.f32 %v2799, %v405
  %v2801 = vsub.f32 %v2795, %v2800
  %v2802 = vmul.f32 %v2801, %v2801
  %v2803 = vsel %vm2796, %v2802, 0.0
  %2804 = vadd.xlane.f32.xlu0 %v2803
  %v2805 = vpop.xlane.xlu0 %2804
  %v2806 = vmul.f32 %v2805, %v405
  %v2807 = vadd.f32 %v2806, 1e-06
  %v2808 = vrsqrt.pop %v2807
  %v2809 = vmul.f32 %v2808, %v2807
  %v2810 = vmul.f32 %v2809, %v2808
  %v2811 = vmul.f32 0.5, %v2810
  %v2812 = vsub.f32 1.5, %v2811
  %v2813 = vmul.f32 %v2808, %v2812
  %vm2814 = vweird.f32 %v2807
  %vm2815 = vweird.f32 %v2808
  %vm2816 = vmor %vm2814, %vm2815
  %v2817 = vsel %vm2816, %v2808, %v2813
  %v2818 = vmul.f32 %v2801, %v2817
  %v2819 = vld [vmem:[%s61] sm:$0x1]
  %v2821 = vperm.slane %v2819, 0
  %v2823 = vmul.f32 %v2818, %v2821
  %v2824 = vld [vmem:[%s63] sm:$0x1]
  %v2826 = vperm.slane %v2824, 0
  %v2828 = vadd.f32 %v2823, %v2826
  %v2829 = vld [vmem:[%s65] sm:$0x1]
  %v2831 = vperm.slane %v2829, 0
  %v2833 = vmul.f32 %v2828, %v2831
  %v2834 = vsel %vm2796, %v2833, 0.0
  %2835 = vadd.xlane.f32.xlu0 %v2834
  %v2836 = vpop.xlane.xlu0 %2835
  %v2837 = vld [vmem:[#allocation2] sm:$0x1]
  %v2839 = vperm.slane %v2837, 0
  %v2841 = vadd.f32 %v2836, %v2839
  %vm2842 = vcmask 1024
  %2843 = vst.msk [vmem:[%s69] sm:$0x3] %vm2842, %v2841
  // Predicated region
  $region138: #{vit_forward.1} parent=0 // pred_check
    _
  $region139: #{vit_forward.1} parent=0 // pred_check_branch
    %2845 = sbr.rel (0) target = $region141
  $region140: #{vit_forward.1} parent=0 // pred_region
    _
  $region141: #{vit_forward.1} parent=0 // pred_fallthru
    _
  // Predicated region
  $region142: #{vit_forward.1} parent=0 // pred_check
    _
  $region143: #{vit_forward.1} parent=0 // pred_check_branch
    %2847 = sbr.rel (0) target = $region145
  $region144: #{vit_forward.1} parent=0 // pred_region
    _
  $region145: #{vit_forward.1} parent=0 // pred_fallthru
    _

</llo_original>
